<compile_context>
chip_gen: v7x
topology: tpu7x:2x2x1
jax: 0.10.0
libtpu: 0.0.40
codegen_flags: <defaults>
</compile_context>

<pallas_src>
import jax
import jax.numpy as jnp
import numpy as np
from jax import lax
from jax.experimental import pallas as pl
from jax.experimental.pallas import tpu as pltpu

H = W = 8                 # input_shape = (8, 8)
HW = H * W
C1, C2 = 32, 64
OUT = HW                  # output_size = 64 (one Q-value per cell)
HID = max(128, OUT * 2)   # = 128
KS = 3                    # conv kernel size
OUT_PAD = 128             # fc2 output padded to a full 128-lane store
RC1 = W * C1              # 256: lanes per image row of conv1 activations
RC2 = W * C2              # 512: lanes per image row of conv2 activations

# MXU operand dtype.  f32 keeps the 1e-3 check bulletproof; jnp.bfloat16
# roughly doubles MXU throughput on v6e/v7x and halves resident-weight VMEM.
MXU_DTYPE = jnp.float32


# ------------------------------ fused kernel --------------------------------

def _dqn_fused_kernel(x_ref, b1m_ref, b1b_ref, w2_ref, b2b_ref,
                      fw1_ref, fb1_ref, fw2_ref, fb2_ref,
                      o_ref, h1p_ref):
    tb = x_ref.shape[0]                      # batch tile for this grid step

    # conv2's zero halo rows (padded image rows y=-1 and y=H).  Scratch is
    # uninitialized and per-TensorCore, so re-zero every step (2 dense slabs).
    zrow = jnp.zeros((tb, RC1), MXU_DTYPE)
    h1p_ref[0:tb, :] = zrow
    h1p_ref[(H + 1) * tb:(H + 2) * tb, :] = zrow

    # ---- conv1: one dense MXU matmul against the precomputed position map --
    # B1[q, p*C1+c] = w1[c, ky, kx] wherever input pixel q lies in output
    # pixel p's 3x3 window; SAME padding == the zeros elsewhere.
    h1 = jnp.dot(x_ref[...].astype(MXU_DTYPE), b1m_ref[...],
                 preferred_element_type=jnp.float32)
    h1 = jnp.maximum(h1 + b1b_ref[...], 0.0)            # (tb, H*W*C1), (y,x,c)
    h1 = h1.astype(MXU_DTYPE)

    # Scatter image rows into the y-padded, (y, n)-row-major conv2 buffer.
    # Every slice/store is 256-lane dense and sublane aligned (tb % 8 == 0).
    for y in range(H):
        h1p_ref[(1 + y) * tb:(2 + y) * tb, :] = h1[:, y * RC1:(y + 1) * RC1]

    # ---- conv2: 3 row-tap matmuls; x-offsets and x-padding live in w2r -----
    acc2 = jnp.zeros((H * tb, RC2), jnp.float32)
    for ky in range(KS):
        lhs = h1p_ref[ky * tb:(ky + H) * tb, :]          # rows (y_out, n)
        acc2 = acc2 + jnp.dot(lhs, w2_ref[ky],
                              preferred_element_type=jnp.float32)
    h2 = jnp.maximum(acc2 + b2b_ref[...], 0.0)           # rows (y,n), cols (x,c2)
    h2 = h2.astype(MXU_DTYPE)

    # ---- fc1: 8 accumulating matmuls, one per image row --------------------
    # The torch NCHW x.view(N, -1) flatten is folded into fw1's init-time
    # permutation, so no runtime flatten / relayout is needed.
    acc = jnp.zeros((tb, HID), jnp.float32)
    for y in range(H):
        acc = acc + jnp.dot(h2[y * tb:(y + 1) * tb, :], fw1_ref[y],
                            preferred_element_type=jnp.float32)
    hid = jnp.maximum(acc + fb1_ref[...], 0.0).astype(MXU_DTYPE)

    # ---- fc2 (N padded to 128 so the output store is a full-lane vst) ------
    out = jnp.dot(hid, fw2_ref[...], preferred_element_type=jnp.float32)
    o_ref[...] = out + fb2_ref[...]


# ------------------------------- wrapper ------------------------------------

def _pick_batch_tile(n):
    """MXU-filling batch tile per TPU generation, clamped to the batch."""
    try:
        kind = jax.devices()[0].device_kind.lower()
    except Exception:
        kind = ""
    target = 128 if "v5" in kind else 256     # v5e MXU is 128 tall; v6e/v7x 256
    tb = min(target, max(8, ((n + 7) // 8) * 8))
    if "7" in kind:                            # v7x: 2 TCs -> prefer >=2 tiles
        while tb > 8 and (n + tb - 1) // tb < 2 and n > tb // 2:
            tb = max(8, ((tb // 2) // 8) * 8)
    return tb


def dqn_forward(x_nchw, kernel_params, *, batch_tile=None):
    n = x_nchw.shape[0]
    tb = _pick_batch_tile(n) if batch_tile is None else batch_tile
    assert tb % 8 == 0 and tb > 0

    # C_in == 1, so the NCHW image flattens straight to (y, x) pixel order.
    x = x_nchw.astype(jnp.float32).reshape(n, HW)
    pad = (-n) % tb
    if pad:
        x = jnp.pad(x, ((0, pad), (0, 0)))
    nt = n + pad

    def resident(p):          # whole array, VMEM-resident across grid steps
        zeros = (0,) * p.ndim
        return pl.BlockSpec(p.shape, lambda i, _z=zeros: _z)

    out = pl.pallas_call(
        _dqn_fused_kernel,
        grid=(nt // tb,),
        in_specs=[pl.BlockSpec((tb, HW), lambda i: (i, 0))]
                 + [resident(p) for p in kernel_params],
        out_specs=pl.BlockSpec((tb, OUT_PAD), lambda i: (i, 0)),
        out_shape=jax.ShapeDtypeStruct((nt, OUT_PAD), jnp.float32),
        scratch_shapes=[pltpu.VMEM(((H + 2) * tb, RC1), MXU_DTYPE)],
        compiler_params=pltpu.CompilerParams(
            dimension_semantics=("parallel",),       # v7x: split across 2 TCs
            vmem_limit_bytes=48 * 1024 * 1024),      # > v5e's 16 MiB default
    )(x, *kernel_params)
    return out[:n, :OUT]


# --------------------------- parameters & reference --------------------------

def init_params(key):
    ks = jax.random.split(key, 8)
    conv1_w = jax.random.normal(ks[0], (C1, 1, KS, KS), jnp.float32) * 0.10
    conv1_b = jax.random.normal(ks[1], (C1,), jnp.float32) * 0.10
    conv2_w = jax.random.normal(ks[2], (C2, C1, KS, KS), jnp.float32) * 0.05
    conv2_b = jax.random.normal(ks[3], (C2,), jnp.float32) * 0.05
    fc1_w = jax.random.normal(ks[4], (HID, C2 * HW), jnp.float32) * 0.02
    fc1_b = jax.random.normal(ks[5], (HID,), jnp.float32) * 0.02
    fc2_w = jax.random.normal(ks[6], (OUT, HID), jnp.float32) * 0.02
    fc2_b = jax.random.normal(ks[7], (OUT,), jnp.float32) * 0.02
    torch_params = (conv1_w, conv1_b, conv2_w, conv2_b,
                    fc1_w, fc1_b, fc2_w, fc2_b)

    w1 = np.asarray(conv1_w)
    w2 = np.asarray(conv2_w)

    # conv1 as one dense matmul: B1[y_in*W+x_in, (y_out*W+x_out)*C1 + c] holds
    # w1[c, ky, kx] when the input pixel is in the output pixel's 3x3 window.
    B1 = np.zeros((HW, HW * C1), np.float32)
    for yo in range(H):
        for xo in range(W):
            p = yo * W + xo
            for ky in range(KS):
                for kx in range(KS):
                    yi, xi = yo + ky - 1, xo + kx - 1
                    if 0 <= yi < H and 0 <= xi < W:
                        B1[yi * W + xi, p * C1:(p + 1) * C1] = w1[:, 0, ky, kx]

    # conv2 as 3 row-tap matmuls: W2r[ky, x_in*C1+c1, x_out*C2+c2] holds
    # w2[c2, c1, ky, x_in-x_out+1]; x SAME padding is again the zeros.
    W2r = np.zeros((KS, RC1, RC2), np.float32)
    for ky in range(KS):
        for xo in range(W):
            for kx in range(KS):
                xi = xo + kx - 1
                if 0 <= xi < W:
                    W2r[ky, xi * C1:(xi + 1) * C1,
                        xo * C2:(xo + 1) * C2] = w2[:, :, ky, kx].T

    # fc1: torch flattens NCHW (c2, y, x); regroup per image row y to match
    # the kernel's (y, n) x (x, c2) conv2 activation layout.
    fw1 = np.transpose(np.asarray(fc1_w).reshape(HID, C2, H, W),
                       (2, 3, 1, 0)).reshape(H, RC2, HID)

    # fc2: zero-pad N from 64 to 128 so the kernel's output store is dense.
    fw2 = np.zeros((HID, OUT_PAD), np.float32)
    fw2[:, :OUT] = np.asarray(fc2_w).T
    fb2 = np.zeros((1, OUT_PAD), np.float32)
    fb2[0, :OUT] = np.asarray(fc2_b)

    kernel_params = (
        jnp.asarray(B1, MXU_DTYPE),
        jnp.tile(conv1_b, HW).reshape(1, HW * C1),       # f32 bias, (y,x,c) cols
        jnp.asarray(W2r, MXU_DTYPE),
        jnp.tile(conv2_b, W).reshape(1, RC2),            # f32 bias, (x,c2) cols
        jnp.asarray(fw1, MXU_DTYPE),
        fc1_b.reshape(1, HID),
        jnp.asarray(fw2, MXU_DTYPE),
        jnp.asarray(fb2),
    )
    return torch_params, kernel_params


def reference_forward(x_nchw, torch_params):
    (c1w, c1b, c2w, c2b, f1w, f1b, f2w, f2b) = torch_params
    dn = ('NCHW', 'OIHW', 'NCHW')
    h = lax.conv_general_dilated(x_nchw, c1w, (1, 1), 'SAME', dimension_numbers=dn)
    h = jnp.maximum(h + c1b[None, :, None, None], 0.0)
    h = lax.conv_general_dilated(h, c2w, (1, 1), 'SAME', dimension_numbers=dn)
    h = jnp.maximum(h + c2b[None, :, None, None], 0.0)
    h = h.reshape(h.shape[0], -1)
    h = jnp.maximum(h @ f1w.T + f1b, 0.0)
    return h @ f2w.T + f2b


# --------------------------------- main --------------------------------------

if __name__ == "__main__":
    key = jax.random.PRNGKey(0)
    pkey, xkey = jax.random.split(key)
    torch_params, kernel_params = init_params(pkey)

    # PyTorch-style NCHW input: batch=2, channels=1, spatial=8x8
    x = jax.random.normal(xkey, (2, 1, H, W), jnp.float32)

    out = jax.block_until_ready(dqn_forward(x, kernel_params))
    ref = jax.block_until_ready(reference_forward(x, torch_params))

    assert out.shape == (2, OUT), out.shape
    assert jnp.allclose(out, ref, rtol=1e-3, atol=1e-3), \
        float(jnp.max(jnp.abs(out - ref)))
    print("KERNEL_OK")
</pallas_src>

<mosaic_0001>
module attributes {stable_mosaic.version = 11 : i64} {
  func.func @_dqn_fused_kernel(%arg0: i32, %arg1: memref<8x64xf32, #tpu.memory_space<vmem>>, %arg2: memref<64x2048xf32, #tpu.memory_space<vmem>>, %arg3: memref<1x2048xf32, #tpu.memory_space<vmem>>, %arg4: memref<3x256x512xf32, #tpu.memory_space<vmem>>, %arg5: memref<1x512xf32, #tpu.memory_space<vmem>>, %arg6: memref<8x512x128xf32, #tpu.memory_space<vmem>>, %arg7: memref<1x128xf32, #tpu.memory_space<vmem>>, %arg8: memref<128x128xf32, #tpu.memory_space<vmem>>, %arg9: memref<1x128xf32, #tpu.memory_space<vmem>>, %arg10: memref<8x128xf32, #tpu.memory_space<vmem>>, %arg11: memref<80x256xf32, #tpu.memory_space<vmem>>) attributes {dimension_semantics = [#tpu.dimension_semantics<parallel>], iteration_bounds = array<i64: 1>, scalar_prefetch = 0 : i64, scratch_operands = 1 : i64, tpu.core_type = #tpu.core_type<tc>, window_params = [{transform_indices = @transform_0, window_bounds = array<i64: 8, 64>}, {pipeline_mode = #tpu.pipeline_mode<synchronous>, transform_indices = @transform_1, window_bounds = array<i64: 64, 2048>}, {pipeline_mode = #tpu.pipeline_mode<synchronous>, transform_indices = @transform_2, window_bounds = array<i64: 1, 2048>}, {pipeline_mode = #tpu.pipeline_mode<synchronous>, transform_indices = @transform_3, window_bounds = array<i64: 3, 256, 512>}, {pipeline_mode = #tpu.pipeline_mode<synchronous>, transform_indices = @transform_4, window_bounds = array<i64: 1, 512>}, {pipeline_mode = #tpu.pipeline_mode<synchronous>, transform_indices = @transform_5, window_bounds = array<i64: 8, 512, 128>}, {pipeline_mode = #tpu.pipeline_mode<synchronous>, transform_indices = @transform_6, window_bounds = array<i64: 1, 128>}, {pipeline_mode = #tpu.pipeline_mode<synchronous>, transform_indices = @transform_7, window_bounds = array<i64: 128, 128>}, {pipeline_mode = #tpu.pipeline_mode<synchronous>, transform_indices = @transform_8, window_bounds = array<i64: 1, 128>}, {transform_indices = @transform_9, window_bounds = array<i64: 8, 128>}]} {
    %cst = arith.constant 0.000000e+00 : f32
    %0 = vector.broadcast %cst : f32 to vector<8x256xf32>
    %c0 = arith.constant 0 : index
    %c0_0 = arith.constant 0 : index
    %1 = vector.load %arg11[%c0, %c0_0] : memref<80x256xf32, #tpu.memory_space<vmem>>, vector<8x256xf32>
    tpu.vector_store %arg11[%c0, %c0_0], %0 {strides = array<i32>} : memref<80x256xf32, #tpu.memory_space<vmem>>, vector<8x256xf32>,
    %c72 = arith.constant 72 : index
    %c0_1 = arith.constant 0 : index
    %2 = vector.load %arg11[%c72, %c0_1] : memref<80x256xf32, #tpu.memory_space<vmem>>, vector<8x256xf32>
    tpu.vector_store %arg11[%c72, %c0_1], %0 {strides = array<i32>} : memref<80x256xf32, #tpu.memory_space<vmem>>, vector<8x256xf32>,
    %c0_2 = arith.constant 0 : index
    %c0_3 = arith.constant 0 : index
    %3 = vector.load %arg1[%c0_2, %c0_3] : memref<8x64xf32, #tpu.memory_space<vmem>>, vector<8x64xf32>
    %c0_4 = arith.constant 0 : index
    %c0_5 = arith.constant 0 : index
    %4 = vector.load %arg2[%c0_4, %c0_5] : memref<64x2048xf32, #tpu.memory_space<vmem>>, vector<64x2048xf32>
    %cst_6 = arith.constant dense<0.000000e+00> : vector<8x2048xf32>
    %5 = tpu.matmul %3, %4, %cst_6 {dimension_numbers = #tpu.dot_dimension_numbers<[1], [0], [0], [1], [0, 0, 1, 1], [], []>} : vector<8x64xf32>, vector<64x2048xf32>, vector<8x2048xf32> -> vector<8x2048xf32>
    %c0_7 = arith.constant 0 : index
    %c0_8 = arith.constant 0 : index
    %6 = vector.load %arg3[%c0_7, %c0_8] : memref<1x2048xf32, #tpu.memory_space<vmem>>, vector<1x2048xf32>
    %7 = vector.broadcast %6 : vector<1x2048xf32> to vector<8x2048xf32>
    %8 = arith.addf %5, %7 : vector<8x2048xf32>
    %cst_9 = arith.constant 0.000000e+00 : f32
    %9 = vector.broadcast %cst_9 : f32 to vector<8x2048xf32>
    %10 = arith.maximumf %8, %9 : vector<8x2048xf32>
    %11 = vector.extract_strided_slice %10 {offsets = [0, 0], sizes = [8, 256], strides = [1, 1]} : vector<8x2048xf32> to vector<8x256xf32>
    %c8 = arith.constant 8 : index
    %c0_10 = arith.constant 0 : index
    %12 = vector.load %arg11[%c8, %c0_10] : memref<80x256xf32, #tpu.memory_space<vmem>>, vector<8x256xf32>
    tpu.vector_store %arg11[%c8, %c0_10], %11 {strides = array<i32>} : memref<80x256xf32, #tpu.memory_space<vmem>>, vector<8x256xf32>,
    %13 = vector.extract_strided_slice %10 {offsets = [0, 256], sizes = [8, 256], strides = [1, 1]} : vector<8x2048xf32> to vector<8x256xf32>
    %c16 = arith.constant 16 : index
    %c0_11 = arith.constant 0 : index
    %14 = vector.load %arg11[%c16, %c0_11] : memref<80x256xf32, #tpu.memory_space<vmem>>, vector<8x256xf32>
    tpu.vector_store %arg11[%c16, %c0_11], %13 {strides = array<i32>} : memref<80x256xf32, #tpu.memory_space<vmem>>, vector<8x256xf32>,
    %15 = vector.extract_strided_slice %10 {offsets = [0, 512], sizes = [8, 256], strides = [1, 1]} : vector<8x2048xf32> to vector<8x256xf32>
    %c24 = arith.constant 24 : index
    %c0_12 = arith.constant 0 : index
    %16 = vector.load %arg11[%c24, %c0_12] : memref<80x256xf32, #tpu.memory_space<vmem>>, vector<8x256xf32>
    tpu.vector_store %arg11[%c24, %c0_12], %15 {strides = array<i32>} : memref<80x256xf32, #tpu.memory_space<vmem>>, vector<8x256xf32>,
    %17 = vector.extract_strided_slice %10 {offsets = [0, 768], sizes = [8, 256], strides = [1, 1]} : vector<8x2048xf32> to vector<8x256xf32>
    %c32 = arith.constant 32 : index
    %c0_13 = arith.constant 0 : index
    %18 = vector.load %arg11[%c32, %c0_13] : memref<80x256xf32, #tpu.memory_space<vmem>>, vector<8x256xf32>
    tpu.vector_store %arg11[%c32, %c0_13], %17 {strides = array<i32>} : memref<80x256xf32, #tpu.memory_space<vmem>>, vector<8x256xf32>,
    %19 = vector.extract_strided_slice %10 {offsets = [0, 1024], sizes = [8, 256], strides = [1, 1]} : vector<8x2048xf32> to vector<8x256xf32>
    %c40 = arith.constant 40 : index
    %c0_14 = arith.constant 0 : index
    %20 = vector.load %arg11[%c40, %c0_14] : memref<80x256xf32, #tpu.memory_space<vmem>>, vector<8x256xf32>
    tpu.vector_store %arg11[%c40, %c0_14], %19 {strides = array<i32>} : memref<80x256xf32, #tpu.memory_space<vmem>>, vector<8x256xf32>,
    %21 = vector.extract_strided_slice %10 {offsets = [0, 1280], sizes = [8, 256], strides = [1, 1]} : vector<8x2048xf32> to vector<8x256xf32>
    %c48 = arith.constant 48 : index
    %c0_15 = arith.constant 0 : index
    %22 = vector.load %arg11[%c48, %c0_15] : memref<80x256xf32, #tpu.memory_space<vmem>>, vector<8x256xf32>
    tpu.vector_store %arg11[%c48, %c0_15], %21 {strides = array<i32>} : memref<80x256xf32, #tpu.memory_space<vmem>>, vector<8x256xf32>,
    %23 = vector.extract_strided_slice %10 {offsets = [0, 1536], sizes = [8, 256], strides = [1, 1]} : vector<8x2048xf32> to vector<8x256xf32>
    %c56 = arith.constant 56 : index
    %c0_16 = arith.constant 0 : index
    %24 = vector.load %arg11[%c56, %c0_16] : memref<80x256xf32, #tpu.memory_space<vmem>>, vector<8x256xf32>
    tpu.vector_store %arg11[%c56, %c0_16], %23 {strides = array<i32>} : memref<80x256xf32, #tpu.memory_space<vmem>>, vector<8x256xf32>,
    %25 = vector.extract_strided_slice %10 {offsets = [0, 1792], sizes = [8, 256], strides = [1, 1]} : vector<8x2048xf32> to vector<8x256xf32>
    %c64 = arith.constant 64 : index
    %c0_17 = arith.constant 0 : index
    %26 = vector.load %arg11[%c64, %c0_17] : memref<80x256xf32, #tpu.memory_space<vmem>>, vector<8x256xf32>
    tpu.vector_store %arg11[%c64, %c0_17], %25 {strides = array<i32>} : memref<80x256xf32, #tpu.memory_space<vmem>>, vector<8x256xf32>,
    %cst_18 = arith.constant 0.000000e+00 : f32
    %27 = vector.broadcast %cst_18 : f32 to vector<64x512xf32>
    %c0_19 = arith.constant 0 : index
    %c0_20 = arith.constant 0 : index
    %28 = vector.load %arg11[%c0_19, %c0_20] : memref<80x256xf32, #tpu.memory_space<vmem>>, vector<64x256xf32>
    %c0_21 = arith.constant 0 : index
    %c0_22 = arith.constant 0 : index
    %c0_23 = arith.constant 0 : index
    %29 = vector.load %arg4[%c0_21, %c0_22, %c0_23] : memref<3x256x512xf32, #tpu.memory_space<vmem>>, vector<1x256x512xf32>
    %30 = vector.shape_cast %29 : vector<1x256x512xf32> to vector<256x512xf32>
    %cst_24 = arith.constant dense<0.000000e+00> : vector<64x512xf32>
    %31 = tpu.matmul %28, %30, %cst_24 {dimension_numbers = #tpu.dot_dimension_numbers<[1], [0], [0], [1], [0, 0, 1, 1], [], []>} : vector<64x256xf32>, vector<256x512xf32>, vector<64x512xf32> -> vector<64x512xf32>
    %32 = arith.addf %27, %31 : vector<64x512xf32>
    %c8_25 = arith.constant 8 : index
    %c0_26 = arith.constant 0 : index
    %33 = vector.load %arg11[%c8_25, %c0_26] : memref<80x256xf32, #tpu.memory_space<vmem>>, vector<64x256xf32>
    %c1 = arith.constant 1 : index
    %c0_27 = arith.constant 0 : index
    %c0_28 = arith.constant 0 : index
    %34 = vector.load %arg4[%c1, %c0_27, %c0_28] : memref<3x256x512xf32, #tpu.memory_space<vmem>>, vector<1x256x512xf32>
    %35 = vector.shape_cast %34 : vector<1x256x512xf32> to vector<256x512xf32>
    %cst_29 = arith.constant dense<0.000000e+00> : vector<64x512xf32>
    %36 = tpu.matmul %33, %35, %cst_29 {dimension_numbers = #tpu.dot_dimension_numbers<[1], [0], [0], [1], [0, 0, 1, 1], [], []>} : vector<64x256xf32>, vector<256x512xf32>, vector<64x512xf32> -> vector<64x512xf32>
    %37 = arith.addf %32, %36 : vector<64x512xf32>
    %c16_30 = arith.constant 16 : index
    %c0_31 = arith.constant 0 : index
    %38 = vector.load %arg11[%c16_30, %c0_31] : memref<80x256xf32, #tpu.memory_space<vmem>>, vector<64x256xf32>
    %c2 = arith.constant 2 : index
    %c0_32 = arith.constant 0 : index
    %c0_33 = arith.constant 0 : index
    %39 = vector.load %arg4[%c2, %c0_32, %c0_33] : memref<3x256x512xf32, #tpu.memory_space<vmem>>, vector<1x256x512xf32>
    %40 = vector.shape_cast %39 : vector<1x256x512xf32> to vector<256x512xf32>
    %cst_34 = arith.constant dense<0.000000e+00> : vector<64x512xf32>
    %41 = tpu.matmul %38, %40, %cst_34 {dimension_numbers = #tpu.dot_dimension_numbers<[1], [0], [0], [1], [0, 0, 1, 1], [], []>} : vector<64x256xf32>, vector<256x512xf32>, vector<64x512xf32> -> vector<64x512xf32>
    %42 = arith.addf %37, %41 : vector<64x512xf32>
    %c0_35 = arith.constant 0 : index
    %c0_36 = arith.constant 0 : index
    %43 = vector.load %arg5[%c0_35, %c0_36] : memref<1x512xf32, #tpu.memory_space<vmem>>, vector<1x512xf32>
    %44 = vector.broadcast %43 : vector<1x512xf32> to vector<64x512xf32>
    %45 = arith.addf %42, %44 : vector<64x512xf32>
    %cst_37 = arith.constant 0.000000e+00 : f32
    %46 = vector.broadcast %cst_37 : f32 to vector<64x512xf32>
    %47 = arith.maximumf %45, %46 : vector<64x512xf32>
    %cst_38 = arith.constant 0.000000e+00 : f32
    %48 = vector.broadcast %cst_38 : f32 to vector<8x128xf32>
    %49 = vector.extract_strided_slice %47 {offsets = [0, 0], sizes = [8, 512], strides = [1, 1]} : vector<64x512xf32> to vector<8x512xf32>
    %c0_39 = arith.constant 0 : index
    %c0_40 = arith.constant 0 : index
    %c0_41 = arith.constant 0 : index
    %50 = vector.load %arg6[%c0_39, %c0_40, %c0_41] : memref<8x512x128xf32, #tpu.memory_space<vmem>>, vector<1x512x128xf32>
    %51 = vector.shape_cast %50 : vector<1x512x128xf32> to vector<512x128xf32>
    %cst_42 = arith.constant dense<0.000000e+00> : vector<8x128xf32>
    %52 = tpu.matmul %49, %51, %cst_42 {dimension_numbers = #tpu.dot_dimension_numbers<[1], [0], [0], [1], [0, 0, 1, 1], [], []>} : vector<8x512xf32>, vector<512x128xf32>, vector<8x128xf32> -> vector<8x128xf32>
    %53 = arith.addf %48, %52 : vector<8x128xf32>
    %54 = vector.extract_strided_slice %47 {offsets = [8, 0], sizes = [8, 512], strides = [1, 1]} : vector<64x512xf32> to vector<8x512xf32>
    %c1_43 = arith.constant 1 : index
    %c0_44 = arith.constant 0 : index
    %c0_45 = arith.constant 0 : index
    %55 = vector.load %arg6[%c1_43, %c0_44, %c0_45] : memref<8x512x128xf32, #tpu.memory_space<vmem>>, vector<1x512x128xf32>
    %56 = vector.shape_cast %55 : vector<1x512x128xf32> to vector<512x128xf32>
    %cst_46 = arith.constant dense<0.000000e+00> : vector<8x128xf32>
    %57 = tpu.matmul %54, %56, %cst_46 {dimension_numbers = #tpu.dot_dimension_numbers<[1], [0], [0], [1], [0, 0, 1, 1], [], []>} : vector<8x512xf32>, vector<512x128xf32>, vector<8x128xf32> -> vector<8x128xf32>
    %58 = arith.addf %53, %57 : vector<8x128xf32>
    %59 = vector.extract_strided_slice %47 {offsets = [16, 0], sizes = [8, 512], strides = [1, 1]} : vector<64x512xf32> to vector<8x512xf32>
    %c2_47 = arith.constant 2 : index
    %c0_48 = arith.constant 0 : index
    %c0_49 = arith.constant 0 : index
    %60 = vector.load %arg6[%c2_47, %c0_48, %c0_49] : memref<8x512x128xf32, #tpu.memory_space<vmem>>, vector<1x512x128xf32>
    %61 = vector.shape_cast %60 : vector<1x512x128xf32> to vector<512x128xf32>
    %cst_50 = arith.constant dense<0.000000e+00> : vector<8x128xf32>
    %62 = tpu.matmul %59, %61, %cst_50 {dimension_numbers = #tpu.dot_dimension_numbers<[1], [0], [0], [1], [0, 0, 1, 1], [], []>} : vector<8x512xf32>, vector<512x128xf32>, vector<8x128xf32> -> vector<8x128xf32>
    %63 = arith.addf %58, %62 : vector<8x128xf32>
    %64 = vector.extract_strided_slice %47 {offsets = [24, 0], sizes = [8, 512], strides = [1, 1]} : vector<64x512xf32> to vector<8x512xf32>
    %c3 = arith.constant 3 : index
    %c0_51 = arith.constant 0 : index
    %c0_52 = arith.constant 0 : index
    %65 = vector.load %arg6[%c3, %c0_51, %c0_52] : memref<8x512x128xf32, #tpu.memory_space<vmem>>, vector<1x512x128xf32>
    %66 = vector.shape_cast %65 : vector<1x512x128xf32> to vector<512x128xf32>
    %cst_53 = arith.constant dense<0.000000e+00> : vector<8x128xf32>
    %67 = tpu.matmul %64, %66, %cst_53 {dimension_numbers = #tpu.dot_dimension_numbers<[1], [0], [0], [1], [0, 0, 1, 1], [], []>} : vector<8x512xf32>, vector<512x128xf32>, vector<8x128xf32> -> vector<8x128xf32>
    %68 = arith.addf %63, %67 : vector<8x128xf32>
    %69 = vector.extract_strided_slice %47 {offsets = [32, 0], sizes = [8, 512], strides = [1, 1]} : vector<64x512xf32> to vector<8x512xf32>
    %c4 = arith.constant 4 : index
    %c0_54 = arith.constant 0 : index
    %c0_55 = arith.constant 0 : index
    %70 = vector.load %arg6[%c4, %c0_54, %c0_55] : memref<8x512x128xf32, #tpu.memory_space<vmem>>, vector<1x512x128xf32>
    %71 = vector.shape_cast %70 : vector<1x512x128xf32> to vector<512x128xf32>
    %cst_56 = arith.constant dense<0.000000e+00> : vector<8x128xf32>
    %72 = tpu.matmul %69, %71, %cst_56 {dimension_numbers = #tpu.dot_dimension_numbers<[1], [0], [0], [1], [0, 0, 1, 1], [], []>} : vector<8x512xf32>, vector<512x128xf32>, vector<8x128xf32> -> vector<8x128xf32>
    %73 = arith.addf %68, %72 : vector<8x128xf32>
    %74 = vector.extract_strided_slice %47 {offsets = [40, 0], sizes = [8, 512], strides = [1, 1]} : vector<64x512xf32> to vector<8x512xf32>
    %c5 = arith.constant 5 : index
    %c0_57 = arith.constant 0 : index
    %c0_58 = arith.constant 0 : index
    %75 = vector.load %arg6[%c5, %c0_57, %c0_58] : memref<8x512x128xf32, #tpu.memory_space<vmem>>, vector<1x512x128xf32>
    %76 = vector.shape_cast %75 : vector<1x512x128xf32> to vector<512x128xf32>
    %cst_59 = arith.constant dense<0.000000e+00> : vector<8x128xf32>
    %77 = tpu.matmul %74, %76, %cst_59 {dimension_numbers = #tpu.dot_dimension_numbers<[1], [0], [0], [1], [0, 0, 1, 1], [], []>} : vector<8x512xf32>, vector<512x128xf32>, vector<8x128xf32> -> vector<8x128xf32>
    %78 = arith.addf %73, %77 : vector<8x128xf32>
    %79 = vector.extract_strided_slice %47 {offsets = [48, 0], sizes = [8, 512], strides = [1, 1]} : vector<64x512xf32> to vector<8x512xf32>
    %c6 = arith.constant 6 : index
    %c0_60 = arith.constant 0 : index
    %c0_61 = arith.constant 0 : index
    %80 = vector.load %arg6[%c6, %c0_60, %c0_61] : memref<8x512x128xf32, #tpu.memory_space<vmem>>, vector<1x512x128xf32>
    %81 = vector.shape_cast %80 : vector<1x512x128xf32> to vector<512x128xf32>
    %cst_62 = arith.constant dense<0.000000e+00> : vector<8x128xf32>
    %82 = tpu.matmul %79, %81, %cst_62 {dimension_numbers = #tpu.dot_dimension_numbers<[1], [0], [0], [1], [0, 0, 1, 1], [], []>} : vector<8x512xf32>, vector<512x128xf32>, vector<8x128xf32> -> vector<8x128xf32>
    %83 = arith.addf %78, %82 : vector<8x128xf32>
    %84 = vector.extract_strided_slice %47 {offsets = [56, 0], sizes = [8, 512], strides = [1, 1]} : vector<64x512xf32> to vector<8x512xf32>
    %c7 = arith.constant 7 : index
    %c0_63 = arith.constant 0 : index
    %c0_64 = arith.constant 0 : index
    %85 = vector.load %arg6[%c7, %c0_63, %c0_64] : memref<8x512x128xf32, #tpu.memory_space<vmem>>, vector<1x512x128xf32>
    %86 = vector.shape_cast %85 : vector<1x512x128xf32> to vector<512x128xf32>
    %cst_65 = arith.constant dense<0.000000e+00> : vector<8x128xf32>
    %87 = tpu.matmul %84, %86, %cst_65 {dimension_numbers = #tpu.dot_dimension_numbers<[1], [0], [0], [1], [0, 0, 1, 1], [], []>} : vector<8x512xf32>, vector<512x128xf32>, vector<8x128xf32> -> vector<8x128xf32>
    %88 = arith.addf %83, %87 : vector<8x128xf32>
    %c0_66 = arith.constant 0 : index
    %c0_67 = arith.constant 0 : index
    %89 = vector.load %arg7[%c0_66, %c0_67] : memref<1x128xf32, #tpu.memory_space<vmem>>, vector<1x128xf32>
    %90 = vector.broadcast %89 : vector<1x128xf32> to vector<8x128xf32>
    %91 = arith.addf %88, %90 : vector<8x128xf32>
    %cst_68 = arith.constant 0.000000e+00 : f32
    %92 = vector.broadcast %cst_68 : f32 to vector<8x128xf32>
    %93 = arith.maximumf %91, %92 : vector<8x128xf32>
    %c0_69 = arith.constant 0 : index
    %c0_70 = arith.constant 0 : index
    %94 = vector.load %arg8[%c0_69, %c0_70] : memref<128x128xf32, #tpu.memory_space<vmem>>, vector<128x128xf32>
    %cst_71 = arith.constant dense<0.000000e+00> : vector<8x128xf32>
    %95 = tpu.matmul %93, %94, %cst_71 {dimension_numbers = #tpu.dot_dimension_numbers<[1], [0], [0], [1], [0, 0, 1, 1], [], []>} : vector<8x128xf32>, vector<128x128xf32>, vector<8x128xf32> -> vector<8x128xf32>
    %c0_72 = arith.constant 0 : index
    %c0_73 = arith.constant 0 : index
    %96 = vector.load %arg9[%c0_72, %c0_73] : memref<1x128xf32, #tpu.memory_space<vmem>>, vector<1x128xf32>
    %97 = vector.broadcast %96 : vector<1x128xf32> to vector<8x128xf32>
    %98 = arith.addf %95, %97 : vector<8x128xf32>
    %c0_74 = arith.constant 0 : index
    %c0_75 = arith.constant 0 : index
    %99 = vector.load %arg10[%c0_74, %c0_75] : memref<8x128xf32, #tpu.memory_space<vmem>>, vector<8x128xf32>
    tpu.vector_store %arg10[%c0_74, %c0_75], %98 {strides = array<i32>} : memref<8x128xf32, #tpu.memory_space<vmem>>, vector<8x128xf32>,
    return
  }
  func.func @transform_0(%arg0: i32) -> (i32, i32) {
    %c0_i32 = arith.constant 0 : i32
    %c0_i32_0 = arith.constant 0 : i32
    return %arg0, %c0_i32 : i32, i32
  }
  func.func @transform_1(%arg0: i32) -> (i32, i32) {
    %c0_i32 = arith.constant 0 : i32
    %c0_i32_0 = arith.constant 0 : i32
    %c0_i32_1 = arith.constant 0 : i32
    return %c0_i32, %c0_i32_0 : i32, i32
  }
  func.func @transform_2(%arg0: i32) -> (i32, i32) {
    %c0_i32 = arith.constant 0 : i32
    %c0_i32_0 = arith.constant 0 : i32
    %c0_i32_1 = arith.constant 0 : i32
    return %c0_i32, %c0_i32_0 : i32, i32
  }
  func.func @transform_3(%arg0: i32) -> (i32, i32, i32) {
    %c0_i32 = arith.constant 0 : i32
    %c0_i32_0 = arith.constant 0 : i32
    %c0_i32_1 = arith.constant 0 : i32
    %c0_i32_2 = arith.constant 0 : i32
    return %c0_i32, %c0_i32_0, %c0_i32_1 : i32, i32, i32
  }
  func.func @transform_4(%arg0: i32) -> (i32, i32) {
    %c0_i32 = arith.constant 0 : i32
    %c0_i32_0 = arith.constant 0 : i32
    %c0_i32_1 = arith.constant 0 : i32
    return %c0_i32, %c0_i32_0 : i32, i32
  }
  func.func @transform_5(%arg0: i32) -> (i32, i32, i32) {
    %c0_i32 = arith.constant 0 : i32
    %c0_i32_0 = arith.constant 0 : i32
    %c0_i32_1 = arith.constant 0 : i32
    %c0_i32_2 = arith.constant 0 : i32
    return %c0_i32, %c0_i32_0, %c0_i32_1 : i32, i32, i32
  }
  func.func @transform_6(%arg0: i32) -> (i32, i32) {
    %c0_i32 = arith.constant 0 : i32
    %c0_i32_0 = arith.constant 0 : i32
    %c0_i32_1 = arith.constant 0 : i32
    return %c0_i32, %c0_i32_0 : i32, i32
  }
  func.func @transform_7(%arg0: i32) -> (i32, i32) {
    %c0_i32 = arith.constant 0 : i32
    %c0_i32_0 = arith.constant 0 : i32
    %c0_i32_1 = arith.constant 0 : i32
    return %c0_i32, %c0_i32_0 : i32, i32
  }
  func.func @transform_8(%arg0: i32) -> (i32, i32) {
    %c0_i32 = arith.constant 0 : i32
    %c0_i32_0 = arith.constant 0 : i32
    %c0_i32_1 = arith.constant 0 : i32
    return %c0_i32, %c0_i32_0 : i32, i32
  }
  func.func @transform_9(%arg0: i32) -> (i32, i32) {
    %c0_i32 = arith.constant 0 : i32
    %c0_i32_0 = arith.constant 0 : i32
    return %arg0, %c0_i32 : i32, i32
  }
}

</mosaic_0001>

<llo_original>
// kernel: tpu_custom_call.1
$region0: #{tpu_custom_call.1}
  #allocation0 [shape = 'u32[]', space=smem, size = 0x4, offset = 0x4, fixed_abs, tag = 'smem constant byte address 0x4 - core index']
  #allocation1 [shape = 'u32[144,128]{1,0:T(1,128)}', space=vmem, size = 0x12000, scoped, tag = 'internal scratch']
  #allocation2 [shape = 'f32[80,256]{1,0:T(8,128)}', space=vmem, size = 0x14000, scoped, tag = 'scratch operand']
  %s0 = inlined_call_operand.hbm [shape: f32[8,64], index: 0, kind: input, shape index: {}]
  %s1 = inlined_call_operand.hbm [shape: f32[64,2048], index: 1, kind: input, shape index: {}]
  %s2 = inlined_call_operand.hbm [shape: f32[1,2048], index: 2, kind: input, shape index: {}]
  %s3 = inlined_call_operand.hbm [shape: f32[3,256,512], index: 3, kind: input, shape index: {}]
  %s4 = inlined_call_operand.hbm [shape: f32[1,512], index: 4, kind: input, shape index: {}]
  %s5 = inlined_call_operand.hbm [shape: f32[8,512,128], index: 5, kind: input, shape index: {}]
  %s6 = inlined_call_operand.hbm [shape: f32[1,128], index: 6, kind: input, shape index: {}]
  %s7 = inlined_call_operand.hbm [shape: f32[128,128], index: 7, kind: input, shape index: {}]
  %s8 = inlined_call_operand.hbm [shape: f32[1,128], index: 8, kind: input, shape index: {}]
  %s9 = inlined_call_operand.hbm [shape: f32[8,128], index: 9, kind: output, shape index: {}]
  %s10 = sld [smem:[#allocation0]]
  $region82: #{tpu_custom_call.1} parent=0
    _
  %s12 = ssub.s32 1, %s10
  %s13 = scalar_select 0, %s12, %s10
  $region1: #{tpu_custom_call.1} parent=0
    #allocation3 [shape = 'u8[4096]{0}', space=vmem, size = 0x1000, scoped, tag = 'input window, operand 0, single buffered']
    #allocation4 [shape = 's32[1]{0}', space=sflag, size = 0x4, scoped, tag = 'scoped memory for tpu_custom_call.1']
    #allocation5 [shape = 's32[1]{0}', space=sflag, size = 0x4, scoped, tag = 'scoped memory for tpu_custom_call.1']
    #allocation6 [shape = 'u8[524288]{0}', space=vmem, size = 0x80000, scoped, tag = 'input window, operand 1, single buffered']
    #allocation7 [shape = 's32[1]{0}', space=sflag, size = 0x4, scoped, tag = 'scoped memory for tpu_custom_call.1']
    #allocation8 [shape = 'u8[8192]{0}', space=vmem, size = 0x2000, scoped, tag = 'input window, operand 2, single buffered']
    #allocation9 [shape = 'u8[1572864]{0}', space=vmem, size = 0x180000, scoped, tag = 'input window, operand 3, single buffered']
    #allocation10 [shape = 's32[1]{0}', space=sflag, size = 0x4, scoped, tag = 'scoped memory for tpu_custom_call.1']
    #allocation11 [shape = 'u8[2048]{0}', space=vmem, size = 0x800, scoped, tag = 'input window, operand 4, single buffered']
    #allocation12 [shape = 'u8[2097152]{0}', space=vmem, size = 0x200000, scoped, tag = 'input window, operand 5, single buffered']
    #allocation13 [shape = 's32[1]{0}', space=sflag, size = 0x4, scoped, tag = 'scoped memory for tpu_custom_call.1']
    #allocation14 [shape = 'u8[512]{0}', space=vmem, size = 0x400, scoped, tag = 'input window, operand 6, single buffered']
    #allocation15 [shape = 'u8[65536]{0}', space=vmem, size = 0x10000, scoped, tag = 'input window, operand 7, single buffered']
    #allocation16 [shape = 's32[1]{0}', space=sflag, size = 0x4, scoped, tag = 'scoped memory for tpu_custom_call.1']
    #allocation17 [shape = 'u8[512]{0}', space=vmem, size = 0x400, scoped, tag = 'input window, operand 8, single buffered']
    #allocation18 [shape = 'u8[4096]{0}', space=vmem, size = 0x1000, scoped, tag = 'output window, operand 0, single buffered']
    %14 = vsyncpa [#allocation4], 0
    %15 = vsyncpa [#allocation7], 0
    %16 = vsyncpa [#allocation10], 0
    %17 = vsyncpa [#allocation13], 0
    %18 = vsyncpa [#allocation16], 0
    %19 = vsyncpa [#allocation5], 0
    // Predicated region
    $region2: #{tpu_custom_call.1} parent=1 // pred_check
      _
    $region3: #{tpu_custom_call.1} parent=1 // pred_check_branch
      %21 = sbr.rel (0) target = $region5
    $region4: #{tpu_custom_call.1} parent=1 // pred_region
      %s23 = ssub.s32 128, 128
      %24 = vsyncadd [#allocation4], %s23
      %s26 = sshll.u32 [#allocation3], 4
      %s27 = int_to_ptr.vmem [resolvable:$true] %s26
      %29 = dma.hbm_to_vmem [thread:$0]  %s0, 128, %s27, [#allocation4]
    $region5: #{tpu_custom_call.1} parent=1 // pred_fallthru
      _
    // Predicated region
    $region6: #{tpu_custom_call.1} parent=1 // pred_check
      _
    $region7: #{tpu_custom_call.1} parent=1 // pred_check_branch
      %31 = sbr.rel (0) target = $region9
    $region8: #{tpu_custom_call.1} parent=1 // pred_region
      %s33 = ssub.s32 16384, 16384
      %34 = vsyncadd [#allocation7], %s33
      %s35 = sshll.u32 [#allocation6], 4
      %s36 = int_to_ptr.vmem [resolvable:$true] %s35
      %41 = dma.hbm_to_vmem [thread:$0]  %s1, 16384, %s36, [#allocation7], 2048, 2048, 128
    $region9: #{tpu_custom_call.1} parent=1 // pred_fallthru
      _
    // Predicated region
    $region10: #{tpu_custom_call.1} parent=1 // pred_check
      _
    $region11: #{tpu_custom_call.1} parent=1 // pred_check_branch
      %43 = sbr.rel (0) target = $region13
    $region12: #{tpu_custom_call.1} parent=1 // pred_region
      %s45 = ssub.s32 256, 256
      %46 = vsyncadd [#allocation7], %s45
      %s48 = sshll.u32 [#allocation8], 4
      %s49 = int_to_ptr.vmem [resolvable:$true] %s48
      %51 = dma.hbm_to_vmem [thread:$0]  %s2, 256, %s49, [#allocation7]
    $region13: #{tpu_custom_call.1} parent=1 // pred_fallthru
      _
    // Predicated region
    $region14: #{tpu_custom_call.1} parent=1 // pred_check
      _
    $region15: #{tpu_custom_call.1} parent=1 // pred_check_branch
      %53 = sbr.rel (0) target = $region17
    $region16: #{tpu_custom_call.1} parent=1 // pred_region
      %s55 = ssub.s32 49152, 49152
      %56 = vsyncadd [#allocation10], %s55
      %s57 = sshll.u32 [#allocation9], 4
      %s58 = int_to_ptr.vmem [resolvable:$true] %s57
      %63 = dma.hbm_to_vmem [thread:$0]  %s3, 49152, %s58, [#allocation10], 512, 512, 32
    $region17: #{tpu_custom_call.1} parent=1 // pred_fallthru
      _
    // Predicated region
    $region18: #{tpu_custom_call.1} parent=1 // pred_check
      _
    $region19: #{tpu_custom_call.1} parent=1 // pred_check_branch
      %65 = sbr.rel (0) target = $region21
    $region20: #{tpu_custom_call.1} parent=1 // pred_region
      %s67 = ssub.s32 64, 64
      %68 = vsyncadd [#allocation10], %s67
      %s70 = sshll.u32 [#allocation11], 4
      %s71 = int_to_ptr.vmem [resolvable:$true] %s70
      %73 = dma.hbm_to_vmem [thread:$0]  %s4, 64, %s71, [#allocation10]
    $region21: #{tpu_custom_call.1} parent=1 // pred_fallthru
      _
    // Predicated region
    $region22: #{tpu_custom_call.1} parent=1 // pred_check
      _
    $region23: #{tpu_custom_call.1} parent=1 // pred_check_branch
      %75 = sbr.rel (0) target = $region25
    $region24: #{tpu_custom_call.1} parent=1 // pred_region
      %s77 = ssub.s32 65536, 65536
      %78 = vsyncadd [#allocation13], %s77
      %s79 = sshll.u32 [#allocation12], 4
      %s80 = int_to_ptr.vmem [resolvable:$true] %s79
      %85 = dma.hbm_to_vmem [thread:$0]  %s5, 65536, %s80, [#allocation13], 128, 128, 8
    $region25: #{tpu_custom_call.1} parent=1 // pred_fallthru
      _
    // Predicated region
    $region26: #{tpu_custom_call.1} parent=1 // pred_check
      _
    $region27: #{tpu_custom_call.1} parent=1 // pred_check_branch
      %87 = sbr.rel (0) target = $region29
    $region28: #{tpu_custom_call.1} parent=1 // pred_region
      %s89 = ssub.s32 16, 16
      %90 = vsyncadd [#allocation13], %s89
      %s92 = sshll.u32 [#allocation14], 4
      %s93 = int_to_ptr.vmem [resolvable:$true] %s92
      %95 = dma.hbm_to_vmem [thread:$0]  %s6, 16, %s93, [#allocation13]
    $region29: #{tpu_custom_call.1} parent=1 // pred_fallthru
      _
    // Predicated region
    $region30: #{tpu_custom_call.1} parent=1 // pred_check
      _
    $region31: #{tpu_custom_call.1} parent=1 // pred_check_branch
      %97 = sbr.rel (0) target = $region33
    $region32: #{tpu_custom_call.1} parent=1 // pred_region
      %s99 = ssub.s32 2048, 2048
      %100 = vsyncadd [#allocation16], %s99
      %s101 = sshll.u32 [#allocation15], 4
      %s102 = int_to_ptr.vmem [resolvable:$true] %s101
      %107 = dma.hbm_to_vmem [thread:$0]  %s7, 2048, %s102, [#allocation16], 128, 128, 8
    $region33: #{tpu_custom_call.1} parent=1 // pred_fallthru
      _
    // Predicated region
    $region34: #{tpu_custom_call.1} parent=1 // pred_check
      _
    $region35: #{tpu_custom_call.1} parent=1 // pred_check_branch
      %109 = sbr.rel (0) target = $region37
    $region36: #{tpu_custom_call.1} parent=1 // pred_region
      %s111 = ssub.s32 16, 16
      %112 = vsyncadd [#allocation16], %s111
      %s114 = sshll.u32 [#allocation17], 4
      %s115 = int_to_ptr.vmem [resolvable:$true] %s114
      %117 = dma.hbm_to_vmem [thread:$0]  %s8, 16, %s115, [#allocation16]
    $region37: #{tpu_custom_call.1} parent=1 // pred_fallthru
      _
    // Predicated region
    $region38: #{tpu_custom_call.1} parent=1 // pred_check
      _
    $region39: #{tpu_custom_call.1} parent=1 // pred_check_branch
      %119 = sbr.rel (0) target = $region41
    $region40: #{tpu_custom_call.1} parent=1 // pred_region
      %120 = dma.done [#allocation4], 128
    $region41: #{tpu_custom_call.1} parent=1 // pred_fallthru
      _
    // Predicated region
    $region42: #{tpu_custom_call.1} parent=1 // pred_check
      _
    $region43: #{tpu_custom_call.1} parent=1 // pred_check_branch
      %122 = sbr.rel (0) target = $region45
    $region44: #{tpu_custom_call.1} parent=1 // pred_region
      %123 = dma.done [#allocation7], 16384
    $region45: #{tpu_custom_call.1} parent=1 // pred_fallthru
      _
    // Predicated region
    $region46: #{tpu_custom_call.1} parent=1 // pred_check
      _
    $region47: #{tpu_custom_call.1} parent=1 // pred_check_branch
      %125 = sbr.rel (0) target = $region49
    $region48: #{tpu_custom_call.1} parent=1 // pred_region
      %126 = dma.done [#allocation7], 256
    $region49: #{tpu_custom_call.1} parent=1 // pred_fallthru
      _
    // Predicated region
    $region50: #{tpu_custom_call.1} parent=1 // pred_check
      _
    $region51: #{tpu_custom_call.1} parent=1 // pred_check_branch
      %128 = sbr.rel (0) target = $region53
    $region52: #{tpu_custom_call.1} parent=1 // pred_region
      %129 = dma.done [#allocation10], 49152
    $region53: #{tpu_custom_call.1} parent=1 // pred_fallthru
      _
    // Predicated region
    $region54: #{tpu_custom_call.1} parent=1 // pred_check
      _
    $region55: #{tpu_custom_call.1} parent=1 // pred_check_branch
      %131 = sbr.rel (0) target = $region57
    $region56: #{tpu_custom_call.1} parent=1 // pred_region
      %132 = dma.done [#allocation10], 64
    $region57: #{tpu_custom_call.1} parent=1 // pred_fallthru
      _
    // Predicated region
    $region58: #{tpu_custom_call.1} parent=1 // pred_check
      _
    $region59: #{tpu_custom_call.1} parent=1 // pred_check_branch
      %134 = sbr.rel (0) target = $region61
    $region60: #{tpu_custom_call.1} parent=1 // pred_region
      %135 = dma.done [#allocation13], 65536
    $region61: #{tpu_custom_call.1} parent=1 // pred_fallthru
      _
    // Predicated region
    $region62: #{tpu_custom_call.1} parent=1 // pred_check
      _
    $region63: #{tpu_custom_call.1} parent=1 // pred_check_branch
      %137 = sbr.rel (0) target = $region65
    $region64: #{tpu_custom_call.1} parent=1 // pred_region
      %138 = dma.done [#allocation13], 16
    $region65: #{tpu_custom_call.1} parent=1 // pred_fallthru
      _
    // Predicated region
    $region66: #{tpu_custom_call.1} parent=1 // pred_check
      _
    $region67: #{tpu_custom_call.1} parent=1 // pred_check_branch
      %140 = sbr.rel (0) target = $region69
    $region68: #{tpu_custom_call.1} parent=1 // pred_region
      %141 = dma.done [#allocation16], 2048
    $region69: #{tpu_custom_call.1} parent=1 // pred_fallthru
      _
    // Predicated region
    $region70: #{tpu_custom_call.1} parent=1 // pred_check
      _
    $region71: #{tpu_custom_call.1} parent=1 // pred_check_branch
      %143 = sbr.rel (0) target = $region73
    $region72: #{tpu_custom_call.1} parent=1 // pred_region
      %144 = dma.done [#allocation16], 16
    $region73: #{tpu_custom_call.1} parent=1 // pred_fallthru
      _
    %145 = vst [vmem:[#allocation2] sm:$0xff] 0.0
    %146 = vst [vmem:[#allocation2 + $0x8] sm:$0xff] 0.0
    %147 = vst [vmem:[#allocation2 + $0x90] sm:$0xff] 0.0
    %148 = vst [vmem:[#allocation2 + $0x98] sm:$0xff] 0.0
    %v149 = vld [vmem:[#allocation3] sm:$0xff]
    %v150 = vld [vmem:[#allocation6] sm:$0xff]
    %v151 = vld [vmem:[#allocation6 + $0x8] sm:$0xff]
    %v152 = vld [vmem:[#allocation6 + $0x10] sm:$0xff]
    %v153 = vld [vmem:[#allocation6 + $0x18] sm:$0xff]
    %v154 = vld [vmem:[#allocation6 + $0x20] sm:$0xff]
    %v155 = vld [vmem:[#allocation6 + $0x28] sm:$0xff]
    %v156 = vld [vmem:[#allocation6 + $0x30] sm:$0xff]
    %v157 = vld [vmem:[#allocation6 + $0x38] sm:$0xff]
    %v158 = vld [vmem:[#allocation6 + $0x40] sm:$0xff]
    %v159 = vld [vmem:[#allocation6 + $0x48] sm:$0xff]
    %v160 = vld [vmem:[#allocation6 + $0x50] sm:$0xff]
    %v161 = vld [vmem:[#allocation6 + $0x58] sm:$0xff]
    %v162 = vld [vmem:[#allocation6 + $0x60] sm:$0xff]
    %v163 = vld [vmem:[#allocation6 + $0x68] sm:$0xff]
    %v164 = vld [vmem:[#allocation6 + $0x70] sm:$0xff]
    %v165 = vld [vmem:[#allocation6 + $0x78] sm:$0xff]
    %v166 = vld [vmem:[#allocation6 + $0x80] sm:$0xff]
    %v167 = vld [vmem:[#allocation6 + $0x88] sm:$0xff]
    %v168 = vld [vmem:[#allocation6 + $0x90] sm:$0xff]
    %v169 = vld [vmem:[#allocation6 + $0x98] sm:$0xff]
    %v170 = vld [vmem:[#allocation6 + $0xa0] sm:$0xff]
    %v171 = vld [vmem:[#allocation6 + $0xa8] sm:$0xff]
    %v172 = vld [vmem:[#allocation6 + $0xb0] sm:$0xff]
    %v173 = vld [vmem:[#allocation6 + $0xb8] sm:$0xff]
    %v174 = vld [vmem:[#allocation6 + $0xc0] sm:$0xff]
    %v175 = vld [vmem:[#allocation6 + $0xc8] sm:$0xff]
    %v176 = vld [vmem:[#allocation6 + $0xd0] sm:$0xff]
    %v177 = vld [vmem:[#allocation6 + $0xd8] sm:$0xff]
    %v178 = vld [vmem:[#allocation6 + $0xe0] sm:$0xff]
    %v179 = vld [vmem:[#allocation6 + $0xe8] sm:$0xff]
    %v180 = vld [vmem:[#allocation6 + $0xf0] sm:$0xff]
    %v181 = vld [vmem:[#allocation6 + $0xf8] sm:$0xff]
    %v182 = vld [vmem:[#allocation6 + $0x100] sm:$0xff]
    %v183 = vld [vmem:[#allocation6 + $0x108] sm:$0xff]
    %v184 = vld [vmem:[#allocation6 + $0x110] sm:$0xff]
    %v185 = vld [vmem:[#allocation6 + $0x118] sm:$0xff]
    %v186 = vld [vmem:[#allocation6 + $0x120] sm:$0xff]
    %v187 = vld [vmem:[#allocation6 + $0x128] sm:$0xff]
    %v188 = vld [vmem:[#allocation6 + $0x130] sm:$0xff]
    %v189 = vld [vmem:[#allocation6 + $0x138] sm:$0xff]
    %v190 = vld [vmem:[#allocation6 + $0x140] sm:$0xff]
    %v191 = vld [vmem:[#allocation6 + $0x148] sm:$0xff]
    %v192 = vld [vmem:[#allocation6 + $0x150] sm:$0xff]
    %v193 = vld [vmem:[#allocation6 + $0x158] sm:$0xff]
    %v194 = vld [vmem:[#allocation6 + $0x160] sm:$0xff]
    %v195 = vld [vmem:[#allocation6 + $0x168] sm:$0xff]
    %v196 = vld [vmem:[#allocation6 + $0x170] sm:$0xff]
    %v197 = vld [vmem:[#allocation6 + $0x178] sm:$0xff]
    %v198 = vld [vmem:[#allocation6 + $0x180] sm:$0xff]
    %v199 = vld [vmem:[#allocation6 + $0x188] sm:$0xff]
    %v200 = vld [vmem:[#allocation6 + $0x190] sm:$0xff]
    %v201 = vld [vmem:[#allocation6 + $0x198] sm:$0xff]
    %v202 = vld [vmem:[#allocation6 + $0x1a0] sm:$0xff]
    %v203 = vld [vmem:[#allocation6 + $0x1a8] sm:$0xff]
    %v204 = vld [vmem:[#allocation6 + $0x1b0] sm:$0xff]
    %v205 = vld [vmem:[#allocation6 + $0x1b8] sm:$0xff]
    %v206 = vld [vmem:[#allocation6 + $0x1c0] sm:$0xff]
    %v207 = vld [vmem:[#allocation6 + $0x1c8] sm:$0xff]
    %v208 = vld [vmem:[#allocation6 + $0x1d0] sm:$0xff]
    %v209 = vld [vmem:[#allocation6 + $0x1d8] sm:$0xff]
    %v210 = vld [vmem:[#allocation6 + $0x1e0] sm:$0xff]
    %v211 = vld [vmem:[#allocation6 + $0x1e8] sm:$0xff]
    %v212 = vld [vmem:[#allocation6 + $0x1f0] sm:$0xff]
    %v213 = vld [vmem:[#allocation6 + $0x1f8] sm:$0xff]
    %v214 = vld [vmem:[#allocation6 + $0x200] sm:$0xff]
    %v215 = vld [vmem:[#allocation6 + $0x208] sm:$0xff]
    %v216 = vld [vmem:[#allocation6 + $0x210] sm:$0xff]
    %v217 = vld [vmem:[#allocation6 + $0x218] sm:$0xff]
    %v218 = vld [vmem:[#allocation6 + $0x220] sm:$0xff]
    %v219 = vld [vmem:[#allocation6 + $0x228] sm:$0xff]
    %v220 = vld [vmem:[#allocation6 + $0x230] sm:$0xff]
    %v221 = vld [vmem:[#allocation6 + $0x238] sm:$0xff]
    %v222 = vld [vmem:[#allocation6 + $0x240] sm:$0xff]
    %v223 = vld [vmem:[#allocation6 + $0x248] sm:$0xff]
    %v224 = vld [vmem:[#allocation6 + $0x250] sm:$0xff]
    %v225 = vld [vmem:[#allocation6 + $0x258] sm:$0xff]
    %v226 = vld [vmem:[#allocation6 + $0x260] sm:$0xff]
    %v227 = vld [vmem:[#allocation6 + $0x268] sm:$0xff]
    %v228 = vld [vmem:[#allocation6 + $0x270] sm:$0xff]
    %v229 = vld [vmem:[#allocation6 + $0x278] sm:$0xff]
    %v230 = vld [vmem:[#allocation6 + $0x280] sm:$0xff]
    %v231 = vld [vmem:[#allocation6 + $0x288] sm:$0xff]
    %v232 = vld [vmem:[#allocation6 + $0x290] sm:$0xff]
    %v233 = vld [vmem:[#allocation6 + $0x298] sm:$0xff]
    %v234 = vld [vmem:[#allocation6 + $0x2a0] sm:$0xff]
    %v235 = vld [vmem:[#allocation6 + $0x2a8] sm:$0xff]
    %v236 = vld [vmem:[#allocation6 + $0x2b0] sm:$0xff]
    %v237 = vld [vmem:[#allocation6 + $0x2b8] sm:$0xff]
    %v238 = vld [vmem:[#allocation6 + $0x2c0] sm:$0xff]
    %v239 = vld [vmem:[#allocation6 + $0x2c8] sm:$0xff]
    %v240 = vld [vmem:[#allocation6 + $0x2d0] sm:$0xff]
    %v241 = vld [vmem:[#allocation6 + $0x2d8] sm:$0xff]
    %v242 = vld [vmem:[#allocation6 + $0x2e0] sm:$0xff]
    %v243 = vld [vmem:[#allocation6 + $0x2e8] sm:$0xff]
    %v244 = vld [vmem:[#allocation6 + $0x2f0] sm:$0xff]
    %v245 = vld [vmem:[#allocation6 + $0x2f8] sm:$0xff]
    %v246 = vld [vmem:[#allocation6 + $0x300] sm:$0xff]
    %v247 = vld [vmem:[#allocation6 + $0x308] sm:$0xff]
    %v248 = vld [vmem:[#allocation6 + $0x310] sm:$0xff]
    %v249 = vld [vmem:[#allocation6 + $0x318] sm:$0xff]
    %v250 = vld [vmem:[#allocation6 + $0x320] sm:$0xff]
    %v251 = vld [vmem:[#allocation6 + $0x328] sm:$0xff]
    %v252 = vld [vmem:[#allocation6 + $0x330] sm:$0xff]
    %v253 = vld [vmem:[#allocation6 + $0x338] sm:$0xff]
    %v254 = vld [vmem:[#allocation6 + $0x340] sm:$0xff]
    %v255 = vld [vmem:[#allocation6 + $0x348] sm:$0xff]
    %v256 = vld [vmem:[#allocation6 + $0x350] sm:$0xff]
    %v257 = vld [vmem:[#allocation6 + $0x358] sm:$0xff]
    %v258 = vld [vmem:[#allocation6 + $0x360] sm:$0xff]
    %v259 = vld [vmem:[#allocation6 + $0x368] sm:$0xff]
    %v260 = vld [vmem:[#allocation6 + $0x370] sm:$0xff]
    %v261 = vld [vmem:[#allocation6 + $0x378] sm:$0xff]
    %v262 = vld [vmem:[#allocation6 + $0x380] sm:$0xff]
    %v263 = vld [vmem:[#allocation6 + $0x388] sm:$0xff]
    %v264 = vld [vmem:[#allocation6 + $0x390] sm:$0xff]
    %v265 = vld [vmem:[#allocation6 + $0x398] sm:$0xff]
    %v266 = vld [vmem:[#allocation6 + $0x3a0] sm:$0xff]
    %v267 = vld [vmem:[#allocation6 + $0x3a8] sm:$0xff]
    %v268 = vld [vmem:[#allocation6 + $0x3b0] sm:$0xff]
    %v269 = vld [vmem:[#allocation6 + $0x3b8] sm:$0xff]
    %v270 = vld [vmem:[#allocation6 + $0x3c0] sm:$0xff]
    %v271 = vld [vmem:[#allocation6 + $0x3c8] sm:$0xff]
    %v272 = vld [vmem:[#allocation6 + $0x3d0] sm:$0xff]
    %v273 = vld [vmem:[#allocation6 + $0x3d8] sm:$0xff]
    %v274 = vld [vmem:[#allocation6 + $0x3e0] sm:$0xff]
    %v275 = vld [vmem:[#allocation6 + $0x3e8] sm:$0xff]
    %v276 = vld [vmem:[#allocation6 + $0x3f0] sm:$0xff]
    %v277 = vld [vmem:[#allocation6 + $0x3f8] sm:$0xff]
    %v278 = vld [vmem:[#allocation8] sm:$0xff]
    %v279 = vld [vmem:[#allocation8 + $0x8] sm:$0xff]
    %v282 = vlaneseq
    %v283 = vshrl.u32 %v282, 7
    %v284 = vsub.s32 0, %v283
    %v285 = vrot.slane %v278, %v284
    %v286 = vlaneseq
    %v287 = vshrl.u32 %v286, 7
    %v288 = vsub.s32 1, %v287
    %v289 = vrot.slane %v278, %v288
    %v290 = vlaneseq
    %v291 = vshrl.u32 %v290, 7
    %v292 = vsub.s32 2, %v291
    %v293 = vrot.slane %v278, %v292
    %v294 = vlaneseq
    %v295 = vshrl.u32 %v294, 7
    %v296 = vsub.s32 3, %v295
    %v297 = vrot.slane %v278, %v296
    %v298 = vlaneseq
    %v299 = vshrl.u32 %v298, 7
    %v300 = vsub.s32 4, %v299
    %v301 = vrot.slane %v278, %v300
    %v302 = vlaneseq
    %v303 = vshrl.u32 %v302, 7
    %v304 = vsub.s32 5, %v303
    %v305 = vrot.slane %v278, %v304
    %v306 = vlaneseq
    %v307 = vshrl.u32 %v306, 7
    %v308 = vsub.s32 6, %v307
    %v309 = vrot.slane %v278, %v308
    %v310 = vlaneseq
    %v311 = vshrl.u32 %v310, 7
    %v312 = vsub.s32 7, %v311
    %v313 = vrot.slane %v278, %v312
    %v314 = vlaneseq
    %v315 = vshrl.u32 %v314, 7
    %v316 = vsub.s32 0, %v315
    %v317 = vrot.slane %v279, %v316
    %v318 = vlaneseq
    %v319 = vshrl.u32 %v318, 7
    %v320 = vsub.s32 1, %v319
    %v321 = vrot.slane %v279, %v320
    %v322 = vlaneseq
    %v323 = vshrl.u32 %v322, 7
    %v324 = vsub.s32 2, %v323
    %v325 = vrot.slane %v279, %v324
    %v326 = vlaneseq
    %v327 = vshrl.u32 %v326, 7
    %v328 = vsub.s32 3, %v327
    %v329 = vrot.slane %v279, %v328
    %v330 = vlaneseq
    %v331 = vshrl.u32 %v330, 7
    %v332 = vsub.s32 4, %v331
    %v333 = vrot.slane %v279, %v332
    %v334 = vlaneseq
    %v335 = vshrl.u32 %v334, 7
    %v336 = vsub.s32 5, %v335
    %v337 = vrot.slane %v279, %v336
    %v338 = vlaneseq
    %v339 = vshrl.u32 %v338, 7
    %v340 = vsub.s32 6, %v339
    %v341 = vrot.slane %v279, %v340
    %v342 = vlaneseq
    %v343 = vshrl.u32 %v342, 7
    %v344 = vsub.s32 7, %v343
    %v345 = vrot.slane %v279, %v344
    %vm362 = vcmask 523264
    %v364 = vsel %vm362, %v149, 0
    %366 = vmatprep.subr.mxu0 %v151
    %367 = vmatpush1.msra.mxu0 %v150
    %368 = vmatprep.subr.mxu0 %v167
    %369 = vmatpush1.msra.mxu0 %v166
    %370 = vmatprep.subr.mxu0 %v183
    %371 = vmatpush1.msra.mxu0 %v182
    %372 = vmatprep.subr.mxu0 %v199
    %373 = vmatpush1.msra.mxu0 %v198
    %374 = vmatprep.subr.mxu0 %v215
    %375 = vmatpush1.msra.mxu0 %v214
    %376 = vmatprep.subr.mxu0 %v231
    %377 = vmatpush1.msra.mxu0 %v230
    %378 = vmatprep.subr.mxu0 %v247
    %379 = vmatpush1.msra.mxu0 %v246
    %380 = vmatprep.subr.mxu0 %v263
    %381 = vmatpush1.msra.mxu0 %v262
    %382 = vmatprep.subr.mxu0 0.0
    %383 = vmatpush1.msra.mxu0 0.0
    %384 = vmatprep.subr.mxu0 0.0
    %385 = vmatpush1.msra.mxu0 0.0
    %386 = vmatprep.subr.mxu0 0.0
    %387 = vmatpush1.msra.mxu0 0.0
    %388 = vmatprep.subr.mxu0 0.0
    %389 = vmatpush1.msra.mxu0 0.0
    %390 = vmatprep.subr.mxu0 0.0
    %391 = vmatpush1.msra.mxu0 0.0
    %392 = vmatprep.subr.mxu0 0.0
    %393 = vmatpush1.msra.mxu0 0.0
    %394 = vmatprep.subr.mxu0 0.0
    %395 = vmatpush1.msra.mxu0 0.0
    %396 = vmatprep.subr.mxu0 0.0
    %397 = vmatpush1.msra.mxu0 0.0
    %398 = vmatprep.subr.mxu0 0.0
    %399 = vmatpush1.msra.mxu0 0.0
    %400 = vmatprep.subr.mxu0 0.0
    %401 = vmatpush1.msra.mxu0 0.0
    %402 = vmatprep.subr.mxu0 0.0
    %403 = vmatpush1.msra.mxu0 0.0
    %404 = vmatprep.subr.mxu0 0.0
    %405 = vmatpush1.msra.mxu0 0.0
    %406 = vmatprep.subr.mxu0 0.0
    %407 = vmatpush1.msra.mxu0 0.0
    %408 = vmatprep.subr.mxu0 0.0
    %409 = vmatpush1.msra.mxu0 0.0
    %410 = vmatprep.subr.mxu0 0.0
    %411 = vmatpush1.msra.mxu0 0.0
    %412 = vmatprep.subr.mxu0 0.0
    %413 = vmatpush1.msra.mxu0 0.0
    %414 = vmatprep.subr.mxu0 0.0
    %415 = vmatpush1.msra.mxu0 0.0
    %416 = vmatprep.subr.mxu0 0.0
    %417 = vmatpush1.msra.mxu0 0.0
    %418 = vmatprep.subr.mxu0 0.0
    %419 = vmatpush1.msra.mxu0 0.0
    %420 = vmatprep.subr.mxu0 0.0
    %421 = vmatpush1.msra.mxu0 0.0
    %422 = vmatprep.subr.mxu0 0.0
    %423 = vmatpush1.msra.mxu0 0.0
    %424 = vmatprep.subr.mxu0 0.0
    %425 = vmatpush1.msra.mxu0 0.0
    %426 = vmatprep.subr.mxu0 0.0
    %427 = vmatpush1.msra.mxu0 0.0
    %428 = vmatprep.subr.mxu0 0.0
    %429 = vmatpush1.msra.mxu0 0.0
    %430 = vmatprep.mubr.f32.mxu0 0.0
    %431 = vmatmul.mubr.f32.gmra.mrb[0].mxu0 %v364
    %v432 = vpop.f32.mrb[0].mxu0
    %v433 = vadd.f32 %v285, %v432
    %v434 = vpop.f32.mrb[0].mxu0
    %v435 = vadd.f32 %v289, %v434
    %436 = vdwg.mxu0
    %437 = vmatprep.subr.mxu0 %v153
    %438 = vmatpush1.msra.mxu0 %v152
    %439 = vmatprep.subr.mxu0 %v169
    %440 = vmatpush1.msra.mxu0 %v168
    %441 = vmatprep.subr.mxu0 %v185
    %442 = vmatpush1.msra.mxu0 %v184
    %443 = vmatprep.subr.mxu0 %v201
    %444 = vmatpush1.msra.mxu0 %v200
    %445 = vmatprep.subr.mxu0 %v217
    %446 = vmatpush1.msra.mxu0 %v216
    %447 = vmatprep.subr.mxu0 %v233
    %448 = vmatpush1.msra.mxu0 %v232
    %449 = vmatprep.subr.mxu0 %v249
    %450 = vmatpush1.msra.mxu0 %v248
    %451 = vmatprep.subr.mxu0 %v265
    %452 = vmatpush1.msra.mxu0 %v264
    %453 = vmatprep.subr.mxu0 0.0
    %454 = vmatpush1.msra.mxu0 0.0
    %455 = vmatprep.subr.mxu0 0.0
    %456 = vmatpush1.msra.mxu0 0.0
    %457 = vmatprep.subr.mxu0 0.0
    %458 = vmatpush1.msra.mxu0 0.0
    %459 = vmatprep.subr.mxu0 0.0
    %460 = vmatpush1.msra.mxu0 0.0
    %461 = vmatprep.subr.mxu0 0.0
    %462 = vmatpush1.msra.mxu0 0.0
    %463 = vmatprep.subr.mxu0 0.0
    %464 = vmatpush1.msra.mxu0 0.0
    %465 = vmatprep.subr.mxu0 0.0
    %466 = vmatpush1.msra.mxu0 0.0
    %467 = vmatprep.subr.mxu0 0.0
    %468 = vmatpush1.msra.mxu0 0.0
    %469 = vmatprep.subr.mxu0 0.0
    %470 = vmatpush1.msra.mxu0 0.0
    %471 = vmatprep.subr.mxu0 0.0
    %472 = vmatpush1.msra.mxu0 0.0
    %473 = vmatprep.subr.mxu0 0.0
    %474 = vmatpush1.msra.mxu0 0.0
    %475 = vmatprep.subr.mxu0 0.0
    %476 = vmatpush1.msra.mxu0 0.0
    %477 = vmatprep.subr.mxu0 0.0
    %478 = vmatpush1.msra.mxu0 0.0
    %479 = vmatprep.subr.mxu0 0.0
    %480 = vmatpush1.msra.mxu0 0.0
    %481 = vmatprep.subr.mxu0 0.0
    %482 = vmatpush1.msra.mxu0 0.0
    %483 = vmatprep.subr.mxu0 0.0
    %484 = vmatpush1.msra.mxu0 0.0
    %485 = vmatprep.subr.mxu0 0.0
    %486 = vmatpush1.msra.mxu0 0.0
    %487 = vmatprep.subr.mxu0 0.0
    %488 = vmatpush1.msra.mxu0 0.0
    %489 = vmatprep.subr.mxu0 0.0
    %490 = vmatpush1.msra.mxu0 0.0
    %491 = vmatprep.subr.mxu0 0.0
    %492 = vmatpush1.msra.mxu0 0.0
    %493 = vmatprep.subr.mxu0 0.0
    %494 = vmatpush1.msra.mxu0 0.0
    %495 = vmatprep.subr.mxu0 0.0
    %496 = vmatpush1.msra.mxu0 0.0
    %497 = vmatprep.subr.mxu0 0.0
    %498 = vmatpush1.msra.mxu0 0.0
    %499 = vmatprep.subr.mxu0 0.0
    %500 = vmatpush1.msra.mxu0 0.0
    %501 = vmatprep.mubr.f32.mxu0 0.0
    %502 = vmatmul.mubr.f32.gmra.mrb[0].mxu0 %v364
    %v503 = vpop.f32.mrb[0].mxu0
    %v504 = vadd.f32 %v293, %v503
    %v505 = vpop.f32.mrb[0].mxu0
    %v506 = vadd.f32 %v297, %v505
    %507 = vdwg.mxu0
    %508 = vmatprep.subr.mxu0 %v155
    %509 = vmatpush1.msra.mxu0 %v154
    %510 = vmatprep.subr.mxu0 %v171
    %511 = vmatpush1.msra.mxu0 %v170
    %512 = vmatprep.subr.mxu0 %v187
    %513 = vmatpush1.msra.mxu0 %v186
    %514 = vmatprep.subr.mxu0 %v203
    %515 = vmatpush1.msra.mxu0 %v202
    %516 = vmatprep.subr.mxu0 %v219
    %517 = vmatpush1.msra.mxu0 %v218
    %518 = vmatprep.subr.mxu0 %v235
    %519 = vmatpush1.msra.mxu0 %v234
    %520 = vmatprep.subr.mxu0 %v251
    %521 = vmatpush1.msra.mxu0 %v250
    %522 = vmatprep.subr.mxu0 %v267
    %523 = vmatpush1.msra.mxu0 %v266
    %524 = vmatprep.subr.mxu0 0.0
    %525 = vmatpush1.msra.mxu0 0.0
    %526 = vmatprep.subr.mxu0 0.0
    %527 = vmatpush1.msra.mxu0 0.0
    %528 = vmatprep.subr.mxu0 0.0
    %529 = vmatpush1.msra.mxu0 0.0
    %530 = vmatprep.subr.mxu0 0.0
    %531 = vmatpush1.msra.mxu0 0.0
    %532 = vmatprep.subr.mxu0 0.0
    %533 = vmatpush1.msra.mxu0 0.0
    %534 = vmatprep.subr.mxu0 0.0
    %535 = vmatpush1.msra.mxu0 0.0
    %536 = vmatprep.subr.mxu0 0.0
    %537 = vmatpush1.msra.mxu0 0.0
    %538 = vmatprep.subr.mxu0 0.0
    %539 = vmatpush1.msra.mxu0 0.0
    %540 = vmatprep.subr.mxu0 0.0
    %541 = vmatpush1.msra.mxu0 0.0
    %542 = vmatprep.subr.mxu0 0.0
    %543 = vmatpush1.msra.mxu0 0.0
    %544 = vmatprep.subr.mxu0 0.0
    %545 = vmatpush1.msra.mxu0 0.0
    %546 = vmatprep.subr.mxu0 0.0
    %547 = vmatpush1.msra.mxu0 0.0
    %548 = vmatprep.subr.mxu0 0.0
    %549 = vmatpush1.msra.mxu0 0.0
    %550 = vmatprep.subr.mxu0 0.0
    %551 = vmatpush1.msra.mxu0 0.0
    %552 = vmatprep.subr.mxu0 0.0
    %553 = vmatpush1.msra.mxu0 0.0
    %554 = vmatprep.subr.mxu0 0.0
    %555 = vmatpush1.msra.mxu0 0.0
    %556 = vmatprep.subr.mxu0 0.0
    %557 = vmatpush1.msra.mxu0 0.0
    %558 = vmatprep.subr.mxu0 0.0
    %559 = vmatpush1.msra.mxu0 0.0
    %560 = vmatprep.subr.mxu0 0.0
    %561 = vmatpush1.msra.mxu0 0.0
    %562 = vmatprep.subr.mxu0 0.0
    %563 = vmatpush1.msra.mxu0 0.0
    %564 = vmatprep.subr.mxu0 0.0
    %565 = vmatpush1.msra.mxu0 0.0
    %566 = vmatprep.subr.mxu0 0.0
    %567 = vmatpush1.msra.mxu0 0.0
    %568 = vmatprep.subr.mxu0 0.0
    %569 = vmatpush1.msra.mxu0 0.0
    %570 = vmatprep.subr.mxu0 0.0
    %571 = vmatpush1.msra.mxu0 0.0
    %572 = vmatprep.mubr.f32.mxu0 0.0
    %573 = vmatmul.mubr.f32.gmra.mrb[0].mxu0 %v364
    %v574 = vpop.f32.mrb[0].mxu0
    %v575 = vadd.f32 %v301, %v574
    %v576 = vpop.f32.mrb[0].mxu0
    %v577 = vadd.f32 %v305, %v576
    %578 = vdwg.mxu0
    %579 = vmatprep.subr.mxu0 %v157
    %580 = vmatpush1.msra.mxu0 %v156
    %581 = vmatprep.subr.mxu0 %v173
    %582 = vmatpush1.msra.mxu0 %v172
    %583 = vmatprep.subr.mxu0 %v189
    %584 = vmatpush1.msra.mxu0 %v188
    %585 = vmatprep.subr.mxu0 %v205
    %586 = vmatpush1.msra.mxu0 %v204
    %587 = vmatprep.subr.mxu0 %v221
    %588 = vmatpush1.msra.mxu0 %v220
    %589 = vmatprep.subr.mxu0 %v237
    %590 = vmatpush1.msra.mxu0 %v236
    %591 = vmatprep.subr.mxu0 %v253
    %592 = vmatpush1.msra.mxu0 %v252
    %593 = vmatprep.subr.mxu0 %v269
    %594 = vmatpush1.msra.mxu0 %v268
    %595 = vmatprep.subr.mxu0 0.0
    %596 = vmatpush1.msra.mxu0 0.0
    %597 = vmatprep.subr.mxu0 0.0
    %598 = vmatpush1.msra.mxu0 0.0
    %599 = vmatprep.subr.mxu0 0.0
    %600 = vmatpush1.msra.mxu0 0.0
    %601 = vmatprep.subr.mxu0 0.0
    %602 = vmatpush1.msra.mxu0 0.0
    %603 = vmatprep.subr.mxu0 0.0
    %604 = vmatpush1.msra.mxu0 0.0
    %605 = vmatprep.subr.mxu0 0.0
    %606 = vmatpush1.msra.mxu0 0.0
    %607 = vmatprep.subr.mxu0 0.0
    %608 = vmatpush1.msra.mxu0 0.0
    %609 = vmatprep.subr.mxu0 0.0
    %610 = vmatpush1.msra.mxu0 0.0
    %611 = vmatprep.subr.mxu0 0.0
    %612 = vmatpush1.msra.mxu0 0.0
    %613 = vmatprep.subr.mxu0 0.0
    %614 = vmatpush1.msra.mxu0 0.0
    %615 = vmatprep.subr.mxu0 0.0
    %616 = vmatpush1.msra.mxu0 0.0
    %617 = vmatprep.subr.mxu0 0.0
    %618 = vmatpush1.msra.mxu0 0.0
    %619 = vmatprep.subr.mxu0 0.0
    %620 = vmatpush1.msra.mxu0 0.0
    %621 = vmatprep.subr.mxu0 0.0
    %622 = vmatpush1.msra.mxu0 0.0
    %623 = vmatprep.subr.mxu0 0.0
    %624 = vmatpush1.msra.mxu0 0.0
    %625 = vmatprep.subr.mxu0 0.0
    %626 = vmatpush1.msra.mxu0 0.0
    %627 = vmatprep.subr.mxu0 0.0
    %628 = vmatpush1.msra.mxu0 0.0
    %629 = vmatprep.subr.mxu0 0.0
    %630 = vmatpush1.msra.mxu0 0.0
    %631 = vmatprep.subr.mxu0 0.0
    %632 = vmatpush1.msra.mxu0 0.0
    %633 = vmatprep.subr.mxu0 0.0
    %634 = vmatpush1.msra.mxu0 0.0
    %635 = vmatprep.subr.mxu0 0.0
    %636 = vmatpush1.msra.mxu0 0.0
    %637 = vmatprep.subr.mxu0 0.0
    %638 = vmatpush1.msra.mxu0 0.0
    %639 = vmatprep.subr.mxu0 0.0
    %640 = vmatpush1.msra.mxu0 0.0
    %641 = vmatprep.subr.mxu0 0.0
    %642 = vmatpush1.msra.mxu0 0.0
    %643 = vmatprep.mubr.f32.mxu0 0.0
    %644 = vmatmul.mubr.f32.gmra.mrb[0].mxu0 %v364
    %v645 = vpop.f32.mrb[0].mxu0
    %v646 = vadd.f32 %v309, %v645
    %v647 = vpop.f32.mrb[0].mxu0
    %v648 = vadd.f32 %v313, %v647
    %649 = vdwg.mxu0
    %650 = vmatprep.subr.mxu0 %v159
    %651 = vmatpush1.msra.mxu0 %v158
    %652 = vmatprep.subr.mxu0 %v175
    %653 = vmatpush1.msra.mxu0 %v174
    %654 = vmatprep.subr.mxu0 %v191
    %655 = vmatpush1.msra.mxu0 %v190
    %656 = vmatprep.subr.mxu0 %v207
    %657 = vmatpush1.msra.mxu0 %v206
    %658 = vmatprep.subr.mxu0 %v223
    %659 = vmatpush1.msra.mxu0 %v222
    %660 = vmatprep.subr.mxu0 %v239
    %661 = vmatpush1.msra.mxu0 %v238
    %662 = vmatprep.subr.mxu0 %v255
    %663 = vmatpush1.msra.mxu0 %v254
    %664 = vmatprep.subr.mxu0 %v271
    %665 = vmatpush1.msra.mxu0 %v270
    %666 = vmatprep.subr.mxu0 0.0
    %667 = vmatpush1.msra.mxu0 0.0
    %668 = vmatprep.subr.mxu0 0.0
    %669 = vmatpush1.msra.mxu0 0.0
    %670 = vmatprep.subr.mxu0 0.0
    %671 = vmatpush1.msra.mxu0 0.0
    %672 = vmatprep.subr.mxu0 0.0
    %673 = vmatpush1.msra.mxu0 0.0
    %674 = vmatprep.subr.mxu0 0.0
    %675 = vmatpush1.msra.mxu0 0.0
    %676 = vmatprep.subr.mxu0 0.0
    %677 = vmatpush1.msra.mxu0 0.0
    %678 = vmatprep.subr.mxu0 0.0
    %679 = vmatpush1.msra.mxu0 0.0
    %680 = vmatprep.subr.mxu0 0.0
    %681 = vmatpush1.msra.mxu0 0.0
    %682 = vmatprep.subr.mxu0 0.0
    %683 = vmatpush1.msra.mxu0 0.0
    %684 = vmatprep.subr.mxu0 0.0
    %685 = vmatpush1.msra.mxu0 0.0
    %686 = vmatprep.subr.mxu0 0.0
    %687 = vmatpush1.msra.mxu0 0.0
    %688 = vmatprep.subr.mxu0 0.0
    %689 = vmatpush1.msra.mxu0 0.0
    %690 = vmatprep.subr.mxu0 0.0
    %691 = vmatpush1.msra.mxu0 0.0
    %692 = vmatprep.subr.mxu0 0.0
    %693 = vmatpush1.msra.mxu0 0.0
    %694 = vmatprep.subr.mxu0 0.0
    %695 = vmatpush1.msra.mxu0 0.0
    %696 = vmatprep.subr.mxu0 0.0
    %697 = vmatpush1.msra.mxu0 0.0
    %698 = vmatprep.subr.mxu0 0.0
    %699 = vmatpush1.msra.mxu0 0.0
    %700 = vmatprep.subr.mxu0 0.0
    %701 = vmatpush1.msra.mxu0 0.0
    %702 = vmatprep.subr.mxu0 0.0
    %703 = vmatpush1.msra.mxu0 0.0
    %704 = vmatprep.subr.mxu0 0.0
    %705 = vmatpush1.msra.mxu0 0.0
    %706 = vmatprep.subr.mxu0 0.0
    %707 = vmatpush1.msra.mxu0 0.0
    %708 = vmatprep.subr.mxu0 0.0
    %709 = vmatpush1.msra.mxu0 0.0
    %710 = vmatprep.subr.mxu0 0.0
    %711 = vmatpush1.msra.mxu0 0.0
    %712 = vmatprep.subr.mxu0 0.0
    %713 = vmatpush1.msra.mxu0 0.0
    %714 = vmatprep.mubr.f32.mxu0 0.0
    %715 = vmatmul.mubr.f32.gmra.mrb[0].mxu0 %v364
    %v716 = vpop.f32.mrb[0].mxu0
    %v717 = vadd.f32 %v317, %v716
    %v718 = vpop.f32.mrb[0].mxu0
    %v719 = vadd.f32 %v321, %v718
    %720 = vdwg.mxu0
    %721 = vmatprep.subr.mxu0 %v161
    %722 = vmatpush1.msra.mxu0 %v160
    %723 = vmatprep.subr.mxu0 %v177
    %724 = vmatpush1.msra.mxu0 %v176
    %725 = vmatprep.subr.mxu0 %v193
    %726 = vmatpush1.msra.mxu0 %v192
    %727 = vmatprep.subr.mxu0 %v209
    %728 = vmatpush1.msra.mxu0 %v208
    %729 = vmatprep.subr.mxu0 %v225
    %730 = vmatpush1.msra.mxu0 %v224
    %731 = vmatprep.subr.mxu0 %v241
    %732 = vmatpush1.msra.mxu0 %v240
    %733 = vmatprep.subr.mxu0 %v257
    %734 = vmatpush1.msra.mxu0 %v256
    %735 = vmatprep.subr.mxu0 %v273
    %736 = vmatpush1.msra.mxu0 %v272
    %737 = vmatprep.subr.mxu0 0.0
    %738 = vmatpush1.msra.mxu0 0.0
    %739 = vmatprep.subr.mxu0 0.0
    %740 = vmatpush1.msra.mxu0 0.0
    %741 = vmatprep.subr.mxu0 0.0
    %742 = vmatpush1.msra.mxu0 0.0
    %743 = vmatprep.subr.mxu0 0.0
    %744 = vmatpush1.msra.mxu0 0.0
    %745 = vmatprep.subr.mxu0 0.0
    %746 = vmatpush1.msra.mxu0 0.0
    %747 = vmatprep.subr.mxu0 0.0
    %748 = vmatpush1.msra.mxu0 0.0
    %749 = vmatprep.subr.mxu0 0.0
    %750 = vmatpush1.msra.mxu0 0.0
    %751 = vmatprep.subr.mxu0 0.0
    %752 = vmatpush1.msra.mxu0 0.0
    %753 = vmatprep.subr.mxu0 0.0
    %754 = vmatpush1.msra.mxu0 0.0
    %755 = vmatprep.subr.mxu0 0.0
    %756 = vmatpush1.msra.mxu0 0.0
    %757 = vmatprep.subr.mxu0 0.0
    %758 = vmatpush1.msra.mxu0 0.0
    %759 = vmatprep.subr.mxu0 0.0
    %760 = vmatpush1.msra.mxu0 0.0
    %761 = vmatprep.subr.mxu0 0.0
    %762 = vmatpush1.msra.mxu0 0.0
    %763 = vmatprep.subr.mxu0 0.0
    %764 = vmatpush1.msra.mxu0 0.0
    %765 = vmatprep.subr.mxu0 0.0
    %766 = vmatpush1.msra.mxu0 0.0
    %767 = vmatprep.subr.mxu0 0.0
    %768 = vmatpush1.msra.mxu0 0.0
    %769 = vmatprep.subr.mxu0 0.0
    %770 = vmatpush1.msra.mxu0 0.0
    %771 = vmatprep.subr.mxu0 0.0
    %772 = vmatpush1.msra.mxu0 0.0
    %773 = vmatprep.subr.mxu0 0.0
    %774 = vmatpush1.msra.mxu0 0.0
    %775 = vmatprep.subr.mxu0 0.0
    %776 = vmatpush1.msra.mxu0 0.0
    %777 = vmatprep.subr.mxu0 0.0
    %778 = vmatpush1.msra.mxu0 0.0
    %779 = vmatprep.subr.mxu0 0.0
    %780 = vmatpush1.msra.mxu0 0.0
    %781 = vmatprep.subr.mxu0 0.0
    %782 = vmatpush1.msra.mxu0 0.0
    %783 = vmatprep.subr.mxu0 0.0
    %784 = vmatpush1.msra.mxu0 0.0
    %785 = vmatprep.mubr.f32.mxu0 0.0
    %786 = vmatmul.mubr.f32.gmra.mrb[0].mxu0 %v364
    %v787 = vpop.f32.mrb[0].mxu0
    %v788 = vadd.f32 %v325, %v787
    %v789 = vpop.f32.mrb[0].mxu0
    %v790 = vadd.f32 %v329, %v789
    %791 = vdwg.mxu0
    %792 = vmatprep.subr.mxu0 %v163
    %793 = vmatpush1.msra.mxu0 %v162
    %794 = vmatprep.subr.mxu0 %v179
    %795 = vmatpush1.msra.mxu0 %v178
    %796 = vmatprep.subr.mxu0 %v195
    %797 = vmatpush1.msra.mxu0 %v194
    %798 = vmatprep.subr.mxu0 %v211
    %799 = vmatpush1.msra.mxu0 %v210
    %800 = vmatprep.subr.mxu0 %v227
    %801 = vmatpush1.msra.mxu0 %v226
    %802 = vmatprep.subr.mxu0 %v243
    %803 = vmatpush1.msra.mxu0 %v242
    %804 = vmatprep.subr.mxu0 %v259
    %805 = vmatpush1.msra.mxu0 %v258
    %806 = vmatprep.subr.mxu0 %v275
    %807 = vmatpush1.msra.mxu0 %v274
    %808 = vmatprep.subr.mxu0 0.0
    %809 = vmatpush1.msra.mxu0 0.0
    %810 = vmatprep.subr.mxu0 0.0
    %811 = vmatpush1.msra.mxu0 0.0
    %812 = vmatprep.subr.mxu0 0.0
    %813 = vmatpush1.msra.mxu0 0.0
    %814 = vmatprep.subr.mxu0 0.0
    %815 = vmatpush1.msra.mxu0 0.0
    %816 = vmatprep.subr.mxu0 0.0
    %817 = vmatpush1.msra.mxu0 0.0
    %818 = vmatprep.subr.mxu0 0.0
    %819 = vmatpush1.msra.mxu0 0.0
    %820 = vmatprep.subr.mxu0 0.0
    %821 = vmatpush1.msra.mxu0 0.0
    %822 = vmatprep.subr.mxu0 0.0
    %823 = vmatpush1.msra.mxu0 0.0
    %824 = vmatprep.subr.mxu0 0.0
    %825 = vmatpush1.msra.mxu0 0.0
    %826 = vmatprep.subr.mxu0 0.0
    %827 = vmatpush1.msra.mxu0 0.0
    %828 = vmatprep.subr.mxu0 0.0
    %829 = vmatpush1.msra.mxu0 0.0
    %830 = vmatprep.subr.mxu0 0.0
    %831 = vmatpush1.msra.mxu0 0.0
    %832 = vmatprep.subr.mxu0 0.0
    %833 = vmatpush1.msra.mxu0 0.0
    %834 = vmatprep.subr.mxu0 0.0
    %835 = vmatpush1.msra.mxu0 0.0
    %836 = vmatprep.subr.mxu0 0.0
    %837 = vmatpush1.msra.mxu0 0.0
    %838 = vmatprep.subr.mxu0 0.0
    %839 = vmatpush1.msra.mxu0 0.0
    %840 = vmatprep.subr.mxu0 0.0
    %841 = vmatpush1.msra.mxu0 0.0
    %842 = vmatprep.subr.mxu0 0.0
    %843 = vmatpush1.msra.mxu0 0.0
    %844 = vmatprep.subr.mxu0 0.0
    %845 = vmatpush1.msra.mxu0 0.0
    %846 = vmatprep.subr.mxu0 0.0
    %847 = vmatpush1.msra.mxu0 0.0
    %848 = vmatprep.subr.mxu0 0.0
    %849 = vmatpush1.msra.mxu0 0.0
    %850 = vmatprep.subr.mxu0 0.0
    %851 = vmatpush1.msra.mxu0 0.0
    %852 = vmatprep.subr.mxu0 0.0
    %853 = vmatpush1.msra.mxu0 0.0
    %854 = vmatprep.subr.mxu0 0.0
    %855 = vmatpush1.msra.mxu0 0.0
    %856 = vmatprep.mubr.f32.mxu0 0.0
    %857 = vmatmul.mubr.f32.gmra.mrb[0].mxu0 %v364
    %v858 = vpop.f32.mrb[0].mxu0
    %v859 = vadd.f32 %v333, %v858
    %v860 = vpop.f32.mrb[0].mxu0
    %v861 = vadd.f32 %v337, %v860
    %862 = vdwg.mxu0
    %863 = vmatprep.subr.mxu0 %v165
    %864 = vmatpush1.msra.mxu0 %v164
    %865 = vmatprep.subr.mxu0 %v181
    %866 = vmatpush1.msra.mxu0 %v180
    %867 = vmatprep.subr.mxu0 %v197
    %868 = vmatpush1.msra.mxu0 %v196
    %869 = vmatprep.subr.mxu0 %v213
    %870 = vmatpush1.msra.mxu0 %v212
    %871 = vmatprep.subr.mxu0 %v229
    %872 = vmatpush1.msra.mxu0 %v228
    %873 = vmatprep.subr.mxu0 %v245
    %874 = vmatpush1.msra.mxu0 %v244
    %875 = vmatprep.subr.mxu0 %v261
    %876 = vmatpush1.msra.mxu0 %v260
    %877 = vmatprep.subr.mxu0 %v277
    %878 = vmatpush1.msra.mxu0 %v276
    %879 = vmatprep.subr.mxu0 0.0
    %880 = vmatpush1.msra.mxu0 0.0
    %881 = vmatprep.subr.mxu0 0.0
    %882 = vmatpush1.msra.mxu0 0.0
    %883 = vmatprep.subr.mxu0 0.0
    %884 = vmatpush1.msra.mxu0 0.0
    %885 = vmatprep.subr.mxu0 0.0
    %886 = vmatpush1.msra.mxu0 0.0
    %887 = vmatprep.subr.mxu0 0.0
    %888 = vmatpush1.msra.mxu0 0.0
    %889 = vmatprep.subr.mxu0 0.0
    %890 = vmatpush1.msra.mxu0 0.0
    %891 = vmatprep.subr.mxu0 0.0
    %892 = vmatpush1.msra.mxu0 0.0
    %893 = vmatprep.subr.mxu0 0.0
    %894 = vmatpush1.msra.mxu0 0.0
    %895 = vmatprep.subr.mxu0 0.0
    %896 = vmatpush1.msra.mxu0 0.0
    %897 = vmatprep.subr.mxu0 0.0
    %898 = vmatpush1.msra.mxu0 0.0
    %899 = vmatprep.subr.mxu0 0.0
    %900 = vmatpush1.msra.mxu0 0.0
    %901 = vmatprep.subr.mxu0 0.0
    %902 = vmatpush1.msra.mxu0 0.0
    %903 = vmatprep.subr.mxu0 0.0
    %904 = vmatpush1.msra.mxu0 0.0
    %905 = vmatprep.subr.mxu0 0.0
    %906 = vmatpush1.msra.mxu0 0.0
    %907 = vmatprep.subr.mxu0 0.0
    %908 = vmatpush1.msra.mxu0 0.0
    %909 = vmatprep.subr.mxu0 0.0
    %910 = vmatpush1.msra.mxu0 0.0
    %911 = vmatprep.subr.mxu0 0.0
    %912 = vmatpush1.msra.mxu0 0.0
    %913 = vmatprep.subr.mxu0 0.0
    %914 = vmatpush1.msra.mxu0 0.0
    %915 = vmatprep.subr.mxu0 0.0
    %916 = vmatpush1.msra.mxu0 0.0
    %917 = vmatprep.subr.mxu0 0.0
    %918 = vmatpush1.msra.mxu0 0.0
    %919 = vmatprep.subr.mxu0 0.0
    %920 = vmatpush1.msra.mxu0 0.0
    %921 = vmatprep.subr.mxu0 0.0
    %922 = vmatpush1.msra.mxu0 0.0
    %923 = vmatprep.subr.mxu0 0.0
    %924 = vmatpush1.msra.mxu0 0.0
    %925 = vmatprep.subr.mxu0 0.0
    %926 = vmatpush1.msra.mxu0 0.0
    %927 = vmatprep.mubr.f32.mxu0 0.0
    %928 = vmatmul.mubr.f32.gmra.mrb[0].mxu0 %v364
    %v929 = vpop.f32.mrb[0].mxu0
    %v930 = vadd.f32 %v341, %v929
    %v931 = vpop.f32.mrb[0].mxu0
    %v932 = vadd.f32 %v345, %v931
    %933 = vdwg.mxu0
    %v934 = vmax.f32 %v433, 0.0
    %v935 = vmax.f32 %v435, 0.0
    %v936 = vmax.f32 %v504, 0.0
    %v937 = vmax.f32 %v506, 0.0
    %v938 = vmax.f32 %v575, 0.0
    %v939 = vmax.f32 %v577, 0.0
    %v940 = vmax.f32 %v646, 0.0
    %v941 = vmax.f32 %v648, 0.0
    %v942 = vmax.f32 %v717, 0.0
    %v943 = vmax.f32 %v719, 0.0
    %v944 = vmax.f32 %v788, 0.0
    %v945 = vmax.f32 %v790, 0.0
    %v946 = vmax.f32 %v859, 0.0
    %v947 = vmax.f32 %v861, 0.0
    %v948 = vmax.f32 %v930, 0.0
    %v949 = vmax.f32 %v932, 0.0
    %950 = vst [vmem:[#allocation2 + $0x10] sm:$0xff] %v934
    %951 = vst [vmem:[#allocation2 + $0x18] sm:$0xff] %v935
    %952 = vst [vmem:[#allocation2 + $0x20] sm:$0xff] %v936
    %953 = vst [vmem:[#allocation2 + $0x28] sm:$0xff] %v937
    %954 = vst [vmem:[#allocation2 + $0x30] sm:$0xff] %v938
    %955 = vst [vmem:[#allocation2 + $0x38] sm:$0xff] %v939
    %956 = vst [vmem:[#allocation2 + $0x40] sm:$0xff] %v940
    %957 = vst [vmem:[#allocation2 + $0x48] sm:$0xff] %v941
    %958 = vst [vmem:[#allocation2 + $0x50] sm:$0xff] %v942
    %959 = vst [vmem:[#allocation2 + $0x58] sm:$0xff] %v943
    %960 = vst [vmem:[#allocation2 + $0x60] sm:$0xff] %v944
    %961 = vst [vmem:[#allocation2 + $0x68] sm:$0xff] %v945
    %962 = vst [vmem:[#allocation2 + $0x70] sm:$0xff] %v946
    %963 = vst [vmem:[#allocation2 + $0x78] sm:$0xff] %v947
    %964 = vst [vmem:[#allocation2 + $0x80] sm:$0xff] %v948
    %965 = vst [vmem:[#allocation2 + $0x88] sm:$0xff] %v949
    %v966 = vld [vmem:[#allocation2] sm:$0xff]
    %v967 = vld [vmem:[#allocation2 + $0x8] sm:$0xff]
    %v968 = vld [vmem:[#allocation2 + $0x10] sm:$0xff]
    %v969 = vld [vmem:[#allocation2 + $0x18] sm:$0xff]
    %v970 = vld [vmem:[#allocation2 + $0x20] sm:$0xff]
    %v971 = vld [vmem:[#allocation2 + $0x28] sm:$0xff]
    %v972 = vld [vmem:[#allocation2 + $0x30] sm:$0xff]
    %v973 = vld [vmem:[#allocation2 + $0x38] sm:$0xff]
    %v974 = vld [vmem:[#allocation2 + $0x40] sm:$0xff]
    %v975 = vld [vmem:[#allocation2 + $0x48] sm:$0xff]
    %v976 = vld [vmem:[#allocation2 + $0x50] sm:$0xff]
    %v977 = vld [vmem:[#allocation2 + $0x58] sm:$0xff]
    %v978 = vld [vmem:[#allocation2 + $0x60] sm:$0xff]
    %v979 = vld [vmem:[#allocation2 + $0x68] sm:$0xff]
    %v980 = vld [vmem:[#allocation2 + $0x70] sm:$0xff]
    %v981 = vld [vmem:[#allocation2 + $0x78] sm:$0xff]
    %v982 = vld [vmem:[#allocation9] sm:$0xff]
    %v983 = vld [vmem:[#allocation9 + $0x8] sm:$0xff]
    %v984 = vld [vmem:[#allocation9 + $0x10] sm:$0xff]
    %v985 = vld [vmem:[#allocation9 + $0x18] sm:$0xff]
    %v986 = vld [vmem:[#allocation9 + $0x20] sm:$0xff]
    %v987 = vld [vmem:[#allocation9 + $0x28] sm:$0xff]
    %v988 = vld [vmem:[#allocation9 + $0x30] sm:$0xff]
    %v989 = vld [vmem:[#allocation9 + $0x38] sm:$0xff]
    %v990 = vld [vmem:[#allocation9 + $0x40] sm:$0xff]
    %v991 = vld [vmem:[#allocation9 + $0x48] sm:$0xff]
    %v992 = vld [vmem:[#allocation9 + $0x50] sm:$0xff]
    %v993 = vld [vmem:[#allocation9 + $0x58] sm:$0xff]
    %v994 = vld [vmem:[#allocation9 + $0x60] sm:$0xff]
    %v995 = vld [vmem:[#allocation9 + $0x68] sm:$0xff]
    %v996 = vld [vmem:[#allocation9 + $0x70] sm:$0xff]
    %v997 = vld [vmem:[#allocation9 + $0x78] sm:$0xff]
    %v998 = vld [vmem:[#allocation9 + $0x80] sm:$0xff]
    %v999 = vld [vmem:[#allocation9 + $0x88] sm:$0xff]
    %v1000 = vld [vmem:[#allocation9 + $0x90] sm:$0xff]
    %v1001 = vld [vmem:[#allocation9 + $0x98] sm:$0xff]
    %v1002 = vld [vmem:[#allocation9 + $0xa0] sm:$0xff]
    %v1003 = vld [vmem:[#allocation9 + $0xa8] sm:$0xff]
    %v1004 = vld [vmem:[#allocation9 + $0xb0] sm:$0xff]
    %v1005 = vld [vmem:[#allocation9 + $0xb8] sm:$0xff]
    %v1006 = vld [vmem:[#allocation9 + $0xc0] sm:$0xff]
    %v1007 = vld [vmem:[#allocation9 + $0xc8] sm:$0xff]
    %v1008 = vld [vmem:[#allocation9 + $0xd0] sm:$0xff]
    %v1009 = vld [vmem:[#allocation9 + $0xd8] sm:$0xff]
    %v1010 = vld [vmem:[#allocation9 + $0xe0] sm:$0xff]
    %v1011 = vld [vmem:[#allocation9 + $0xe8] sm:$0xff]
    %v1012 = vld [vmem:[#allocation9 + $0xf0] sm:$0xff]
    %v1013 = vld [vmem:[#allocation9 + $0xf8] sm:$0xff]
    %v1014 = vld [vmem:[#allocation9 + $0x100] sm:$0xff]
    %v1015 = vld [vmem:[#allocation9 + $0x108] sm:$0xff]
    %v1016 = vld [vmem:[#allocation9 + $0x110] sm:$0xff]
    %v1017 = vld [vmem:[#allocation9 + $0x118] sm:$0xff]
    %v1018 = vld [vmem:[#allocation9 + $0x120] sm:$0xff]
    %v1019 = vld [vmem:[#allocation9 + $0x128] sm:$0xff]
    %v1020 = vld [vmem:[#allocation9 + $0x130] sm:$0xff]
    %v1021 = vld [vmem:[#allocation9 + $0x138] sm:$0xff]
    %v1022 = vld [vmem:[#allocation9 + $0x140] sm:$0xff]
    %v1023 = vld [vmem:[#allocation9 + $0x148] sm:$0xff]
    %v1024 = vld [vmem:[#allocation9 + $0x150] sm:$0xff]
    %v1025 = vld [vmem:[#allocation9 + $0x158] sm:$0xff]
    %v1026 = vld [vmem:[#allocation9 + $0x160] sm:$0xff]
    %v1027 = vld [vmem:[#allocation9 + $0x168] sm:$0xff]
    %v1028 = vld [vmem:[#allocation9 + $0x170] sm:$0xff]
    %v1029 = vld [vmem:[#allocation9 + $0x178] sm:$0xff]
    %v1030 = vld [vmem:[#allocation9 + $0x180] sm:$0xff]
    %v1031 = vld [vmem:[#allocation9 + $0x188] sm:$0xff]
    %v1032 = vld [vmem:[#allocation9 + $0x190] sm:$0xff]
    %v1033 = vld [vmem:[#allocation9 + $0x198] sm:$0xff]
    %v1034 = vld [vmem:[#allocation9 + $0x1a0] sm:$0xff]
    %v1035 = vld [vmem:[#allocation9 + $0x1a8] sm:$0xff]
    %v1036 = vld [vmem:[#allocation9 + $0x1b0] sm:$0xff]
    %v1037 = vld [vmem:[#allocation9 + $0x1b8] sm:$0xff]
    %v1038 = vld [vmem:[#allocation9 + $0x1c0] sm:$0xff]
    %v1039 = vld [vmem:[#allocation9 + $0x1c8] sm:$0xff]
    %v1040 = vld [vmem:[#allocation9 + $0x1d0] sm:$0xff]
    %v1041 = vld [vmem:[#allocation9 + $0x1d8] sm:$0xff]
    %v1042 = vld [vmem:[#allocation9 + $0x1e0] sm:$0xff]
    %v1043 = vld [vmem:[#allocation9 + $0x1e8] sm:$0xff]
    %v1044 = vld [vmem:[#allocation9 + $0x1f0] sm:$0xff]
    %v1045 = vld [vmem:[#allocation9 + $0x1f8] sm:$0xff]
    %v1046 = vld [vmem:[#allocation9 + $0x200] sm:$0xff]
    %v1047 = vld [vmem:[#allocation9 + $0x208] sm:$0xff]
    %v1048 = vld [vmem:[#allocation9 + $0x210] sm:$0xff]
    %v1049 = vld [vmem:[#allocation9 + $0x218] sm:$0xff]
    %v1050 = vld [vmem:[#allocation9 + $0x220] sm:$0xff]
    %v1051 = vld [vmem:[#allocation9 + $0x228] sm:$0xff]
    %v1052 = vld [vmem:[#allocation9 + $0x230] sm:$0xff]
    %v1053 = vld [vmem:[#allocation9 + $0x238] sm:$0xff]
    %v1054 = vld [vmem:[#allocation9 + $0x240] sm:$0xff]
    %v1055 = vld [vmem:[#allocation9 + $0x248] sm:$0xff]
    %v1056 = vld [vmem:[#allocation9 + $0x250] sm:$0xff]
    %v1057 = vld [vmem:[#allocation9 + $0x258] sm:$0xff]
    %v1058 = vld [vmem:[#allocation9 + $0x260] sm:$0xff]
    %v1059 = vld [vmem:[#allocation9 + $0x268] sm:$0xff]
    %v1060 = vld [vmem:[#allocation9 + $0x270] sm:$0xff]
    %v1061 = vld [vmem:[#allocation9 + $0x278] sm:$0xff]
    %v1062 = vld [vmem:[#allocation9 + $0x280] sm:$0xff]
    %v1063 = vld [vmem:[#allocation9 + $0x288] sm:$0xff]
    %v1064 = vld [vmem:[#allocation9 + $0x290] sm:$0xff]
    %v1065 = vld [vmem:[#allocation9 + $0x298] sm:$0xff]
    %v1066 = vld [vmem:[#allocation9 + $0x2a0] sm:$0xff]
    %v1067 = vld [vmem:[#allocation9 + $0x2a8] sm:$0xff]
    %v1068 = vld [vmem:[#allocation9 + $0x2b0] sm:$0xff]
    %v1069 = vld [vmem:[#allocation9 + $0x2b8] sm:$0xff]
    %v1070 = vld [vmem:[#allocation9 + $0x2c0] sm:$0xff]
    %v1071 = vld [vmem:[#allocation9 + $0x2c8] sm:$0xff]
    %v1072 = vld [vmem:[#allocation9 + $0x2d0] sm:$0xff]
    %v1073 = vld [vmem:[#allocation9 + $0x2d8] sm:$0xff]
    %v1074 = vld [vmem:[#allocation9 + $0x2e0] sm:$0xff]
    %v1075 = vld [vmem:[#allocation9 + $0x2e8] sm:$0xff]
    %v1076 = vld [vmem:[#allocation9 + $0x2f0] sm:$0xff]
    %v1077 = vld [vmem:[#allocation9 + $0x2f8] sm:$0xff]
    %v1078 = vld [vmem:[#allocation9 + $0x300] sm:$0xff]
    %v1079 = vld [vmem:[#allocation9 + $0x308] sm:$0xff]
    %v1080 = vld [vmem:[#allocation9 + $0x310] sm:$0xff]
    %v1081 = vld [vmem:[#allocation9 + $0x318] sm:$0xff]
    %v1082 = vld [vmem:[#allocation9 + $0x320] sm:$0xff]
    %v1083 = vld [vmem:[#allocation9 + $0x328] sm:$0xff]
    %v1084 = vld [vmem:[#allocation9 + $0x330] sm:$0xff]
    %v1085 = vld [vmem:[#allocation9 + $0x338] sm:$0xff]
    %v1086 = vld [vmem:[#allocation9 + $0x340] sm:$0xff]
    %v1087 = vld [vmem:[#allocation9 + $0x348] sm:$0xff]
    %v1088 = vld [vmem:[#allocation9 + $0x350] sm:$0xff]
    %v1089 = vld [vmem:[#allocation9 + $0x358] sm:$0xff]
    %v1090 = vld [vmem:[#allocation9 + $0x360] sm:$0xff]
    %v1091 = vld [vmem:[#allocation9 + $0x368] sm:$0xff]
    %v1092 = vld [vmem:[#allocation9 + $0x370] sm:$0xff]
    %v1093 = vld [vmem:[#allocation9 + $0x378] sm:$0xff]
    %v1094 = vld [vmem:[#allocation9 + $0x380] sm:$0xff]
    %v1095 = vld [vmem:[#allocation9 + $0x388] sm:$0xff]
    %v1096 = vld [vmem:[#allocation9 + $0x390] sm:$0xff]
    %v1097 = vld [vmem:[#allocation9 + $0x398] sm:$0xff]
    %v1098 = vld [vmem:[#allocation9 + $0x3a0] sm:$0xff]
    %v1099 = vld [vmem:[#allocation9 + $0x3a8] sm:$0xff]
    %v1100 = vld [vmem:[#allocation9 + $0x3b0] sm:$0xff]
    %v1101 = vld [vmem:[#allocation9 + $0x3b8] sm:$0xff]
    %v1102 = vld [vmem:[#allocation9 + $0x3c0] sm:$0xff]
    %v1103 = vld [vmem:[#allocation9 + $0x3c8] sm:$0xff]
    %v1104 = vld [vmem:[#allocation9 + $0x3d0] sm:$0xff]
    %v1105 = vld [vmem:[#allocation9 + $0x3d8] sm:$0xff]
    %v1106 = vld [vmem:[#allocation9 + $0x3e0] sm:$0xff]
    %v1107 = vld [vmem:[#allocation9 + $0x3e8] sm:$0xff]
    %v1108 = vld [vmem:[#allocation9 + $0x3f0] sm:$0xff]
    %v1109 = vld [vmem:[#allocation9 + $0x3f8] sm:$0xff]
    %v1110 = vld [vmem:[#allocation2 + $0x80] sm:$0xff]
    %v1111 = vld [vmem:[#allocation2 + $0x88] sm:$0xff]
    %s1112 = scalar_lea.vmem [#allocation9], 1024
    %v1113 = vld [vmem:[%s1112] sm:$0xff]
    %v1114 = vld [vmem:[%s1112 + $0x8] sm:$0xff]
    %v1115 = vld [vmem:[%s1112 + $0x10] sm:$0xff]
    %v1116 = vld [vmem:[%s1112 + $0x18] sm:$0xff]
    %v1117 = vld [vmem:[%s1112 + $0x20] sm:$0xff]
    %v1118 = vld [vmem:[%s1112 + $0x28] sm:$0xff]
    %v1119 = vld [vmem:[%s1112 + $0x30] sm:$0xff]
    %v1120 = vld [vmem:[%s1112 + $0x38] sm:$0xff]
    %v1121 = vld [vmem:[%s1112 + $0x40] sm:$0xff]
    %v1122 = vld [vmem:[%s1112 + $0x48] sm:$0xff]
    %v1123 = vld [vmem:[%s1112 + $0x50] sm:$0xff]
    %v1124 = vld [vmem:[%s1112 + $0x58] sm:$0xff]
    %v1125 = vld [vmem:[%s1112 + $0x60] sm:$0xff]
    %v1126 = vld [vmem:[%s1112 + $0x68] sm:$0xff]
    %v1127 = vld [vmem:[%s1112 + $0x70] sm:$0xff]
    %v1128 = vld [vmem:[%s1112 + $0x78] sm:$0xff]
    %v1129 = vld [vmem:[%s1112 + $0x80] sm:$0xff]
    %v1130 = vld [vmem:[%s1112 + $0x88] sm:$0xff]
    %v1131 = vld [vmem:[%s1112 + $0x90] sm:$0xff]
    %v1132 = vld [vmem:[%s1112 + $0x98] sm:$0xff]
    %v1133 = vld [vmem:[%s1112 + $0xa0] sm:$0xff]
    %v1134 = vld [vmem:[%s1112 + $0xa8] sm:$0xff]
    %v1135 = vld [vmem:[%s1112 + $0xb0] sm:$0xff]
    %v1136 = vld [vmem:[%s1112 + $0xb8] sm:$0xff]
    %v1137 = vld [vmem:[%s1112 + $0xc0] sm:$0xff]
    %v1138 = vld [vmem:[%s1112 + $0xc8] sm:$0xff]
    %v1139 = vld [vmem:[%s1112 + $0xd0] sm:$0xff]
    %v1140 = vld [vmem:[%s1112 + $0xd8] sm:$0xff]
    %v1141 = vld [vmem:[%s1112 + $0xe0] sm:$0xff]
    %v1142 = vld [vmem:[%s1112 + $0xe8] sm:$0xff]
    %v1143 = vld [vmem:[%s1112 + $0xf0] sm:$0xff]
    %v1144 = vld [vmem:[%s1112 + $0xf8] sm:$0xff]
    %v1145 = vld [vmem:[%s1112 + $0x100] sm:$0xff]
    %v1146 = vld [vmem:[%s1112 + $0x108] sm:$0xff]
    %v1147 = vld [vmem:[%s1112 + $0x110] sm:$0xff]
    %v1148 = vld [vmem:[%s1112 + $0x118] sm:$0xff]
    %v1149 = vld [vmem:[%s1112 + $0x120] sm:$0xff]
    %v1150 = vld [vmem:[%s1112 + $0x128] sm:$0xff]
    %v1151 = vld [vmem:[%s1112 + $0x130] sm:$0xff]
    %v1152 = vld [vmem:[%s1112 + $0x138] sm:$0xff]
    %v1153 = vld [vmem:[%s1112 + $0x140] sm:$0xff]
    %v1154 = vld [vmem:[%s1112 + $0x148] sm:$0xff]
    %v1155 = vld [vmem:[%s1112 + $0x150] sm:$0xff]
    %v1156 = vld [vmem:[%s1112 + $0x158] sm:$0xff]
    %v1157 = vld [vmem:[%s1112 + $0x160] sm:$0xff]
    %v1158 = vld [vmem:[%s1112 + $0x168] sm:$0xff]
    %v1159 = vld [vmem:[%s1112 + $0x170] sm:$0xff]
    %v1160 = vld [vmem:[%s1112 + $0x178] sm:$0xff]
    %v1161 = vld [vmem:[%s1112 + $0x180] sm:$0xff]
    %v1162 = vld [vmem:[%s1112 + $0x188] sm:$0xff]
    %v1163 = vld [vmem:[%s1112 + $0x190] sm:$0xff]
    %v1164 = vld [vmem:[%s1112 + $0x198] sm:$0xff]
    %v1165 = vld [vmem:[%s1112 + $0x1a0] sm:$0xff]
    %v1166 = vld [vmem:[%s1112 + $0x1a8] sm:$0xff]
    %v1167 = vld [vmem:[%s1112 + $0x1b0] sm:$0xff]
    %v1168 = vld [vmem:[%s1112 + $0x1b8] sm:$0xff]
    %v1169 = vld [vmem:[%s1112 + $0x1c0] sm:$0xff]
    %v1170 = vld [vmem:[%s1112 + $0x1c8] sm:$0xff]
    %v1171 = vld [vmem:[%s1112 + $0x1d0] sm:$0xff]
    %v1172 = vld [vmem:[%s1112 + $0x1d8] sm:$0xff]
    %v1173 = vld [vmem:[%s1112 + $0x1e0] sm:$0xff]
    %v1174 = vld [vmem:[%s1112 + $0x1e8] sm:$0xff]
    %v1175 = vld [vmem:[%s1112 + $0x1f0] sm:$0xff]
    %v1176 = vld [vmem:[%s1112 + $0x1f8] sm:$0xff]
    %v1177 = vld [vmem:[%s1112 + $0x200] sm:$0xff]
    %v1178 = vld [vmem:[%s1112 + $0x208] sm:$0xff]
    %v1179 = vld [vmem:[%s1112 + $0x210] sm:$0xff]
    %v1180 = vld [vmem:[%s1112 + $0x218] sm:$0xff]
    %v1181 = vld [vmem:[%s1112 + $0x220] sm:$0xff]
    %v1182 = vld [vmem:[%s1112 + $0x228] sm:$0xff]
    %v1183 = vld [vmem:[%s1112 + $0x230] sm:$0xff]
    %v1184 = vld [vmem:[%s1112 + $0x238] sm:$0xff]
    %v1185 = vld [vmem:[%s1112 + $0x240] sm:$0xff]
    %v1186 = vld [vmem:[%s1112 + $0x248] sm:$0xff]
    %v1187 = vld [vmem:[%s1112 + $0x250] sm:$0xff]
    %v1188 = vld [vmem:[%s1112 + $0x258] sm:$0xff]
    %v1189 = vld [vmem:[%s1112 + $0x260] sm:$0xff]
    %v1190 = vld [vmem:[%s1112 + $0x268] sm:$0xff]
    %v1191 = vld [vmem:[%s1112 + $0x270] sm:$0xff]
    %v1192 = vld [vmem:[%s1112 + $0x278] sm:$0xff]
    %v1193 = vld [vmem:[%s1112 + $0x280] sm:$0xff]
    %v1194 = vld [vmem:[%s1112 + $0x288] sm:$0xff]
    %v1195 = vld [vmem:[%s1112 + $0x290] sm:$0xff]
    %v1196 = vld [vmem:[%s1112 + $0x298] sm:$0xff]
    %v1197 = vld [vmem:[%s1112 + $0x2a0] sm:$0xff]
    %v1198 = vld [vmem:[%s1112 + $0x2a8] sm:$0xff]
    %v1199 = vld [vmem:[%s1112 + $0x2b0] sm:$0xff]
    %v1200 = vld [vmem:[%s1112 + $0x2b8] sm:$0xff]
    %v1201 = vld [vmem:[%s1112 + $0x2c0] sm:$0xff]
    %v1202 = vld [vmem:[%s1112 + $0x2c8] sm:$0xff]
    %v1203 = vld [vmem:[%s1112 + $0x2d0] sm:$0xff]
    %v1204 = vld [vmem:[%s1112 + $0x2d8] sm:$0xff]
    %v1205 = vld [vmem:[%s1112 + $0x2e0] sm:$0xff]
    %v1206 = vld [vmem:[%s1112 + $0x2e8] sm:$0xff]
    %v1207 = vld [vmem:[%s1112 + $0x2f0] sm:$0xff]
    %v1208 = vld [vmem:[%s1112 + $0x2f8] sm:$0xff]
    %v1209 = vld [vmem:[%s1112 + $0x300] sm:$0xff]
    %v1210 = vld [vmem:[%s1112 + $0x308] sm:$0xff]
    %v1211 = vld [vmem:[%s1112 + $0x310] sm:$0xff]
    %v1212 = vld [vmem:[%s1112 + $0x318] sm:$0xff]
    %v1213 = vld [vmem:[%s1112 + $0x320] sm:$0xff]
    %v1214 = vld [vmem:[%s1112 + $0x328] sm:$0xff]
    %v1215 = vld [vmem:[%s1112 + $0x330] sm:$0xff]
    %v1216 = vld [vmem:[%s1112 + $0x338] sm:$0xff]
    %v1217 = vld [vmem:[%s1112 + $0x340] sm:$0xff]
    %v1218 = vld [vmem:[%s1112 + $0x348] sm:$0xff]
    %v1219 = vld [vmem:[%s1112 + $0x350] sm:$0xff]
    %v1220 = vld [vmem:[%s1112 + $0x358] sm:$0xff]
    %v1221 = vld [vmem:[%s1112 + $0x360] sm:$0xff]
    %v1222 = vld [vmem:[%s1112 + $0x368] sm:$0xff]
    %v1223 = vld [vmem:[%s1112 + $0x370] sm:$0xff]
    %v1224 = vld [vmem:[%s1112 + $0x378] sm:$0xff]
    %v1225 = vld [vmem:[%s1112 + $0x380] sm:$0xff]
    %v1226 = vld [vmem:[%s1112 + $0x388] sm:$0xff]
    %v1227 = vld [vmem:[%s1112 + $0x390] sm:$0xff]
    %v1228 = vld [vmem:[%s1112 + $0x398] sm:$0xff]
    %v1229 = vld [vmem:[%s1112 + $0x3a0] sm:$0xff]
    %v1230 = vld [vmem:[%s1112 + $0x3a8] sm:$0xff]
    %v1231 = vld [vmem:[%s1112 + $0x3b0] sm:$0xff]
    %v1232 = vld [vmem:[%s1112 + $0x3b8] sm:$0xff]
    %v1233 = vld [vmem:[%s1112 + $0x3c0] sm:$0xff]
    %v1234 = vld [vmem:[%s1112 + $0x3c8] sm:$0xff]
    %v1235 = vld [vmem:[%s1112 + $0x3d0] sm:$0xff]
    %v1236 = vld [vmem:[%s1112 + $0x3d8] sm:$0xff]
    %v1237 = vld [vmem:[%s1112 + $0x3e0] sm:$0xff]
    %v1238 = vld [vmem:[%s1112 + $0x3e8] sm:$0xff]
    %v1239 = vld [vmem:[%s1112 + $0x3f0] sm:$0xff]
    %v1240 = vld [vmem:[%s1112 + $0x3f8] sm:$0xff]
    %1241 = vmatprep.subr.mxu0 %v1114
    %1242 = vmatpush1.msra.mxu0 %v1113
    %1243 = vmatprep.subr.mxu0 %v1118
    %1244 = vmatpush1.msra.mxu0 %v1117
    %1245 = vmatprep.subr.mxu0 %v1122
    %1246 = vmatpush1.msra.mxu0 %v1121
    %1247 = vmatprep.subr.mxu0 %v1126
    %1248 = vmatpush1.msra.mxu0 %v1125
    %1249 = vmatprep.subr.mxu0 %v1130
    %1250 = vmatpush1.msra.mxu0 %v1129
    %1251 = vmatprep.subr.mxu0 %v1134
    %1252 = vmatpush1.msra.mxu0 %v1133
    %1253 = vmatprep.subr.mxu0 %v1138
    %1254 = vmatpush1.msra.mxu0 %v1137
    %1255 = vmatprep.subr.mxu0 %v1142
    %1256 = vmatpush1.msra.mxu0 %v1141
    %1257 = vmatprep.subr.mxu0 %v1146
    %1258 = vmatpush1.msra.mxu0 %v1145
    %1259 = vmatprep.subr.mxu0 %v1150
    %1260 = vmatpush1.msra.mxu0 %v1149
    %1261 = vmatprep.subr.mxu0 %v1154
    %1262 = vmatpush1.msra.mxu0 %v1153
    %1263 = vmatprep.subr.mxu0 %v1158
    %1264 = vmatpush1.msra.mxu0 %v1157
    %1265 = vmatprep.subr.mxu0 %v1162
    %1266 = vmatpush1.msra.mxu0 %v1161
    %1267 = vmatprep.subr.mxu0 %v1166
    %1268 = vmatpush1.msra.mxu0 %v1165
    %1269 = vmatprep.subr.mxu0 %v1170
    %1270 = vmatpush1.msra.mxu0 %v1169
    %1271 = vmatprep.subr.mxu0 %v1174
    %1272 = vmatpush1.msra.mxu0 %v1173
    %1273 = vmatprep.subr.mxu0 %v1178
    %1274 = vmatpush1.msra.mxu0 %v1177
    %1275 = vmatprep.subr.mxu0 %v1182
    %1276 = vmatpush1.msra.mxu0 %v1181
    %1277 = vmatprep.subr.mxu0 %v1186
    %1278 = vmatpush1.msra.mxu0 %v1185
    %1279 = vmatprep.subr.mxu0 %v1190
    %1280 = vmatpush1.msra.mxu0 %v1189
    %1281 = vmatprep.subr.mxu0 %v1194
    %1282 = vmatpush1.msra.mxu0 %v1193
    %1283 = vmatprep.subr.mxu0 %v1198
    %1284 = vmatpush1.msra.mxu0 %v1197
    %1285 = vmatprep.subr.mxu0 %v1202
    %1286 = vmatpush1.msra.mxu0 %v1201
    %1287 = vmatprep.subr.mxu0 %v1206
    %1288 = vmatpush1.msra.mxu0 %v1205
    %1289 = vmatprep.subr.mxu0 %v1210
    %1290 = vmatpush1.msra.mxu0 %v1209
    %1291 = vmatprep.subr.mxu0 %v1214
    %1292 = vmatpush1.msra.mxu0 %v1213
    %1293 = vmatprep.subr.mxu0 %v1218
    %1294 = vmatpush1.msra.mxu0 %v1217
    %1295 = vmatprep.subr.mxu0 %v1222
    %1296 = vmatpush1.msra.mxu0 %v1221
    %1297 = vmatprep.subr.mxu0 %v1226
    %1298 = vmatpush1.msra.mxu0 %v1225
    %1299 = vmatprep.subr.mxu0 %v1230
    %1300 = vmatpush1.msra.mxu0 %v1229
    %1301 = vmatprep.subr.mxu0 %v1234
    %1302 = vmatpush1.msra.mxu0 %v1233
    %1303 = vmatprep.subr.mxu0 %v1238
    %1304 = vmatpush1.msra.mxu0 %v1237
    %1305 = vmatprep.mubr.f32.mxu0 %v969
    %1306 = vmatmul.mubr.f32.gmra.mrb[0].mxu0 %v968
    %v1307 = vpop.f32.mrb[0].mxu0
    %v1308 = vadd.f32 0.0, %v1307
    %v1309 = vpop.f32.mrb[0].mxu0
    %v1310 = vadd.f32 0.0, %v1309
    %1311 = vmatprep.mubr.f32.mxu0 %v971
    %1312 = vmatmul.mubr.f32.gmra.mrb[0].mxu0 %v970
    %v1313 = vpop.f32.mrb[0].mxu0
    %v1314 = vadd.f32 0.0, %v1313
    %v1315 = vpop.f32.mrb[0].mxu0
    %v1316 = vadd.f32 0.0, %v1315
    %1317 = vmatprep.mubr.f32.mxu0 %v973
    %1318 = vmatmul.mubr.f32.gmra.mrb[0].mxu0 %v972
    %v1319 = vpop.f32.mrb[0].mxu0
    %v1320 = vadd.f32 0.0, %v1319
    %v1321 = vpop.f32.mrb[0].mxu0
    %v1322 = vadd.f32 0.0, %v1321
    %1323 = vmatprep.mubr.f32.mxu0 %v975
    %1324 = vmatmul.mubr.f32.gmra.mrb[0].mxu0 %v974
    %v1325 = vpop.f32.mrb[0].mxu0
    %v1326 = vadd.f32 0.0, %v1325
    %v1327 = vpop.f32.mrb[0].mxu0
    %v1328 = vadd.f32 0.0, %v1327
    %1329 = vmatprep.mubr.f32.mxu0 %v977
    %1330 = vmatmul.mubr.f32.gmra.mrb[0].mxu0 %v976
    %v1331 = vpop.f32.mrb[0].mxu0
    %v1332 = vadd.f32 0.0, %v1331
    %v1333 = vpop.f32.mrb[0].mxu0
    %v1334 = vadd.f32 0.0, %v1333
    %1335 = vmatprep.mubr.f32.mxu0 %v979
    %1336 = vmatmul.mubr.f32.gmra.mrb[0].mxu0 %v978
    %v1337 = vpop.f32.mrb[0].mxu0
    %v1338 = vadd.f32 0.0, %v1337
    %v1339 = vpop.f32.mrb[0].mxu0
    %v1340 = vadd.f32 0.0, %v1339
    %1341 = vmatprep.mubr.f32.mxu0 %v981
    %1342 = vmatmul.mubr.f32.gmra.mrb[0].mxu0 %v980
    %v1343 = vpop.f32.mrb[0].mxu0
    %v1344 = vadd.f32 0.0, %v1343
    %v1345 = vpop.f32.mrb[0].mxu0
    %v1346 = vadd.f32 0.0, %v1345
    %1347 = vmatprep.mubr.f32.mxu0 %v1111
    %1348 = vmatmul.mubr.f32.gmra.mrb[0].mxu0 %v1110
    %v1349 = vpop.f32.mrb[0].mxu0
    %v1350 = vadd.f32 0.0, %v1349
    %v1351 = vpop.f32.mrb[0].mxu0
    %v1352 = vadd.f32 0.0, %v1351
    %1353 = vdwg.mxu0
    %1354 = vmatprep.subr.mxu0 %v1116
    %1355 = vmatpush1.msra.mxu0 %v1115
    %1356 = vmatprep.subr.mxu0 %v1120
    %1357 = vmatpush1.msra.mxu0 %v1119
    %1358 = vmatprep.subr.mxu0 %v1124
    %1359 = vmatpush1.msra.mxu0 %v1123
    %1360 = vmatprep.subr.mxu0 %v1128
    %1361 = vmatpush1.msra.mxu0 %v1127
    %1362 = vmatprep.subr.mxu0 %v1132
    %1363 = vmatpush1.msra.mxu0 %v1131
    %1364 = vmatprep.subr.mxu0 %v1136
    %1365 = vmatpush1.msra.mxu0 %v1135
    %1366 = vmatprep.subr.mxu0 %v1140
    %1367 = vmatpush1.msra.mxu0 %v1139
    %1368 = vmatprep.subr.mxu0 %v1144
    %1369 = vmatpush1.msra.mxu0 %v1143
    %1370 = vmatprep.subr.mxu0 %v1148
    %1371 = vmatpush1.msra.mxu0 %v1147
    %1372 = vmatprep.subr.mxu0 %v1152
    %1373 = vmatpush1.msra.mxu0 %v1151
    %1374 = vmatprep.subr.mxu0 %v1156
    %1375 = vmatpush1.msra.mxu0 %v1155
    %1376 = vmatprep.subr.mxu0 %v1160
    %1377 = vmatpush1.msra.mxu0 %v1159
    %1378 = vmatprep.subr.mxu0 %v1164
    %1379 = vmatpush1.msra.mxu0 %v1163
    %1380 = vmatprep.subr.mxu0 %v1168
    %1381 = vmatpush1.msra.mxu0 %v1167
    %1382 = vmatprep.subr.mxu0 %v1172
    %1383 = vmatpush1.msra.mxu0 %v1171
    %1384 = vmatprep.subr.mxu0 %v1176
    %1385 = vmatpush1.msra.mxu0 %v1175
    %1386 = vmatprep.subr.mxu0 %v1180
    %1387 = vmatpush1.msra.mxu0 %v1179
    %1388 = vmatprep.subr.mxu0 %v1184
    %1389 = vmatpush1.msra.mxu0 %v1183
    %1390 = vmatprep.subr.mxu0 %v1188
    %1391 = vmatpush1.msra.mxu0 %v1187
    %1392 = vmatprep.subr.mxu0 %v1192
    %1393 = vmatpush1.msra.mxu0 %v1191
    %1394 = vmatprep.subr.mxu0 %v1196
    %1395 = vmatpush1.msra.mxu0 %v1195
    %1396 = vmatprep.subr.mxu0 %v1200
    %1397 = vmatpush1.msra.mxu0 %v1199
    %1398 = vmatprep.subr.mxu0 %v1204
    %1399 = vmatpush1.msra.mxu0 %v1203
    %1400 = vmatprep.subr.mxu0 %v1208
    %1401 = vmatpush1.msra.mxu0 %v1207
    %1402 = vmatprep.subr.mxu0 %v1212
    %1403 = vmatpush1.msra.mxu0 %v1211
    %1404 = vmatprep.subr.mxu0 %v1216
    %1405 = vmatpush1.msra.mxu0 %v1215
    %1406 = vmatprep.subr.mxu0 %v1220
    %1407 = vmatpush1.msra.mxu0 %v1219
    %1408 = vmatprep.subr.mxu0 %v1224
    %1409 = vmatpush1.msra.mxu0 %v1223
    %1410 = vmatprep.subr.mxu0 %v1228
    %1411 = vmatpush1.msra.mxu0 %v1227
    %1412 = vmatprep.subr.mxu0 %v1232
    %1413 = vmatpush1.msra.mxu0 %v1231
    %1414 = vmatprep.subr.mxu0 %v1236
    %1415 = vmatpush1.msra.mxu0 %v1235
    %1416 = vmatprep.subr.mxu0 %v1240
    %1417 = vmatpush1.msra.mxu0 %v1239
    %1418 = vmatprep.mubr.f32.mxu0 %v969
    %1419 = vmatmul.mubr.f32.gmra.mrb[0].mxu0 %v968
    %v1420 = vpop.f32.mrb[0].mxu0
    %v1421 = vadd.f32 0.0, %v1420
    %v1422 = vpop.f32.mrb[0].mxu0
    %v1423 = vadd.f32 0.0, %v1422
    %1424 = vmatprep.mubr.f32.mxu0 %v971
    %1425 = vmatmul.mubr.f32.gmra.mrb[0].mxu0 %v970
    %v1426 = vpop.f32.mrb[0].mxu0
    %v1427 = vadd.f32 0.0, %v1426
    %v1428 = vpop.f32.mrb[0].mxu0
    %v1429 = vadd.f32 0.0, %v1428
    %1430 = vmatprep.mubr.f32.mxu0 %v973
    %1431 = vmatmul.mubr.f32.gmra.mrb[0].mxu0 %v972
    %v1432 = vpop.f32.mrb[0].mxu0
    %v1433 = vadd.f32 0.0, %v1432
    %v1434 = vpop.f32.mrb[0].mxu0
    %v1435 = vadd.f32 0.0, %v1434
    %1436 = vmatprep.mubr.f32.mxu0 %v975
    %1437 = vmatmul.mubr.f32.gmra.mrb[0].mxu0 %v974
    %v1438 = vpop.f32.mrb[0].mxu0
    %v1439 = vadd.f32 0.0, %v1438
    %v1440 = vpop.f32.mrb[0].mxu0
    %v1441 = vadd.f32 0.0, %v1440
    %1442 = vmatprep.mubr.f32.mxu0 %v977
    %1443 = vmatmul.mubr.f32.gmra.mrb[0].mxu0 %v976
    %v1444 = vpop.f32.mrb[0].mxu0
    %v1445 = vadd.f32 0.0, %v1444
    %v1446 = vpop.f32.mrb[0].mxu0
    %v1447 = vadd.f32 0.0, %v1446
    %1448 = vmatprep.mubr.f32.mxu0 %v979
    %1449 = vmatmul.mubr.f32.gmra.mrb[0].mxu0 %v978
    %v1450 = vpop.f32.mrb[0].mxu0
    %v1451 = vadd.f32 0.0, %v1450
    %v1452 = vpop.f32.mrb[0].mxu0
    %v1453 = vadd.f32 0.0, %v1452
    %1454 = vmatprep.mubr.f32.mxu0 %v981
    %1455 = vmatmul.mubr.f32.gmra.mrb[0].mxu0 %v980
    %v1456 = vpop.f32.mrb[0].mxu0
    %v1457 = vadd.f32 0.0, %v1456
    %v1458 = vpop.f32.mrb[0].mxu0
    %v1459 = vadd.f32 0.0, %v1458
    %1460 = vmatprep.mubr.f32.mxu0 %v1111
    %1461 = vmatmul.mubr.f32.gmra.mrb[0].mxu0 %v1110
    %v1462 = vpop.f32.mrb[0].mxu0
    %v1463 = vadd.f32 0.0, %v1462
    %v1464 = vpop.f32.mrb[0].mxu0
    %v1465 = vadd.f32 0.0, %v1464
    %1466 = vdwg.mxu0
    %1467 = vmatprep.subr.mxu0 %v983
    %1468 = vmatpush1.msra.mxu0 %v982
    %1469 = vmatprep.subr.mxu0 %v987
    %1470 = vmatpush1.msra.mxu0 %v986
    %1471 = vmatprep.subr.mxu0 %v991
    %1472 = vmatpush1.msra.mxu0 %v990
    %1473 = vmatprep.subr.mxu0 %v995
    %1474 = vmatpush1.msra.mxu0 %v994
    %1475 = vmatprep.subr.mxu0 %v999
    %1476 = vmatpush1.msra.mxu0 %v998
    %1477 = vmatprep.subr.mxu0 %v1003
    %1478 = vmatpush1.msra.mxu0 %v1002
    %1479 = vmatprep.subr.mxu0 %v1007
    %1480 = vmatpush1.msra.mxu0 %v1006
    %1481 = vmatprep.subr.mxu0 %v1011
    %1482 = vmatpush1.msra.mxu0 %v1010
    %1483 = vmatprep.subr.mxu0 %v1015
    %1484 = vmatpush1.msra.mxu0 %v1014
    %1485 = vmatprep.subr.mxu0 %v1019
    %1486 = vmatpush1.msra.mxu0 %v1018
    %1487 = vmatprep.subr.mxu0 %v1023
    %1488 = vmatpush1.msra.mxu0 %v1022
    %1489 = vmatprep.subr.mxu0 %v1027
    %1490 = vmatpush1.msra.mxu0 %v1026
    %1491 = vmatprep.subr.mxu0 %v1031
    %1492 = vmatpush1.msra.mxu0 %v1030
    %1493 = vmatprep.subr.mxu0 %v1035
    %1494 = vmatpush1.msra.mxu0 %v1034
    %1495 = vmatprep.subr.mxu0 %v1039
    %1496 = vmatpush1.msra.mxu0 %v1038
    %1497 = vmatprep.subr.mxu0 %v1043
    %1498 = vmatpush1.msra.mxu0 %v1042
    %1499 = vmatprep.subr.mxu0 %v1047
    %1500 = vmatpush1.msra.mxu0 %v1046
    %1501 = vmatprep.subr.mxu0 %v1051
    %1502 = vmatpush1.msra.mxu0 %v1050
    %1503 = vmatprep.subr.mxu0 %v1055
    %1504 = vmatpush1.msra.mxu0 %v1054
    %1505 = vmatprep.subr.mxu0 %v1059
    %1506 = vmatpush1.msra.mxu0 %v1058
    %1507 = vmatprep.subr.mxu0 %v1063
    %1508 = vmatpush1.msra.mxu0 %v1062
    %1509 = vmatprep.subr.mxu0 %v1067
    %1510 = vmatpush1.msra.mxu0 %v1066
    %1511 = vmatprep.subr.mxu0 %v1071
    %1512 = vmatpush1.msra.mxu0 %v1070
    %1513 = vmatprep.subr.mxu0 %v1075
    %1514 = vmatpush1.msra.mxu0 %v1074
    %1515 = vmatprep.subr.mxu0 %v1079
    %1516 = vmatpush1.msra.mxu0 %v1078
    %1517 = vmatprep.subr.mxu0 %v1083
    %1518 = vmatpush1.msra.mxu0 %v1082
    %1519 = vmatprep.subr.mxu0 %v1087
    %1520 = vmatpush1.msra.mxu0 %v1086
    %1521 = vmatprep.subr.mxu0 %v1091
    %1522 = vmatpush1.msra.mxu0 %v1090
    %1523 = vmatprep.subr.mxu0 %v1095
    %1524 = vmatpush1.msra.mxu0 %v1094
    %1525 = vmatprep.subr.mxu0 %v1099
    %1526 = vmatpush1.msra.mxu0 %v1098
    %1527 = vmatprep.subr.mxu0 %v1103
    %1528 = vmatpush1.msra.mxu0 %v1102
    %1529 = vmatprep.subr.mxu0 %v1107
    %1530 = vmatpush1.msra.mxu0 %v1106
    %1531 = vmatprep.mubr.f32.mxu0 %v967
    %1532 = vmatmul.mubr.f32.gmra.mrb[0].mxu0 %v966
    %v1533 = vpop.f32.mrb[0].mxu0
    %v1534 = vadd.f32 %v1308, %v1533
    %v1535 = vpop.f32.mrb[0].mxu0
    %v1536 = vadd.f32 %v1310, %v1535
    %1537 = vmatprep.mubr.f32.mxu0 %v969
    %1538 = vmatmul.mubr.f32.gmra.mrb[0].mxu0 %v968
    %v1539 = vpop.f32.mrb[0].mxu0
    %v1540 = vadd.f32 %v1314, %v1539
    %v1541 = vpop.f32.mrb[0].mxu0
    %v1542 = vadd.f32 %v1316, %v1541
    %1543 = vmatprep.mubr.f32.mxu0 %v971
    %1544 = vmatmul.mubr.f32.gmra.mrb[0].mxu0 %v970
    %v1545 = vpop.f32.mrb[0].mxu0
    %v1546 = vadd.f32 %v1320, %v1545
    %v1547 = vpop.f32.mrb[0].mxu0
    %v1548 = vadd.f32 %v1322, %v1547
    %1549 = vmatprep.mubr.f32.mxu0 %v973
    %1550 = vmatmul.mubr.f32.gmra.mrb[0].mxu0 %v972
    %v1551 = vpop.f32.mrb[0].mxu0
    %v1552 = vadd.f32 %v1326, %v1551
    %v1553 = vpop.f32.mrb[0].mxu0
    %v1554 = vadd.f32 %v1328, %v1553
    %1555 = vmatprep.mubr.f32.mxu0 %v975
    %1556 = vmatmul.mubr.f32.gmra.mrb[0].mxu0 %v974
    %v1557 = vpop.f32.mrb[0].mxu0
    %v1558 = vadd.f32 %v1332, %v1557
    %v1559 = vpop.f32.mrb[0].mxu0
    %v1560 = vadd.f32 %v1334, %v1559
    %1561 = vmatprep.mubr.f32.mxu0 %v977
    %1562 = vmatmul.mubr.f32.gmra.mrb[0].mxu0 %v976
    %v1563 = vpop.f32.mrb[0].mxu0
    %v1564 = vadd.f32 %v1338, %v1563
    %v1565 = vpop.f32.mrb[0].mxu0
    %v1566 = vadd.f32 %v1340, %v1565
    %1567 = vmatprep.mubr.f32.mxu0 %v979
    %1568 = vmatmul.mubr.f32.gmra.mrb[0].mxu0 %v978
    %v1569 = vpop.f32.mrb[0].mxu0
    %v1570 = vadd.f32 %v1344, %v1569
    %v1571 = vpop.f32.mrb[0].mxu0
    %v1572 = vadd.f32 %v1346, %v1571
    %1573 = vmatprep.mubr.f32.mxu0 %v981
    %1574 = vmatmul.mubr.f32.gmra.mrb[0].mxu0 %v980
    %v1575 = vpop.f32.mrb[0].mxu0
    %v1576 = vadd.f32 %v1350, %v1575
    %v1577 = vpop.f32.mrb[0].mxu0
    %v1578 = vadd.f32 %v1352, %v1577
    %1579 = vdwg.mxu0
    %1580 = vmatprep.subr.mxu0 %v985
    %1581 = vmatpush1.msra.mxu0 %v984
    %1582 = vmatprep.subr.mxu0 %v989
    %1583 = vmatpush1.msra.mxu0 %v988
    %1584 = vmatprep.subr.mxu0 %v993
    %1585 = vmatpush1.msra.mxu0 %v992
    %1586 = vmatprep.subr.mxu0 %v997
    %1587 = vmatpush1.msra.mxu0 %v996
    %1588 = vmatprep.subr.mxu0 %v1001
    %1589 = vmatpush1.msra.mxu0 %v1000
    %1590 = vmatprep.subr.mxu0 %v1005
    %1591 = vmatpush1.msra.mxu0 %v1004
    %1592 = vmatprep.subr.mxu0 %v1009
    %1593 = vmatpush1.msra.mxu0 %v1008
    %1594 = vmatprep.subr.mxu0 %v1013
    %1595 = vmatpush1.msra.mxu0 %v1012
    %1596 = vmatprep.subr.mxu0 %v1017
    %1597 = vmatpush1.msra.mxu0 %v1016
    %1598 = vmatprep.subr.mxu0 %v1021
    %1599 = vmatpush1.msra.mxu0 %v1020
    %1600 = vmatprep.subr.mxu0 %v1025
    %1601 = vmatpush1.msra.mxu0 %v1024
    %1602 = vmatprep.subr.mxu0 %v1029
    %1603 = vmatpush1.msra.mxu0 %v1028
    %1604 = vmatprep.subr.mxu0 %v1033
    %1605 = vmatpush1.msra.mxu0 %v1032
    %1606 = vmatprep.subr.mxu0 %v1037
    %1607 = vmatpush1.msra.mxu0 %v1036
    %1608 = vmatprep.subr.mxu0 %v1041
    %1609 = vmatpush1.msra.mxu0 %v1040
    %1610 = vmatprep.subr.mxu0 %v1045
    %1611 = vmatpush1.msra.mxu0 %v1044
    %1612 = vmatprep.subr.mxu0 %v1049
    %1613 = vmatpush1.msra.mxu0 %v1048
    %1614 = vmatprep.subr.mxu0 %v1053
    %1615 = vmatpush1.msra.mxu0 %v1052
    %1616 = vmatprep.subr.mxu0 %v1057
    %1617 = vmatpush1.msra.mxu0 %v1056
    %1618 = vmatprep.subr.mxu0 %v1061
    %1619 = vmatpush1.msra.mxu0 %v1060
    %1620 = vmatprep.subr.mxu0 %v1065
    %1621 = vmatpush1.msra.mxu0 %v1064
    %1622 = vmatprep.subr.mxu0 %v1069
    %1623 = vmatpush1.msra.mxu0 %v1068
    %1624 = vmatprep.subr.mxu0 %v1073
    %1625 = vmatpush1.msra.mxu0 %v1072
    %1626 = vmatprep.subr.mxu0 %v1077
    %1627 = vmatpush1.msra.mxu0 %v1076
    %1628 = vmatprep.subr.mxu0 %v1081
    %1629 = vmatpush1.msra.mxu0 %v1080
    %1630 = vmatprep.subr.mxu0 %v1085
    %1631 = vmatpush1.msra.mxu0 %v1084
    %1632 = vmatprep.subr.mxu0 %v1089
    %1633 = vmatpush1.msra.mxu0 %v1088
    %1634 = vmatprep.subr.mxu0 %v1093
    %1635 = vmatpush1.msra.mxu0 %v1092
    %1636 = vmatprep.subr.mxu0 %v1097
    %1637 = vmatpush1.msra.mxu0 %v1096
    %1638 = vmatprep.subr.mxu0 %v1101
    %1639 = vmatpush1.msra.mxu0 %v1100
    %1640 = vmatprep.subr.mxu0 %v1105
    %1641 = vmatpush1.msra.mxu0 %v1104
    %1642 = vmatprep.subr.mxu0 %v1109
    %1643 = vmatpush1.msra.mxu0 %v1108
    %1644 = vmatprep.mubr.f32.mxu0 %v967
    %1645 = vmatmul.mubr.f32.gmra.mrb[0].mxu0 %v966
    %v1646 = vpop.f32.mrb[0].mxu0
    %v1647 = vadd.f32 %v1421, %v1646
    %v1648 = vpop.f32.mrb[0].mxu0
    %v1649 = vadd.f32 %v1423, %v1648
    %1650 = vmatprep.mubr.f32.mxu0 %v969
    %1651 = vmatmul.mubr.f32.gmra.mrb[0].mxu0 %v968
    %v1652 = vpop.f32.mrb[0].mxu0
    %v1653 = vadd.f32 %v1427, %v1652
    %v1654 = vpop.f32.mrb[0].mxu0
    %v1655 = vadd.f32 %v1429, %v1654
    %1656 = vmatprep.mubr.f32.mxu0 %v971
    %1657 = vmatmul.mubr.f32.gmra.mrb[0].mxu0 %v970
    %v1658 = vpop.f32.mrb[0].mxu0
    %v1659 = vadd.f32 %v1433, %v1658
    %v1660 = vpop.f32.mrb[0].mxu0
    %v1661 = vadd.f32 %v1435, %v1660
    %1662 = vmatprep.mubr.f32.mxu0 %v973
    %1663 = vmatmul.mubr.f32.gmra.mrb[0].mxu0 %v972
    %v1664 = vpop.f32.mrb[0].mxu0
    %v1665 = vadd.f32 %v1439, %v1664
    %v1666 = vpop.f32.mrb[0].mxu0
    %v1667 = vadd.f32 %v1441, %v1666
    %1668 = vmatprep.mubr.f32.mxu0 %v975
    %1669 = vmatmul.mubr.f32.gmra.mrb[0].mxu0 %v974
    %v1670 = vpop.f32.mrb[0].mxu0
    %v1671 = vadd.f32 %v1445, %v1670
    %v1672 = vpop.f32.mrb[0].mxu0
    %v1673 = vadd.f32 %v1447, %v1672
    %1674 = vmatprep.mubr.f32.mxu0 %v977
    %1675 = vmatmul.mubr.f32.gmra.mrb[0].mxu0 %v976
    %v1676 = vpop.f32.mrb[0].mxu0
    %v1677 = vadd.f32 %v1451, %v1676
    %v1678 = vpop.f32.mrb[0].mxu0
    %v1679 = vadd.f32 %v1453, %v1678
    %1680 = vmatprep.mubr.f32.mxu0 %v979
    %1681 = vmatmul.mubr.f32.gmra.mrb[0].mxu0 %v978
    %v1682 = vpop.f32.mrb[0].mxu0
    %v1683 = vadd.f32 %v1457, %v1682
    %v1684 = vpop.f32.mrb[0].mxu0
    %v1685 = vadd.f32 %v1459, %v1684
    %1686 = vmatprep.mubr.f32.mxu0 %v981
    %1687 = vmatmul.mubr.f32.gmra.mrb[0].mxu0 %v980
    %v1688 = vpop.f32.mrb[0].mxu0
    %v1689 = vadd.f32 %v1463, %v1688
    %v1690 = vpop.f32.mrb[0].mxu0
    %v1691 = vadd.f32 %v1465, %v1690
    %1692 = vdwg.mxu0
    %v1693 = vld [vmem:[#allocation2 + $0x20] sm:$0xff]
    %v1694 = vld [vmem:[#allocation2 + $0x28] sm:$0xff]
    %v1695 = vld [vmem:[#allocation2 + $0x30] sm:$0xff]
    %v1696 = vld [vmem:[#allocation2 + $0x38] sm:$0xff]
    %v1697 = vld [vmem:[#allocation2 + $0x40] sm:$0xff]
    %v1698 = vld [vmem:[#allocation2 + $0x48] sm:$0xff]
    %v1699 = vld [vmem:[#allocation2 + $0x50] sm:$0xff]
    %v1700 = vld [vmem:[#allocation2 + $0x58] sm:$0xff]
    %v1701 = vld [vmem:[#allocation2 + $0x60] sm:$0xff]
    %v1702 = vld [vmem:[#allocation2 + $0x68] sm:$0xff]
    %v1703 = vld [vmem:[#allocation2 + $0x70] sm:$0xff]
    %v1704 = vld [vmem:[#allocation2 + $0x78] sm:$0xff]
    %v1705 = vld [vmem:[#allocation2 + $0x80] sm:$0xff]
    %v1706 = vld [vmem:[#allocation2 + $0x88] sm:$0xff]
    %v1707 = vld [vmem:[#allocation2 + $0x90] sm:$0xff]
    %v1708 = vld [vmem:[#allocation2 + $0x98] sm:$0xff]
    %s1709 = scalar_lea.vmem [#allocation9], 2048
    %v1710 = vld [vmem:[%s1709] sm:$0xff]
    %v1711 = vld [vmem:[%s1709 + $0x8] sm:$0xff]
    %v1712 = vld [vmem:[%s1709 + $0x10] sm:$0xff]
    %v1713 = vld [vmem:[%s1709 + $0x18] sm:$0xff]
    %v1714 = vld [vmem:[%s1709 + $0x20] sm:$0xff]
    %v1715 = vld [vmem:[%s1709 + $0x28] sm:$0xff]
    %v1716 = vld [vmem:[%s1709 + $0x30] sm:$0xff]
    %v1717 = vld [vmem:[%s1709 + $0x38] sm:$0xff]
    %v1718 = vld [vmem:[%s1709 + $0x40] sm:$0xff]
    %v1719 = vld [vmem:[%s1709 + $0x48] sm:$0xff]
    %v1720 = vld [vmem:[%s1709 + $0x50] sm:$0xff]
    %v1721 = vld [vmem:[%s1709 + $0x58] sm:$0xff]
    %v1722 = vld [vmem:[%s1709 + $0x60] sm:$0xff]
    %v1723 = vld [vmem:[%s1709 + $0x68] sm:$0xff]
    %v1724 = vld [vmem:[%s1709 + $0x70] sm:$0xff]
    %v1725 = vld [vmem:[%s1709 + $0x78] sm:$0xff]
    %v1726 = vld [vmem:[%s1709 + $0x80] sm:$0xff]
    %v1727 = vld [vmem:[%s1709 + $0x88] sm:$0xff]
    %v1728 = vld [vmem:[%s1709 + $0x90] sm:$0xff]
    %v1729 = vld [vmem:[%s1709 + $0x98] sm:$0xff]
    %v1730 = vld [vmem:[%s1709 + $0xa0] sm:$0xff]
    %v1731 = vld [vmem:[%s1709 + $0xa8] sm:$0xff]
    %v1732 = vld [vmem:[%s1709 + $0xb0] sm:$0xff]
    %v1733 = vld [vmem:[%s1709 + $0xb8] sm:$0xff]
    %v1734 = vld [vmem:[%s1709 + $0xc0] sm:$0xff]
    %v1735 = vld [vmem:[%s1709 + $0xc8] sm:$0xff]
    %v1736 = vld [vmem:[%s1709 + $0xd0] sm:$0xff]
    %v1737 = vld [vmem:[%s1709 + $0xd8] sm:$0xff]
    %v1738 = vld [vmem:[%s1709 + $0xe0] sm:$0xff]
    %v1739 = vld [vmem:[%s1709 + $0xe8] sm:$0xff]
    %v1740 = vld [vmem:[%s1709 + $0xf0] sm:$0xff]
    %v1741 = vld [vmem:[%s1709 + $0xf8] sm:$0xff]
    %v1742 = vld [vmem:[%s1709 + $0x100] sm:$0xff]
    %v1743 = vld [vmem:[%s1709 + $0x108] sm:$0xff]
    %v1744 = vld [vmem:[%s1709 + $0x110] sm:$0xff]
    %v1745 = vld [vmem:[%s1709 + $0x118] sm:$0xff]
    %v1746 = vld [vmem:[%s1709 + $0x120] sm:$0xff]
    %v1747 = vld [vmem:[%s1709 + $0x128] sm:$0xff]
    %v1748 = vld [vmem:[%s1709 + $0x130] sm:$0xff]
    %v1749 = vld [vmem:[%s1709 + $0x138] sm:$0xff]
    %v1750 = vld [vmem:[%s1709 + $0x140] sm:$0xff]
    %v1751 = vld [vmem:[%s1709 + $0x148] sm:$0xff]
    %v1752 = vld [vmem:[%s1709 + $0x150] sm:$0xff]
    %v1753 = vld [vmem:[%s1709 + $0x158] sm:$0xff]
    %v1754 = vld [vmem:[%s1709 + $0x160] sm:$0xff]
    %v1755 = vld [vmem:[%s1709 + $0x168] sm:$0xff]
    %v1756 = vld [vmem:[%s1709 + $0x170] sm:$0xff]
    %v1757 = vld [vmem:[%s1709 + $0x178] sm:$0xff]
    %v1758 = vld [vmem:[%s1709 + $0x180] sm:$0xff]
    %v1759 = vld [vmem:[%s1709 + $0x188] sm:$0xff]
    %v1760 = vld [vmem:[%s1709 + $0x190] sm:$0xff]
    %v1761 = vld [vmem:[%s1709 + $0x198] sm:$0xff]
    %v1762 = vld [vmem:[%s1709 + $0x1a0] sm:$0xff]
    %v1763 = vld [vmem:[%s1709 + $0x1a8] sm:$0xff]
    %v1764 = vld [vmem:[%s1709 + $0x1b0] sm:$0xff]
    %v1765 = vld [vmem:[%s1709 + $0x1b8] sm:$0xff]
    %v1766 = vld [vmem:[%s1709 + $0x1c0] sm:$0xff]
    %v1767 = vld [vmem:[%s1709 + $0x1c8] sm:$0xff]
    %v1768 = vld [vmem:[%s1709 + $0x1d0] sm:$0xff]
    %v1769 = vld [vmem:[%s1709 + $0x1d8] sm:$0xff]
    %v1770 = vld [vmem:[%s1709 + $0x1e0] sm:$0xff]
    %v1771 = vld [vmem:[%s1709 + $0x1e8] sm:$0xff]
    %v1772 = vld [vmem:[%s1709 + $0x1f0] sm:$0xff]
    %v1773 = vld [vmem:[%s1709 + $0x1f8] sm:$0xff]
    %v1774 = vld [vmem:[%s1709 + $0x200] sm:$0xff]
    %v1775 = vld [vmem:[%s1709 + $0x208] sm:$0xff]
    %v1776 = vld [vmem:[%s1709 + $0x210] sm:$0xff]
    %v1777 = vld [vmem:[%s1709 + $0x218] sm:$0xff]
    %v1778 = vld [vmem:[%s1709 + $0x220] sm:$0xff]
    %v1779 = vld [vmem:[%s1709 + $0x228] sm:$0xff]
    %v1780 = vld [vmem:[%s1709 + $0x230] sm:$0xff]
    %v1781 = vld [vmem:[%s1709 + $0x238] sm:$0xff]
    %v1782 = vld [vmem:[%s1709 + $0x240] sm:$0xff]
    %v1783 = vld [vmem:[%s1709 + $0x248] sm:$0xff]
    %v1784 = vld [vmem:[%s1709 + $0x250] sm:$0xff]
    %v1785 = vld [vmem:[%s1709 + $0x258] sm:$0xff]
    %v1786 = vld [vmem:[%s1709 + $0x260] sm:$0xff]
    %v1787 = vld [vmem:[%s1709 + $0x268] sm:$0xff]
    %v1788 = vld [vmem:[%s1709 + $0x270] sm:$0xff]
    %v1789 = vld [vmem:[%s1709 + $0x278] sm:$0xff]
    %v1790 = vld [vmem:[%s1709 + $0x280] sm:$0xff]
    %v1791 = vld [vmem:[%s1709 + $0x288] sm:$0xff]
    %v1792 = vld [vmem:[%s1709 + $0x290] sm:$0xff]
    %v1793 = vld [vmem:[%s1709 + $0x298] sm:$0xff]
    %v1794 = vld [vmem:[%s1709 + $0x2a0] sm:$0xff]
    %v1795 = vld [vmem:[%s1709 + $0x2a8] sm:$0xff]
    %v1796 = vld [vmem:[%s1709 + $0x2b0] sm:$0xff]
    %v1797 = vld [vmem:[%s1709 + $0x2b8] sm:$0xff]
    %v1798 = vld [vmem:[%s1709 + $0x2c0] sm:$0xff]
    %v1799 = vld [vmem:[%s1709 + $0x2c8] sm:$0xff]
    %v1800 = vld [vmem:[%s1709 + $0x2d0] sm:$0xff]
    %v1801 = vld [vmem:[%s1709 + $0x2d8] sm:$0xff]
    %v1802 = vld [vmem:[%s1709 + $0x2e0] sm:$0xff]
    %v1803 = vld [vmem:[%s1709 + $0x2e8] sm:$0xff]
    %v1804 = vld [vmem:[%s1709 + $0x2f0] sm:$0xff]
    %v1805 = vld [vmem:[%s1709 + $0x2f8] sm:$0xff]
    %v1806 = vld [vmem:[%s1709 + $0x300] sm:$0xff]
    %v1807 = vld [vmem:[%s1709 + $0x308] sm:$0xff]
    %v1808 = vld [vmem:[%s1709 + $0x310] sm:$0xff]
    %v1809 = vld [vmem:[%s1709 + $0x318] sm:$0xff]
    %v1810 = vld [vmem:[%s1709 + $0x320] sm:$0xff]
    %v1811 = vld [vmem:[%s1709 + $0x328] sm:$0xff]
    %v1812 = vld [vmem:[%s1709 + $0x330] sm:$0xff]
    %v1813 = vld [vmem:[%s1709 + $0x338] sm:$0xff]
    %v1814 = vld [vmem:[%s1709 + $0x340] sm:$0xff]
    %v1815 = vld [vmem:[%s1709 + $0x348] sm:$0xff]
    %v1816 = vld [vmem:[%s1709 + $0x350] sm:$0xff]
    %v1817 = vld [vmem:[%s1709 + $0x358] sm:$0xff]
    %v1818 = vld [vmem:[%s1709 + $0x360] sm:$0xff]
    %v1819 = vld [vmem:[%s1709 + $0x368] sm:$0xff]
    %v1820 = vld [vmem:[%s1709 + $0x370] sm:$0xff]
    %v1821 = vld [vmem:[%s1709 + $0x378] sm:$0xff]
    %v1822 = vld [vmem:[%s1709 + $0x380] sm:$0xff]
    %v1823 = vld [vmem:[%s1709 + $0x388] sm:$0xff]
    %v1824 = vld [vmem:[%s1709 + $0x390] sm:$0xff]
    %v1825 = vld [vmem:[%s1709 + $0x398] sm:$0xff]
    %v1826 = vld [vmem:[%s1709 + $0x3a0] sm:$0xff]
    %v1827 = vld [vmem:[%s1709 + $0x3a8] sm:$0xff]
    %v1828 = vld [vmem:[%s1709 + $0x3b0] sm:$0xff]
    %v1829 = vld [vmem:[%s1709 + $0x3b8] sm:$0xff]
    %v1830 = vld [vmem:[%s1709 + $0x3c0] sm:$0xff]
    %v1831 = vld [vmem:[%s1709 + $0x3c8] sm:$0xff]
    %v1832 = vld [vmem:[%s1709 + $0x3d0] sm:$0xff]
    %v1833 = vld [vmem:[%s1709 + $0x3d8] sm:$0xff]
    %v1834 = vld [vmem:[%s1709 + $0x3e0] sm:$0xff]
    %v1835 = vld [vmem:[%s1709 + $0x3e8] sm:$0xff]
    %v1836 = vld [vmem:[%s1709 + $0x3f0] sm:$0xff]
    %v1837 = vld [vmem:[%s1709 + $0x3f8] sm:$0xff]
    %1838 = vmatprep.subr.mxu0 %v1711
    %1839 = vmatpush1.msra.mxu0 %v1710
    %1840 = vmatprep.subr.mxu0 %v1715
    %1841 = vmatpush1.msra.mxu0 %v1714
    %1842 = vmatprep.subr.mxu0 %v1719
    %1843 = vmatpush1.msra.mxu0 %v1718
    %1844 = vmatprep.subr.mxu0 %v1723
    %1845 = vmatpush1.msra.mxu0 %v1722
    %1846 = vmatprep.subr.mxu0 %v1727
    %1847 = vmatpush1.msra.mxu0 %v1726
    %1848 = vmatprep.subr.mxu0 %v1731
    %1849 = vmatpush1.msra.mxu0 %v1730
    %1850 = vmatprep.subr.mxu0 %v1735
    %1851 = vmatpush1.msra.mxu0 %v1734
    %1852 = vmatprep.subr.mxu0 %v1739
    %1853 = vmatpush1.msra.mxu0 %v1738
    %1854 = vmatprep.subr.mxu0 %v1743
    %1855 = vmatpush1.msra.mxu0 %v1742
    %1856 = vmatprep.subr.mxu0 %v1747
    %1857 = vmatpush1.msra.mxu0 %v1746
    %1858 = vmatprep.subr.mxu0 %v1751
    %1859 = vmatpush1.msra.mxu0 %v1750
    %1860 = vmatprep.subr.mxu0 %v1755
    %1861 = vmatpush1.msra.mxu0 %v1754
    %1862 = vmatprep.subr.mxu0 %v1759
    %1863 = vmatpush1.msra.mxu0 %v1758
    %1864 = vmatprep.subr.mxu0 %v1763
    %1865 = vmatpush1.msra.mxu0 %v1762
    %1866 = vmatprep.subr.mxu0 %v1767
    %1867 = vmatpush1.msra.mxu0 %v1766
    %1868 = vmatprep.subr.mxu0 %v1771
    %1869 = vmatpush1.msra.mxu0 %v1770
    %1870 = vmatprep.subr.mxu0 %v1775
    %1871 = vmatpush1.msra.mxu0 %v1774
    %1872 = vmatprep.subr.mxu0 %v1779
    %1873 = vmatpush1.msra.mxu0 %v1778
    %1874 = vmatprep.subr.mxu0 %v1783
    %1875 = vmatpush1.msra.mxu0 %v1782
    %1876 = vmatprep.subr.mxu0 %v1787
    %1877 = vmatpush1.msra.mxu0 %v1786
    %1878 = vmatprep.subr.mxu0 %v1791
    %1879 = vmatpush1.msra.mxu0 %v1790
    %1880 = vmatprep.subr.mxu0 %v1795
    %1881 = vmatpush1.msra.mxu0 %v1794
    %1882 = vmatprep.subr.mxu0 %v1799
    %1883 = vmatpush1.msra.mxu0 %v1798
    %1884 = vmatprep.subr.mxu0 %v1803
    %1885 = vmatpush1.msra.mxu0 %v1802
    %1886 = vmatprep.subr.mxu0 %v1807
    %1887 = vmatpush1.msra.mxu0 %v1806
    %1888 = vmatprep.subr.mxu0 %v1811
    %1889 = vmatpush1.msra.mxu0 %v1810
    %1890 = vmatprep.subr.mxu0 %v1815
    %1891 = vmatpush1.msra.mxu0 %v1814
    %1892 = vmatprep.subr.mxu0 %v1819
    %1893 = vmatpush1.msra.mxu0 %v1818
    %1894 = vmatprep.subr.mxu0 %v1823
    %1895 = vmatpush1.msra.mxu0 %v1822
    %1896 = vmatprep.subr.mxu0 %v1827
    %1897 = vmatpush1.msra.mxu0 %v1826
    %1898 = vmatprep.subr.mxu0 %v1831
    %1899 = vmatpush1.msra.mxu0 %v1830
    %1900 = vmatprep.subr.mxu0 %v1835
    %1901 = vmatpush1.msra.mxu0 %v1834
    %1902 = vmatprep.mubr.f32.mxu0 %v1694
    %1903 = vmatmul.mubr.f32.gmra.mrb[0].mxu0 %v1693
    %v1904 = vpop.f32.mrb[0].mxu0
    %v1905 = vadd.f32 0.0, %v1904
    %v1906 = vpop.f32.mrb[0].mxu0
    %v1907 = vadd.f32 0.0, %v1906
    %1908 = vmatprep.mubr.f32.mxu0 %v1696
    %1909 = vmatmul.mubr.f32.gmra.mrb[0].mxu0 %v1695
    %v1910 = vpop.f32.mrb[0].mxu0
    %v1911 = vadd.f32 0.0, %v1910
    %v1912 = vpop.f32.mrb[0].mxu0
    %v1913 = vadd.f32 0.0, %v1912
    %1914 = vmatprep.mubr.f32.mxu0 %v1698
    %1915 = vmatmul.mubr.f32.gmra.mrb[0].mxu0 %v1697
    %v1916 = vpop.f32.mrb[0].mxu0
    %v1917 = vadd.f32 0.0, %v1916
    %v1918 = vpop.f32.mrb[0].mxu0
    %v1919 = vadd.f32 0.0, %v1918
    %1920 = vmatprep.mubr.f32.mxu0 %v1700
    %1921 = vmatmul.mubr.f32.gmra.mrb[0].mxu0 %v1699
    %v1922 = vpop.f32.mrb[0].mxu0
    %v1923 = vadd.f32 0.0, %v1922
    %v1924 = vpop.f32.mrb[0].mxu0
    %v1925 = vadd.f32 0.0, %v1924
    %1926 = vmatprep.mubr.f32.mxu0 %v1702
    %1927 = vmatmul.mubr.f32.gmra.mrb[0].mxu0 %v1701
    %v1928 = vpop.f32.mrb[0].mxu0
    %v1929 = vadd.f32 0.0, %v1928
    %v1930 = vpop.f32.mrb[0].mxu0
    %v1931 = vadd.f32 0.0, %v1930
    %1932 = vmatprep.mubr.f32.mxu0 %v1704
    %1933 = vmatmul.mubr.f32.gmra.mrb[0].mxu0 %v1703
    %v1934 = vpop.f32.mrb[0].mxu0
    %v1935 = vadd.f32 0.0, %v1934
    %v1936 = vpop.f32.mrb[0].mxu0
    %v1937 = vadd.f32 0.0, %v1936
    %1938 = vmatprep.mubr.f32.mxu0 %v1706
    %1939 = vmatmul.mubr.f32.gmra.mrb[0].mxu0 %v1705
    %v1940 = vpop.f32.mrb[0].mxu0
    %v1941 = vadd.f32 0.0, %v1940
    %v1942 = vpop.f32.mrb[0].mxu0
    %v1943 = vadd.f32 0.0, %v1942
    %1944 = vmatprep.mubr.f32.mxu0 %v1708
    %1945 = vmatmul.mubr.f32.gmra.mrb[0].mxu0 %v1707
    %v1946 = vpop.f32.mrb[0].mxu0
    %v1947 = vadd.f32 0.0, %v1946
    %v1948 = vpop.f32.mrb[0].mxu0
    %v1949 = vadd.f32 0.0, %v1948
    %1950 = vdwg.mxu0
    %1951 = vmatprep.subr.mxu0 %v1713
    %1952 = vmatpush1.msra.mxu0 %v1712
    %1953 = vmatprep.subr.mxu0 %v1717
    %1954 = vmatpush1.msra.mxu0 %v1716
    %1955 = vmatprep.subr.mxu0 %v1721
    %1956 = vmatpush1.msra.mxu0 %v1720
    %1957 = vmatprep.subr.mxu0 %v1725
    %1958 = vmatpush1.msra.mxu0 %v1724
    %1959 = vmatprep.subr.mxu0 %v1729
    %1960 = vmatpush1.msra.mxu0 %v1728
    %1961 = vmatprep.subr.mxu0 %v1733
    %1962 = vmatpush1.msra.mxu0 %v1732
    %1963 = vmatprep.subr.mxu0 %v1737
    %1964 = vmatpush1.msra.mxu0 %v1736
    %1965 = vmatprep.subr.mxu0 %v1741
    %1966 = vmatpush1.msra.mxu0 %v1740
    %1967 = vmatprep.subr.mxu0 %v1745
    %1968 = vmatpush1.msra.mxu0 %v1744
    %1969 = vmatprep.subr.mxu0 %v1749
    %1970 = vmatpush1.msra.mxu0 %v1748
    %1971 = vmatprep.subr.mxu0 %v1753
    %1972 = vmatpush1.msra.mxu0 %v1752
    %1973 = vmatprep.subr.mxu0 %v1757
    %1974 = vmatpush1.msra.mxu0 %v1756
    %1975 = vmatprep.subr.mxu0 %v1761
    %1976 = vmatpush1.msra.mxu0 %v1760
    %1977 = vmatprep.subr.mxu0 %v1765
    %1978 = vmatpush1.msra.mxu0 %v1764
    %1979 = vmatprep.subr.mxu0 %v1769
    %1980 = vmatpush1.msra.mxu0 %v1768
    %1981 = vmatprep.subr.mxu0 %v1773
    %1982 = vmatpush1.msra.mxu0 %v1772
    %1983 = vmatprep.subr.mxu0 %v1777
    %1984 = vmatpush1.msra.mxu0 %v1776
    %1985 = vmatprep.subr.mxu0 %v1781
    %1986 = vmatpush1.msra.mxu0 %v1780
    %1987 = vmatprep.subr.mxu0 %v1785
    %1988 = vmatpush1.msra.mxu0 %v1784
    %1989 = vmatprep.subr.mxu0 %v1789
    %1990 = vmatpush1.msra.mxu0 %v1788
    %1991 = vmatprep.subr.mxu0 %v1793
    %1992 = vmatpush1.msra.mxu0 %v1792
    %1993 = vmatprep.subr.mxu0 %v1797
    %1994 = vmatpush1.msra.mxu0 %v1796
    %1995 = vmatprep.subr.mxu0 %v1801
    %1996 = vmatpush1.msra.mxu0 %v1800
    %1997 = vmatprep.subr.mxu0 %v1805
    %1998 = vmatpush1.msra.mxu0 %v1804
    %1999 = vmatprep.subr.mxu0 %v1809
    %2000 = vmatpush1.msra.mxu0 %v1808
    %2001 = vmatprep.subr.mxu0 %v1813
    %2002 = vmatpush1.msra.mxu0 %v1812
    %2003 = vmatprep.subr.mxu0 %v1817
    %2004 = vmatpush1.msra.mxu0 %v1816
    %2005 = vmatprep.subr.mxu0 %v1821
    %2006 = vmatpush1.msra.mxu0 %v1820
    %2007 = vmatprep.subr.mxu0 %v1825
    %2008 = vmatpush1.msra.mxu0 %v1824
    %2009 = vmatprep.subr.mxu0 %v1829
    %2010 = vmatpush1.msra.mxu0 %v1828
    %2011 = vmatprep.subr.mxu0 %v1833
    %2012 = vmatpush1.msra.mxu0 %v1832
    %2013 = vmatprep.subr.mxu0 %v1837
    %2014 = vmatpush1.msra.mxu0 %v1836
    %2015 = vmatprep.mubr.f32.mxu0 %v1694
    %2016 = vmatmul.mubr.f32.gmra.mrb[0].mxu0 %v1693
    %v2017 = vpop.f32.mrb[0].mxu0
    %v2018 = vadd.f32 0.0, %v2017
    %v2019 = vpop.f32.mrb[0].mxu0
    %v2020 = vadd.f32 0.0, %v2019
    %2021 = vmatprep.mubr.f32.mxu0 %v1696
    %2022 = vmatmul.mubr.f32.gmra.mrb[0].mxu0 %v1695
    %v2023 = vpop.f32.mrb[0].mxu0
    %v2024 = vadd.f32 0.0, %v2023
    %v2025 = vpop.f32.mrb[0].mxu0
    %v2026 = vadd.f32 0.0, %v2025
    %2027 = vmatprep.mubr.f32.mxu0 %v1698
    %2028 = vmatmul.mubr.f32.gmra.mrb[0].mxu0 %v1697
    %v2029 = vpop.f32.mrb[0].mxu0
    %v2030 = vadd.f32 0.0, %v2029
    %v2031 = vpop.f32.mrb[0].mxu0
    %v2032 = vadd.f32 0.0, %v2031
    %2033 = vmatprep.mubr.f32.mxu0 %v1700
    %2034 = vmatmul.mubr.f32.gmra.mrb[0].mxu0 %v1699
    %v2035 = vpop.f32.mrb[0].mxu0
    %v2036 = vadd.f32 0.0, %v2035
    %v2037 = vpop.f32.mrb[0].mxu0
    %v2038 = vadd.f32 0.0, %v2037
    %2039 = vmatprep.mubr.f32.mxu0 %v1702
    %2040 = vmatmul.mubr.f32.gmra.mrb[0].mxu0 %v1701
    %v2041 = vpop.f32.mrb[0].mxu0
    %v2042 = vadd.f32 0.0, %v2041
    %v2043 = vpop.f32.mrb[0].mxu0
    %v2044 = vadd.f32 0.0, %v2043
    %2045 = vmatprep.mubr.f32.mxu0 %v1704
    %2046 = vmatmul.mubr.f32.gmra.mrb[0].mxu0 %v1703
    %v2047 = vpop.f32.mrb[0].mxu0
    %v2048 = vadd.f32 0.0, %v2047
    %v2049 = vpop.f32.mrb[0].mxu0
    %v2050 = vadd.f32 0.0, %v2049
    %2051 = vmatprep.mubr.f32.mxu0 %v1706
    %2052 = vmatmul.mubr.f32.gmra.mrb[0].mxu0 %v1705
    %v2053 = vpop.f32.mrb[0].mxu0
    %v2054 = vadd.f32 0.0, %v2053
    %v2055 = vpop.f32.mrb[0].mxu0
    %v2056 = vadd.f32 0.0, %v2055
    %2057 = vmatprep.mubr.f32.mxu0 %v1708
    %2058 = vmatmul.mubr.f32.gmra.mrb[0].mxu0 %v1707
    %v2059 = vpop.f32.mrb[0].mxu0
    %v2060 = vadd.f32 0.0, %v2059
    %v2061 = vpop.f32.mrb[0].mxu0
    %v2062 = vadd.f32 0.0, %v2061
    %2063 = vdwg.mxu0
    %v2064 = vadd.f32 %v1534, %v1905
    %v2065 = vadd.f32 %v1536, %v1907
    %v2066 = vadd.f32 %v1647, %v2018
    %v2067 = vadd.f32 %v1649, %v2020
    %v2068 = vadd.f32 %v1540, %v1911
    %v2069 = vadd.f32 %v1542, %v1913
    %v2070 = vadd.f32 %v1653, %v2024
    %v2071 = vadd.f32 %v1655, %v2026
    %v2072 = vadd.f32 %v1546, %v1917
    %v2073 = vadd.f32 %v1548, %v1919
    %v2074 = vadd.f32 %v1659, %v2030
    %v2075 = vadd.f32 %v1661, %v2032
    %v2076 = vadd.f32 %v1552, %v1923
    %v2077 = vadd.f32 %v1554, %v1925
    %v2078 = vadd.f32 %v1665, %v2036
    %v2079 = vadd.f32 %v1667, %v2038
    %v2080 = vadd.f32 %v1558, %v1929
    %v2081 = vadd.f32 %v1560, %v1931
    %v2082 = vadd.f32 %v1671, %v2042
    %v2083 = vadd.f32 %v1673, %v2044
    %v2084 = vadd.f32 %v1564, %v1935
    %v2085 = vadd.f32 %v1566, %v1937
    %v2086 = vadd.f32 %v1677, %v2048
    %v2087 = vadd.f32 %v1679, %v2050
    %v2088 = vadd.f32 %v1570, %v1941
    %v2089 = vadd.f32 %v1572, %v1943
    %v2090 = vadd.f32 %v1683, %v2054
    %v2091 = vadd.f32 %v1685, %v2056
    %v2092 = vadd.f32 %v1576, %v1947
    %v2093 = vadd.f32 %v1578, %v1949
    %v2094 = vadd.f32 %v1689, %v2060
    %v2095 = vadd.f32 %v1691, %v2062
    %v2096 = vld [vmem:[#allocation11] sm:$0xf]
    %v2098 = vlaneseq
    %v2099 = vshrl.u32 %v2098, 7
    %v2100 = vsub.s32 0, %v2099
    %v2101 = vrot.slane %v2096, %v2100
    %v2102 = vlaneseq
    %v2103 = vshrl.u32 %v2102, 7
    %v2104 = vsub.s32 1, %v2103
    %v2105 = vrot.slane %v2096, %v2104
    %v2106 = vlaneseq
    %v2107 = vshrl.u32 %v2106, 7
    %v2108 = vsub.s32 2, %v2107
    %v2109 = vrot.slane %v2096, %v2108
    %v2110 = vlaneseq
    %v2111 = vshrl.u32 %v2110, 7
    %v2112 = vsub.s32 3, %v2111
    %v2113 = vrot.slane %v2096, %v2112
    %v2118 = vadd.f32 %v2064, %v2101
    %v2119 = vadd.f32 %v2065, %v2105
    %v2120 = vadd.f32 %v2066, %v2109
    %v2121 = vadd.f32 %v2067, %v2113
    %v2122 = vadd.f32 %v2068, %v2101
    %v2123 = vadd.f32 %v2069, %v2105
    %v2124 = vadd.f32 %v2070, %v2109
    %v2125 = vadd.f32 %v2071, %v2113
    %v2126 = vadd.f32 %v2072, %v2101
    %v2127 = vadd.f32 %v2073, %v2105
    %v2128 = vadd.f32 %v2074, %v2109
    %v2129 = vadd.f32 %v2075, %v2113
    %v2130 = vadd.f32 %v2076, %v2101
    %v2131 = vadd.f32 %v2077, %v2105
    %v2132 = vadd.f32 %v2078, %v2109
    %v2133 = vadd.f32 %v2079, %v2113
    %v2134 = vadd.f32 %v2080, %v2101
    %v2135 = vadd.f32 %v2081, %v2105
    %v2136 = vadd.f32 %v2082, %v2109
    %v2137 = vadd.f32 %v2083, %v2113
    %v2138 = vadd.f32 %v2084, %v2101
    %v2139 = vadd.f32 %v2085, %v2105
    %v2140 = vadd.f32 %v2086, %v2109
    %v2141 = vadd.f32 %v2087, %v2113
    %v2142 = vadd.f32 %v2088, %v2101
    %v2143 = vadd.f32 %v2089, %v2105
    %v2144 = vadd.f32 %v2090, %v2109
    %v2145 = vadd.f32 %v2091, %v2113
    %v2146 = vadd.f32 %v2092, %v2101
    %v2147 = vadd.f32 %v2093, %v2105
    %v2148 = vadd.f32 %v2094, %v2109
    %v2149 = vadd.f32 %v2095, %v2113
    %v2150 = vmax.f32 %v2118, 0.0
    %v2151 = vmax.f32 %v2119, 0.0
    %v2152 = vmax.f32 %v2120, 0.0
    %v2153 = vmax.f32 %v2121, 0.0
    %v2154 = vmax.f32 %v2122, 0.0
    %v2155 = vmax.f32 %v2123, 0.0
    %v2156 = vmax.f32 %v2124, 0.0
    %v2157 = vmax.f32 %v2125, 0.0
    %v2158 = vmax.f32 %v2126, 0.0
    %v2159 = vmax.f32 %v2127, 0.0
    %v2160 = vmax.f32 %v2128, 0.0
    %v2161 = vmax.f32 %v2129, 0.0
    %v2162 = vmax.f32 %v2130, 0.0
    %v2163 = vmax.f32 %v2131, 0.0
    %v2164 = vmax.f32 %v2132, 0.0
    %v2165 = vmax.f32 %v2133, 0.0
    %v2166 = vmax.f32 %v2134, 0.0
    %v2167 = vmax.f32 %v2135, 0.0
    %v2168 = vmax.f32 %v2136, 0.0
    %v2169 = vmax.f32 %v2137, 0.0
    %v2170 = vmax.f32 %v2138, 0.0
    %v2171 = vmax.f32 %v2139, 0.0
    %v2172 = vmax.f32 %v2140, 0.0
    %v2173 = vmax.f32 %v2141, 0.0
    %v2174 = vmax.f32 %v2142, 0.0
    %v2175 = vmax.f32 %v2143, 0.0
    %v2176 = vmax.f32 %v2144, 0.0
    %v2177 = vmax.f32 %v2145, 0.0
    %v2178 = vmax.f32 %v2146, 0.0
    %v2179 = vmax.f32 %v2147, 0.0
    %v2180 = vmax.f32 %v2148, 0.0
    %v2181 = vmax.f32 %v2149, 0.0
    %v2182 = vld [vmem:[#allocation12] sm:$0xff]
    %v2183 = vld [vmem:[#allocation12 + $0x8] sm:$0xff]
    %v2184 = vld [vmem:[#allocation12 + $0x10] sm:$0xff]
    %v2185 = vld [vmem:[#allocation12 + $0x18] sm:$0xff]
    %v2186 = vld [vmem:[#allocation12 + $0x20] sm:$0xff]
    %v2187 = vld [vmem:[#allocation12 + $0x28] sm:$0xff]
    %v2188 = vld [vmem:[#allocation12 + $0x30] sm:$0xff]
    %v2189 = vld [vmem:[#allocation12 + $0x38] sm:$0xff]
    %v2190 = vld [vmem:[#allocation12 + $0x40] sm:$0xff]
    %v2191 = vld [vmem:[#allocation12 + $0x48] sm:$0xff]
    %v2192 = vld [vmem:[#allocation12 + $0x50] sm:$0xff]
    %v2193 = vld [vmem:[#allocation12 + $0x58] sm:$0xff]
    %v2194 = vld [vmem:[#allocation12 + $0x60] sm:$0xff]
    %v2195 = vld [vmem:[#allocation12 + $0x68] sm:$0xff]
    %v2196 = vld [vmem:[#allocation12 + $0x70] sm:$0xff]
    %v2197 = vld [vmem:[#allocation12 + $0x78] sm:$0xff]
    %v2198 = vld [vmem:[#allocation12 + $0x80] sm:$0xff]
    %v2199 = vld [vmem:[#allocation12 + $0x88] sm:$0xff]
    %v2200 = vld [vmem:[#allocation12 + $0x90] sm:$0xff]
    %v2201 = vld [vmem:[#allocation12 + $0x98] sm:$0xff]
    %v2202 = vld [vmem:[#allocation12 + $0xa0] sm:$0xff]
    %v2203 = vld [vmem:[#allocation12 + $0xa8] sm:$0xff]
    %v2204 = vld [vmem:[#allocation12 + $0xb0] sm:$0xff]
    %v2205 = vld [vmem:[#allocation12 + $0xb8] sm:$0xff]
    %v2206 = vld [vmem:[#allocation12 + $0xc0] sm:$0xff]
    %v2207 = vld [vmem:[#allocation12 + $0xc8] sm:$0xff]
    %v2208 = vld [vmem:[#allocation12 + $0xd0] sm:$0xff]
    %v2209 = vld [vmem:[#allocation12 + $0xd8] sm:$0xff]
    %v2210 = vld [vmem:[#allocation12 + $0xe0] sm:$0xff]
    %v2211 = vld [vmem:[#allocation12 + $0xe8] sm:$0xff]
    %v2212 = vld [vmem:[#allocation12 + $0xf0] sm:$0xff]
    %v2213 = vld [vmem:[#allocation12 + $0xf8] sm:$0xff]
    %v2214 = vld [vmem:[#allocation12 + $0x100] sm:$0xff]
    %v2215 = vld [vmem:[#allocation12 + $0x108] sm:$0xff]
    %v2216 = vld [vmem:[#allocation12 + $0x110] sm:$0xff]
    %v2217 = vld [vmem:[#allocation12 + $0x118] sm:$0xff]
    %v2218 = vld [vmem:[#allocation12 + $0x120] sm:$0xff]
    %v2219 = vld [vmem:[#allocation12 + $0x128] sm:$0xff]
    %v2220 = vld [vmem:[#allocation12 + $0x130] sm:$0xff]
    %v2221 = vld [vmem:[#allocation12 + $0x138] sm:$0xff]
    %v2222 = vld [vmem:[#allocation12 + $0x140] sm:$0xff]
    %v2223 = vld [vmem:[#allocation12 + $0x148] sm:$0xff]
    %v2224 = vld [vmem:[#allocation12 + $0x150] sm:$0xff]
    %v2225 = vld [vmem:[#allocation12 + $0x158] sm:$0xff]
    %v2226 = vld [vmem:[#allocation12 + $0x160] sm:$0xff]
    %v2227 = vld [vmem:[#allocation12 + $0x168] sm:$0xff]
    %v2228 = vld [vmem:[#allocation12 + $0x170] sm:$0xff]
    %v2229 = vld [vmem:[#allocation12 + $0x178] sm:$0xff]
    %v2230 = vld [vmem:[#allocation12 + $0x180] sm:$0xff]
    %v2231 = vld [vmem:[#allocation12 + $0x188] sm:$0xff]
    %v2232 = vld [vmem:[#allocation12 + $0x190] sm:$0xff]
    %v2233 = vld [vmem:[#allocation12 + $0x198] sm:$0xff]
    %v2234 = vld [vmem:[#allocation12 + $0x1a0] sm:$0xff]
    %v2235 = vld [vmem:[#allocation12 + $0x1a8] sm:$0xff]
    %v2236 = vld [vmem:[#allocation12 + $0x1b0] sm:$0xff]
    %v2237 = vld [vmem:[#allocation12 + $0x1b8] sm:$0xff]
    %v2238 = vld [vmem:[#allocation12 + $0x1c0] sm:$0xff]
    %v2239 = vld [vmem:[#allocation12 + $0x1c8] sm:$0xff]
    %v2240 = vld [vmem:[#allocation12 + $0x1d0] sm:$0xff]
    %v2241 = vld [vmem:[#allocation12 + $0x1d8] sm:$0xff]
    %v2242 = vld [vmem:[#allocation12 + $0x1e0] sm:$0xff]
    %v2243 = vld [vmem:[#allocation12 + $0x1e8] sm:$0xff]
    %v2244 = vld [vmem:[#allocation12 + $0x1f0] sm:$0xff]
    %v2245 = vld [vmem:[#allocation12 + $0x1f8] sm:$0xff]
    %s2246 = scalar_lea.vmem [#allocation12], 512
    %v2247 = vld [vmem:[%s2246] sm:$0xff]
    %v2248 = vld [vmem:[%s2246 + $0x8] sm:$0xff]
    %v2249 = vld [vmem:[%s2246 + $0x10] sm:$0xff]
    %v2250 = vld [vmem:[%s2246 + $0x18] sm:$0xff]
    %v2251 = vld [vmem:[%s2246 + $0x20] sm:$0xff]
    %v2252 = vld [vmem:[%s2246 + $0x28] sm:$0xff]
    %v2253 = vld [vmem:[%s2246 + $0x30] sm:$0xff]
    %v2254 = vld [vmem:[%s2246 + $0x38] sm:$0xff]
    %v2255 = vld [vmem:[%s2246 + $0x40] sm:$0xff]
    %v2256 = vld [vmem:[%s2246 + $0x48] sm:$0xff]
    %v2257 = vld [vmem:[%s2246 + $0x50] sm:$0xff]
    %v2258 = vld [vmem:[%s2246 + $0x58] sm:$0xff]
    %v2259 = vld [vmem:[%s2246 + $0x60] sm:$0xff]
    %v2260 = vld [vmem:[%s2246 + $0x68] sm:$0xff]
    %v2261 = vld [vmem:[%s2246 + $0x70] sm:$0xff]
    %v2262 = vld [vmem:[%s2246 + $0x78] sm:$0xff]
    %v2263 = vld [vmem:[%s2246 + $0x80] sm:$0xff]
    %v2264 = vld [vmem:[%s2246 + $0x88] sm:$0xff]
    %v2265 = vld [vmem:[%s2246 + $0x90] sm:$0xff]
    %v2266 = vld [vmem:[%s2246 + $0x98] sm:$0xff]
    %v2267 = vld [vmem:[%s2246 + $0xa0] sm:$0xff]
    %v2268 = vld [vmem:[%s2246 + $0xa8] sm:$0xff]
    %v2269 = vld [vmem:[%s2246 + $0xb0] sm:$0xff]
    %v2270 = vld [vmem:[%s2246 + $0xb8] sm:$0xff]
    %v2271 = vld [vmem:[%s2246 + $0xc0] sm:$0xff]
    %v2272 = vld [vmem:[%s2246 + $0xc8] sm:$0xff]
    %v2273 = vld [vmem:[%s2246 + $0xd0] sm:$0xff]
    %v2274 = vld [vmem:[%s2246 + $0xd8] sm:$0xff]
    %v2275 = vld [vmem:[%s2246 + $0xe0] sm:$0xff]
    %v2276 = vld [vmem:[%s2246 + $0xe8] sm:$0xff]
    %v2277 = vld [vmem:[%s2246 + $0xf0] sm:$0xff]
    %v2278 = vld [vmem:[%s2246 + $0xf8] sm:$0xff]
    %v2279 = vld [vmem:[%s2246 + $0x100] sm:$0xff]
    %v2280 = vld [vmem:[%s2246 + $0x108] sm:$0xff]
    %v2281 = vld [vmem:[%s2246 + $0x110] sm:$0xff]
    %v2282 = vld [vmem:[%s2246 + $0x118] sm:$0xff]
    %v2283 = vld [vmem:[%s2246 + $0x120] sm:$0xff]
    %v2284 = vld [vmem:[%s2246 + $0x128] sm:$0xff]
    %v2285 = vld [vmem:[%s2246 + $0x130] sm:$0xff]
    %v2286 = vld [vmem:[%s2246 + $0x138] sm:$0xff]
    %v2287 = vld [vmem:[%s2246 + $0x140] sm:$0xff]
    %v2288 = vld [vmem:[%s2246 + $0x148] sm:$0xff]
    %v2289 = vld [vmem:[%s2246 + $0x150] sm:$0xff]
    %v2290 = vld [vmem:[%s2246 + $0x158] sm:$0xff]
    %v2291 = vld [vmem:[%s2246 + $0x160] sm:$0xff]
    %v2292 = vld [vmem:[%s2246 + $0x168] sm:$0xff]
    %v2293 = vld [vmem:[%s2246 + $0x170] sm:$0xff]
    %v2294 = vld [vmem:[%s2246 + $0x178] sm:$0xff]
    %v2295 = vld [vmem:[%s2246 + $0x180] sm:$0xff]
    %v2296 = vld [vmem:[%s2246 + $0x188] sm:$0xff]
    %v2297 = vld [vmem:[%s2246 + $0x190] sm:$0xff]
    %v2298 = vld [vmem:[%s2246 + $0x198] sm:$0xff]
    %v2299 = vld [vmem:[%s2246 + $0x1a0] sm:$0xff]
    %v2300 = vld [vmem:[%s2246 + $0x1a8] sm:$0xff]
    %v2301 = vld [vmem:[%s2246 + $0x1b0] sm:$0xff]
    %v2302 = vld [vmem:[%s2246 + $0x1b8] sm:$0xff]
    %v2303 = vld [vmem:[%s2246 + $0x1c0] sm:$0xff]
    %v2304 = vld [vmem:[%s2246 + $0x1c8] sm:$0xff]
    %v2305 = vld [vmem:[%s2246 + $0x1d0] sm:$0xff]
    %v2306 = vld [vmem:[%s2246 + $0x1d8] sm:$0xff]
    %v2307 = vld [vmem:[%s2246 + $0x1e0] sm:$0xff]
    %v2308 = vld [vmem:[%s2246 + $0x1e8] sm:$0xff]
    %v2309 = vld [vmem:[%s2246 + $0x1f0] sm:$0xff]
    %v2310 = vld [vmem:[%s2246 + $0x1f8] sm:$0xff]
    %2311 = vmatprep.subr.mxu0 0.0
    %2312 = vmatpush1.msra.mxu0 %v2247
    %2313 = vmatprep.subr.mxu0 0.0
    %2314 = vmatpush1.msra.mxu0 %v2248
    %2315 = vmatprep.subr.mxu0 0.0
    %2316 = vmatpush1.msra.mxu0 %v2249
    %2317 = vmatprep.subr.mxu0 0.0
    %2318 = vmatpush1.msra.mxu0 %v2250
    %2319 = vmatprep.subr.mxu0 0.0
    %2320 = vmatpush1.msra.mxu0 %v2251
    %2321 = vmatprep.subr.mxu0 0.0
    %2322 = vmatpush1.msra.mxu0 %v2252
    %2323 = vmatprep.subr.mxu0 0.0
    %2324 = vmatpush1.msra.mxu0 %v2253
    %2325 = vmatprep.subr.mxu0 0.0
    %2326 = vmatpush1.msra.mxu0 %v2254
    %2327 = vmatprep.subr.mxu0 0.0
    %2328 = vmatpush1.msra.mxu0 %v2255
    %2329 = vmatprep.subr.mxu0 0.0
    %2330 = vmatpush1.msra.mxu0 %v2256
    %2331 = vmatprep.subr.mxu0 0.0
    %2332 = vmatpush1.msra.mxu0 %v2257
    %2333 = vmatprep.subr.mxu0 0.0
    %2334 = vmatpush1.msra.mxu0 %v2258
    %2335 = vmatprep.subr.mxu0 0.0
    %2336 = vmatpush1.msra.mxu0 %v2259
    %2337 = vmatprep.subr.mxu0 0.0
    %2338 = vmatpush1.msra.mxu0 %v2260
    %2339 = vmatprep.subr.mxu0 0.0
    %2340 = vmatpush1.msra.mxu0 %v2261
    %2341 = vmatprep.subr.mxu0 0.0
    %2342 = vmatpush1.msra.mxu0 %v2262
    %2343 = vmatprep.subr.mxu0 0.0
    %2344 = vmatpush1.msra.mxu0 %v2263
    %2345 = vmatprep.subr.mxu0 0.0
    %2346 = vmatpush1.msra.mxu0 %v2264
    %2347 = vmatprep.subr.mxu0 0.0
    %2348 = vmatpush1.msra.mxu0 %v2265
    %2349 = vmatprep.subr.mxu0 0.0
    %2350 = vmatpush1.msra.mxu0 %v2266
    %2351 = vmatprep.subr.mxu0 0.0
    %2352 = vmatpush1.msra.mxu0 %v2267
    %2353 = vmatprep.subr.mxu0 0.0
    %2354 = vmatpush1.msra.mxu0 %v2268
    %2355 = vmatprep.subr.mxu0 0.0
    %2356 = vmatpush1.msra.mxu0 %v2269
    %2357 = vmatprep.subr.mxu0 0.0
    %2358 = vmatpush1.msra.mxu0 %v2270
    %2359 = vmatprep.subr.mxu0 0.0
    %2360 = vmatpush1.msra.mxu0 %v2271
    %2361 = vmatprep.subr.mxu0 0.0
    %2362 = vmatpush1.msra.mxu0 %v2272
    %2363 = vmatprep.subr.mxu0 0.0
    %2364 = vmatpush1.msra.mxu0 %v2273
    %2365 = vmatprep.subr.mxu0 0.0
    %2366 = vmatpush1.msra.mxu0 %v2274
    %2367 = vmatprep.subr.mxu0 0.0
    %2368 = vmatpush1.msra.mxu0 %v2275
    %2369 = vmatprep.subr.mxu0 0.0
    %2370 = vmatpush1.msra.mxu0 %v2276
    %2371 = vmatprep.subr.mxu0 0.0
    %2372 = vmatpush1.msra.mxu0 %v2277
    %2373 = vmatprep.subr.mxu0 0.0
    %2374 = vmatpush1.msra.mxu0 %v2278
    %2375 = vmatprep.mubr.f32.mxu0 %v2155
    %2376 = vmatmul.mubr.f32.gmra.mrb[0].mxu0 %v2154
    %v2377 = vpop.f32.mrb[0].mxu0
    %v2378 = vadd.f32 0.0, %v2377
    %v2379 = vpop.f32.mrb[0].mxu0
    %2380 = vdwg.mxu0
    %2381 = vmatprep.subr.mxu0 0.0
    %2382 = vmatpush1.msra.mxu0 %v2279
    %2383 = vmatprep.subr.mxu0 0.0
    %2384 = vmatpush1.msra.mxu0 %v2280
    %2385 = vmatprep.subr.mxu0 0.0
    %2386 = vmatpush1.msra.mxu0 %v2281
    %2387 = vmatprep.subr.mxu0 0.0
    %2388 = vmatpush1.msra.mxu0 %v2282
    %2389 = vmatprep.subr.mxu0 0.0
    %2390 = vmatpush1.msra.mxu0 %v2283
    %2391 = vmatprep.subr.mxu0 0.0
    %2392 = vmatpush1.msra.mxu0 %v2284
    %2393 = vmatprep.subr.mxu0 0.0
    %2394 = vmatpush1.msra.mxu0 %v2285
    %2395 = vmatprep.subr.mxu0 0.0
    %2396 = vmatpush1.msra.mxu0 %v2286
    %2397 = vmatprep.subr.mxu0 0.0
    %2398 = vmatpush1.msra.mxu0 %v2287
    %2399 = vmatprep.subr.mxu0 0.0
    %2400 = vmatpush1.msra.mxu0 %v2288
    %2401 = vmatprep.subr.mxu0 0.0
    %2402 = vmatpush1.msra.mxu0 %v2289
    %2403 = vmatprep.subr.mxu0 0.0
    %2404 = vmatpush1.msra.mxu0 %v2290
    %2405 = vmatprep.subr.mxu0 0.0
    %2406 = vmatpush1.msra.mxu0 %v2291
    %2407 = vmatprep.subr.mxu0 0.0
    %2408 = vmatpush1.msra.mxu0 %v2292
    %2409 = vmatprep.subr.mxu0 0.0
    %2410 = vmatpush1.msra.mxu0 %v2293
    %2411 = vmatprep.subr.mxu0 0.0
    %2412 = vmatpush1.msra.mxu0 %v2294
    %2413 = vmatprep.subr.mxu0 0.0
    %2414 = vmatpush1.msra.mxu0 %v2295
    %2415 = vmatprep.subr.mxu0 0.0
    %2416 = vmatpush1.msra.mxu0 %v2296
    %2417 = vmatprep.subr.mxu0 0.0
    %2418 = vmatpush1.msra.mxu0 %v2297
    %2419 = vmatprep.subr.mxu0 0.0
    %2420 = vmatpush1.msra.mxu0 %v2298
    %2421 = vmatprep.subr.mxu0 0.0
    %2422 = vmatpush1.msra.mxu0 %v2299
    %2423 = vmatprep.subr.mxu0 0.0
    %2424 = vmatpush1.msra.mxu0 %v2300
    %2425 = vmatprep.subr.mxu0 0.0
    %2426 = vmatpush1.msra.mxu0 %v2301
    %2427 = vmatprep.subr.mxu0 0.0
    %2428 = vmatpush1.msra.mxu0 %v2302
    %2429 = vmatprep.subr.mxu0 0.0
    %2430 = vmatpush1.msra.mxu0 %v2303
    %2431 = vmatprep.subr.mxu0 0.0
    %2432 = vmatpush1.msra.mxu0 %v2304
    %2433 = vmatprep.subr.mxu0 0.0
    %2434 = vmatpush1.msra.mxu0 %v2305
    %2435 = vmatprep.subr.mxu0 0.0
    %2436 = vmatpush1.msra.mxu0 %v2306
    %2437 = vmatprep.subr.mxu0 0.0
    %2438 = vmatpush1.msra.mxu0 %v2307
    %2439 = vmatprep.subr.mxu0 0.0
    %2440 = vmatpush1.msra.mxu0 %v2308
    %2441 = vmatprep.subr.mxu0 0.0
    %2442 = vmatpush1.msra.mxu0 %v2309
    %2443 = vmatprep.subr.mxu0 0.0
    %2444 = vmatpush1.msra.mxu0 %v2310
    %2445 = vmatprep.mubr.f32.mxu0 %v2157
    %2446 = vmatmul.mubr.f32.gmra.mrb[0].mxu0 %v2156
    %v2447 = vpop.f32.mrb[0].mxu0
    %v2448 = vadd.f32 %v2378, %v2447
    %v2449 = vpop.f32.mrb[0].mxu0
    %2450 = vdwg.mxu0
    %2451 = vmatprep.subr.mxu0 0.0
    %2452 = vmatpush1.msra.mxu0 %v2182
    %2453 = vmatprep.subr.mxu0 0.0
    %2454 = vmatpush1.msra.mxu0 %v2183
    %2455 = vmatprep.subr.mxu0 0.0
    %2456 = vmatpush1.msra.mxu0 %v2184
    %2457 = vmatprep.subr.mxu0 0.0
    %2458 = vmatpush1.msra.mxu0 %v2185
    %2459 = vmatprep.subr.mxu0 0.0
    %2460 = vmatpush1.msra.mxu0 %v2186
    %2461 = vmatprep.subr.mxu0 0.0
    %2462 = vmatpush1.msra.mxu0 %v2187
    %2463 = vmatprep.subr.mxu0 0.0
    %2464 = vmatpush1.msra.mxu0 %v2188
    %2465 = vmatprep.subr.mxu0 0.0
    %2466 = vmatpush1.msra.mxu0 %v2189
    %2467 = vmatprep.subr.mxu0 0.0
    %2468 = vmatpush1.msra.mxu0 %v2190
    %2469 = vmatprep.subr.mxu0 0.0
    %2470 = vmatpush1.msra.mxu0 %v2191
    %2471 = vmatprep.subr.mxu0 0.0
    %2472 = vmatpush1.msra.mxu0 %v2192
    %2473 = vmatprep.subr.mxu0 0.0
    %2474 = vmatpush1.msra.mxu0 %v2193
    %2475 = vmatprep.subr.mxu0 0.0
    %2476 = vmatpush1.msra.mxu0 %v2194
    %2477 = vmatprep.subr.mxu0 0.0
    %2478 = vmatpush1.msra.mxu0 %v2195
    %2479 = vmatprep.subr.mxu0 0.0
    %2480 = vmatpush1.msra.mxu0 %v2196
    %2481 = vmatprep.subr.mxu0 0.0
    %2482 = vmatpush1.msra.mxu0 %v2197
    %2483 = vmatprep.subr.mxu0 0.0
    %2484 = vmatpush1.msra.mxu0 %v2198
    %2485 = vmatprep.subr.mxu0 0.0
    %2486 = vmatpush1.msra.mxu0 %v2199
    %2487 = vmatprep.subr.mxu0 0.0
    %2488 = vmatpush1.msra.mxu0 %v2200
    %2489 = vmatprep.subr.mxu0 0.0
    %2490 = vmatpush1.msra.mxu0 %v2201
    %2491 = vmatprep.subr.mxu0 0.0
    %2492 = vmatpush1.msra.mxu0 %v2202
    %2493 = vmatprep.subr.mxu0 0.0
    %2494 = vmatpush1.msra.mxu0 %v2203
    %2495 = vmatprep.subr.mxu0 0.0
    %2496 = vmatpush1.msra.mxu0 %v2204
    %2497 = vmatprep.subr.mxu0 0.0
    %2498 = vmatpush1.msra.mxu0 %v2205
    %2499 = vmatprep.subr.mxu0 0.0
    %2500 = vmatpush1.msra.mxu0 %v2206
    %2501 = vmatprep.subr.mxu0 0.0
    %2502 = vmatpush1.msra.mxu0 %v2207
    %2503 = vmatprep.subr.mxu0 0.0
    %2504 = vmatpush1.msra.mxu0 %v2208
    %2505 = vmatprep.subr.mxu0 0.0
    %2506 = vmatpush1.msra.mxu0 %v2209
    %2507 = vmatprep.subr.mxu0 0.0
    %2508 = vmatpush1.msra.mxu0 %v2210
    %2509 = vmatprep.subr.mxu0 0.0
    %2510 = vmatpush1.msra.mxu0 %v2211
    %2511 = vmatprep.subr.mxu0 0.0
    %2512 = vmatpush1.msra.mxu0 %v2212
    %2513 = vmatprep.subr.mxu0 0.0
    %2514 = vmatpush1.msra.mxu0 %v2213
    %2515 = vmatprep.mubr.f32.mxu0 %v2151
    %2516 = vmatmul.mubr.f32.gmra.mrb[0].mxu0 %v2150
    %v2517 = vpop.f32.mrb[0].mxu0
    %v2518 = vadd.f32 %v2448, %v2517
    %v2519 = vpop.f32.mrb[0].mxu0
    %2520 = vdwg.mxu0
    %2521 = vmatprep.subr.mxu0 0.0
    %2522 = vmatpush1.msra.mxu0 %v2214
    %2523 = vmatprep.subr.mxu0 0.0
    %2524 = vmatpush1.msra.mxu0 %v2215
    %2525 = vmatprep.subr.mxu0 0.0
    %2526 = vmatpush1.msra.mxu0 %v2216
    %2527 = vmatprep.subr.mxu0 0.0
    %2528 = vmatpush1.msra.mxu0 %v2217
    %2529 = vmatprep.subr.mxu0 0.0
    %2530 = vmatpush1.msra.mxu0 %v2218
    %2531 = vmatprep.subr.mxu0 0.0
    %2532 = vmatpush1.msra.mxu0 %v2219
    %2533 = vmatprep.subr.mxu0 0.0
    %2534 = vmatpush1.msra.mxu0 %v2220
    %2535 = vmatprep.subr.mxu0 0.0
    %2536 = vmatpush1.msra.mxu0 %v2221
    %2537 = vmatprep.subr.mxu0 0.0
    %2538 = vmatpush1.msra.mxu0 %v2222
    %2539 = vmatprep.subr.mxu0 0.0
    %2540 = vmatpush1.msra.mxu0 %v2223
    %2541 = vmatprep.subr.mxu0 0.0
    %2542 = vmatpush1.msra.mxu0 %v2224
    %2543 = vmatprep.subr.mxu0 0.0
    %2544 = vmatpush1.msra.mxu0 %v2225
    %2545 = vmatprep.subr.mxu0 0.0
    %2546 = vmatpush1.msra.mxu0 %v2226
    %2547 = vmatprep.subr.mxu0 0.0
    %2548 = vmatpush1.msra.mxu0 %v2227
    %2549 = vmatprep.subr.mxu0 0.0
    %2550 = vmatpush1.msra.mxu0 %v2228
    %2551 = vmatprep.subr.mxu0 0.0
    %2552 = vmatpush1.msra.mxu0 %v2229
    %2553 = vmatprep.subr.mxu0 0.0
    %2554 = vmatpush1.msra.mxu0 %v2230
    %2555 = vmatprep.subr.mxu0 0.0
    %2556 = vmatpush1.msra.mxu0 %v2231
    %2557 = vmatprep.subr.mxu0 0.0
    %2558 = vmatpush1.msra.mxu0 %v2232
    %2559 = vmatprep.subr.mxu0 0.0
    %2560 = vmatpush1.msra.mxu0 %v2233
    %2561 = vmatprep.subr.mxu0 0.0
    %2562 = vmatpush1.msra.mxu0 %v2234
    %2563 = vmatprep.subr.mxu0 0.0
    %2564 = vmatpush1.msra.mxu0 %v2235
    %2565 = vmatprep.subr.mxu0 0.0
    %2566 = vmatpush1.msra.mxu0 %v2236
    %2567 = vmatprep.subr.mxu0 0.0
    %2568 = vmatpush1.msra.mxu0 %v2237
    %2569 = vmatprep.subr.mxu0 0.0
    %2570 = vmatpush1.msra.mxu0 %v2238
    %2571 = vmatprep.subr.mxu0 0.0
    %2572 = vmatpush1.msra.mxu0 %v2239
    %2573 = vmatprep.subr.mxu0 0.0
    %2574 = vmatpush1.msra.mxu0 %v2240
    %2575 = vmatprep.subr.mxu0 0.0
    %2576 = vmatpush1.msra.mxu0 %v2241
    %2577 = vmatprep.subr.mxu0 0.0
    %2578 = vmatpush1.msra.mxu0 %v2242
    %2579 = vmatprep.subr.mxu0 0.0
    %2580 = vmatpush1.msra.mxu0 %v2243
    %2581 = vmatprep.subr.mxu0 0.0
    %2582 = vmatpush1.msra.mxu0 %v2244
    %2583 = vmatprep.subr.mxu0 0.0
    %2584 = vmatpush1.msra.mxu0 %v2245
    %2585 = vmatprep.mubr.f32.mxu0 %v2153
    %2586 = vmatmul.mubr.f32.gmra.mrb[0].mxu0 %v2152
    %v2587 = vpop.f32.mrb[0].mxu0
    %v2588 = vadd.f32 %v2518, %v2587
    %v2589 = vpop.f32.mrb[0].mxu0
    %2590 = vdwg.mxu0
    %s2591 = scalar_lea.vmem [#allocation12], 1024
    %v2592 = vld [vmem:[%s2591] sm:$0xff]
    %v2593 = vld [vmem:[%s2591 + $0x8] sm:$0xff]
    %v2594 = vld [vmem:[%s2591 + $0x10] sm:$0xff]
    %v2595 = vld [vmem:[%s2591 + $0x18] sm:$0xff]
    %v2596 = vld [vmem:[%s2591 + $0x20] sm:$0xff]
    %v2597 = vld [vmem:[%s2591 + $0x28] sm:$0xff]
    %v2598 = vld [vmem:[%s2591 + $0x30] sm:$0xff]
    %v2599 = vld [vmem:[%s2591 + $0x38] sm:$0xff]
    %v2600 = vld [vmem:[%s2591 + $0x40] sm:$0xff]
    %v2601 = vld [vmem:[%s2591 + $0x48] sm:$0xff]
    %v2602 = vld [vmem:[%s2591 + $0x50] sm:$0xff]
    %v2603 = vld [vmem:[%s2591 + $0x58] sm:$0xff]
    %v2604 = vld [vmem:[%s2591 + $0x60] sm:$0xff]
    %v2605 = vld [vmem:[%s2591 + $0x68] sm:$0xff]
    %v2606 = vld [vmem:[%s2591 + $0x70] sm:$0xff]
    %v2607 = vld [vmem:[%s2591 + $0x78] sm:$0xff]
    %v2608 = vld [vmem:[%s2591 + $0x80] sm:$0xff]
    %v2609 = vld [vmem:[%s2591 + $0x88] sm:$0xff]
    %v2610 = vld [vmem:[%s2591 + $0x90] sm:$0xff]
    %v2611 = vld [vmem:[%s2591 + $0x98] sm:$0xff]
    %v2612 = vld [vmem:[%s2591 + $0xa0] sm:$0xff]
    %v2613 = vld [vmem:[%s2591 + $0xa8] sm:$0xff]
    %v2614 = vld [vmem:[%s2591 + $0xb0] sm:$0xff]
    %v2615 = vld [vmem:[%s2591 + $0xb8] sm:$0xff]
    %v2616 = vld [vmem:[%s2591 + $0xc0] sm:$0xff]
    %v2617 = vld [vmem:[%s2591 + $0xc8] sm:$0xff]
    %v2618 = vld [vmem:[%s2591 + $0xd0] sm:$0xff]
    %v2619 = vld [vmem:[%s2591 + $0xd8] sm:$0xff]
    %v2620 = vld [vmem:[%s2591 + $0xe0] sm:$0xff]
    %v2621 = vld [vmem:[%s2591 + $0xe8] sm:$0xff]
    %v2622 = vld [vmem:[%s2591 + $0xf0] sm:$0xff]
    %v2623 = vld [vmem:[%s2591 + $0xf8] sm:$0xff]
    %v2624 = vld [vmem:[%s2591 + $0x100] sm:$0xff]
    %v2625 = vld [vmem:[%s2591 + $0x108] sm:$0xff]
    %v2626 = vld [vmem:[%s2591 + $0x110] sm:$0xff]
    %v2627 = vld [vmem:[%s2591 + $0x118] sm:$0xff]
    %v2628 = vld [vmem:[%s2591 + $0x120] sm:$0xff]
    %v2629 = vld [vmem:[%s2591 + $0x128] sm:$0xff]
    %v2630 = vld [vmem:[%s2591 + $0x130] sm:$0xff]
    %v2631 = vld [vmem:[%s2591 + $0x138] sm:$0xff]
    %v2632 = vld [vmem:[%s2591 + $0x140] sm:$0xff]
    %v2633 = vld [vmem:[%s2591 + $0x148] sm:$0xff]
    %v2634 = vld [vmem:[%s2591 + $0x150] sm:$0xff]
    %v2635 = vld [vmem:[%s2591 + $0x158] sm:$0xff]
    %v2636 = vld [vmem:[%s2591 + $0x160] sm:$0xff]
    %v2637 = vld [vmem:[%s2591 + $0x168] sm:$0xff]
    %v2638 = vld [vmem:[%s2591 + $0x170] sm:$0xff]
    %v2639 = vld [vmem:[%s2591 + $0x178] sm:$0xff]
    %v2640 = vld [vmem:[%s2591 + $0x180] sm:$0xff]
    %v2641 = vld [vmem:[%s2591 + $0x188] sm:$0xff]
    %v2642 = vld [vmem:[%s2591 + $0x190] sm:$0xff]
    %v2643 = vld [vmem:[%s2591 + $0x198] sm:$0xff]
    %v2644 = vld [vmem:[%s2591 + $0x1a0] sm:$0xff]
    %v2645 = vld [vmem:[%s2591 + $0x1a8] sm:$0xff]
    %v2646 = vld [vmem:[%s2591 + $0x1b0] sm:$0xff]
    %v2647 = vld [vmem:[%s2591 + $0x1b8] sm:$0xff]
    %v2648 = vld [vmem:[%s2591 + $0x1c0] sm:$0xff]
    %v2649 = vld [vmem:[%s2591 + $0x1c8] sm:$0xff]
    %v2650 = vld [vmem:[%s2591 + $0x1d0] sm:$0xff]
    %v2651 = vld [vmem:[%s2591 + $0x1d8] sm:$0xff]
    %v2652 = vld [vmem:[%s2591 + $0x1e0] sm:$0xff]
    %v2653 = vld [vmem:[%s2591 + $0x1e8] sm:$0xff]
    %v2654 = vld [vmem:[%s2591 + $0x1f0] sm:$0xff]
    %v2655 = vld [vmem:[%s2591 + $0x1f8] sm:$0xff]
    %2656 = vmatprep.subr.mxu0 0.0
    %2657 = vmatpush1.msra.mxu0 %v2592
    %2658 = vmatprep.subr.mxu0 0.0
    %2659 = vmatpush1.msra.mxu0 %v2593
    %2660 = vmatprep.subr.mxu0 0.0
    %2661 = vmatpush1.msra.mxu0 %v2594
    %2662 = vmatprep.subr.mxu0 0.0
    %2663 = vmatpush1.msra.mxu0 %v2595
    %2664 = vmatprep.subr.mxu0 0.0
    %2665 = vmatpush1.msra.mxu0 %v2596
    %2666 = vmatprep.subr.mxu0 0.0
    %2667 = vmatpush1.msra.mxu0 %v2597
    %2668 = vmatprep.subr.mxu0 0.0
    %2669 = vmatpush1.msra.mxu0 %v2598
    %2670 = vmatprep.subr.mxu0 0.0
    %2671 = vmatpush1.msra.mxu0 %v2599
    %2672 = vmatprep.subr.mxu0 0.0
    %2673 = vmatpush1.msra.mxu0 %v2600
    %2674 = vmatprep.subr.mxu0 0.0
    %2675 = vmatpush1.msra.mxu0 %v2601
    %2676 = vmatprep.subr.mxu0 0.0
    %2677 = vmatpush1.msra.mxu0 %v2602
    %2678 = vmatprep.subr.mxu0 0.0
    %2679 = vmatpush1.msra.mxu0 %v2603
    %2680 = vmatprep.subr.mxu0 0.0
    %2681 = vmatpush1.msra.mxu0 %v2604
    %2682 = vmatprep.subr.mxu0 0.0
    %2683 = vmatpush1.msra.mxu0 %v2605
    %2684 = vmatprep.subr.mxu0 0.0
    %2685 = vmatpush1.msra.mxu0 %v2606
    %2686 = vmatprep.subr.mxu0 0.0
    %2687 = vmatpush1.msra.mxu0 %v2607
    %2688 = vmatprep.subr.mxu0 0.0
    %2689 = vmatpush1.msra.mxu0 %v2608
    %2690 = vmatprep.subr.mxu0 0.0
    %2691 = vmatpush1.msra.mxu0 %v2609
    %2692 = vmatprep.subr.mxu0 0.0
    %2693 = vmatpush1.msra.mxu0 %v2610
    %2694 = vmatprep.subr.mxu0 0.0
    %2695 = vmatpush1.msra.mxu0 %v2611
    %2696 = vmatprep.subr.mxu0 0.0
    %2697 = vmatpush1.msra.mxu0 %v2612
    %2698 = vmatprep.subr.mxu0 0.0
    %2699 = vmatpush1.msra.mxu0 %v2613
    %2700 = vmatprep.subr.mxu0 0.0
    %2701 = vmatpush1.msra.mxu0 %v2614
    %2702 = vmatprep.subr.mxu0 0.0
    %2703 = vmatpush1.msra.mxu0 %v2615
    %2704 = vmatprep.subr.mxu0 0.0
    %2705 = vmatpush1.msra.mxu0 %v2616
    %2706 = vmatprep.subr.mxu0 0.0
    %2707 = vmatpush1.msra.mxu0 %v2617
    %2708 = vmatprep.subr.mxu0 0.0
    %2709 = vmatpush1.msra.mxu0 %v2618
    %2710 = vmatprep.subr.mxu0 0.0
    %2711 = vmatpush1.msra.mxu0 %v2619
    %2712 = vmatprep.subr.mxu0 0.0
    %2713 = vmatpush1.msra.mxu0 %v2620
    %2714 = vmatprep.subr.mxu0 0.0
    %2715 = vmatpush1.msra.mxu0 %v2621
    %2716 = vmatprep.subr.mxu0 0.0
    %2717 = vmatpush1.msra.mxu0 %v2622
    %2718 = vmatprep.subr.mxu0 0.0
    %2719 = vmatpush1.msra.mxu0 %v2623
    %2720 = vmatprep.mubr.f32.mxu0 %v2159
    %2721 = vmatmul.mubr.f32.gmra.mrb[0].mxu0 %v2158
    %v2722 = vpop.f32.mrb[0].mxu0
    %v2723 = vadd.f32 0.0, %v2722
    %v2724 = vpop.f32.mrb[0].mxu0
    %2725 = vdwg.mxu0
    %2726 = vmatprep.subr.mxu0 0.0
    %2727 = vmatpush1.msra.mxu0 %v2624
    %2728 = vmatprep.subr.mxu0 0.0
    %2729 = vmatpush1.msra.mxu0 %v2625
    %2730 = vmatprep.subr.mxu0 0.0
    %2731 = vmatpush1.msra.mxu0 %v2626
    %2732 = vmatprep.subr.mxu0 0.0
    %2733 = vmatpush1.msra.mxu0 %v2627
    %2734 = vmatprep.subr.mxu0 0.0
    %2735 = vmatpush1.msra.mxu0 %v2628
    %2736 = vmatprep.subr.mxu0 0.0
    %2737 = vmatpush1.msra.mxu0 %v2629
    %2738 = vmatprep.subr.mxu0 0.0
    %2739 = vmatpush1.msra.mxu0 %v2630
    %2740 = vmatprep.subr.mxu0 0.0
    %2741 = vmatpush1.msra.mxu0 %v2631
    %2742 = vmatprep.subr.mxu0 0.0
    %2743 = vmatpush1.msra.mxu0 %v2632
    %2744 = vmatprep.subr.mxu0 0.0
    %2745 = vmatpush1.msra.mxu0 %v2633
    %2746 = vmatprep.subr.mxu0 0.0
    %2747 = vmatpush1.msra.mxu0 %v2634
    %2748 = vmatprep.subr.mxu0 0.0
    %2749 = vmatpush1.msra.mxu0 %v2635
    %2750 = vmatprep.subr.mxu0 0.0
    %2751 = vmatpush1.msra.mxu0 %v2636
    %2752 = vmatprep.subr.mxu0 0.0
    %2753 = vmatpush1.msra.mxu0 %v2637
    %2754 = vmatprep.subr.mxu0 0.0
    %2755 = vmatpush1.msra.mxu0 %v2638
    %2756 = vmatprep.subr.mxu0 0.0
    %2757 = vmatpush1.msra.mxu0 %v2639
    %2758 = vmatprep.subr.mxu0 0.0
    %2759 = vmatpush1.msra.mxu0 %v2640
    %2760 = vmatprep.subr.mxu0 0.0
    %2761 = vmatpush1.msra.mxu0 %v2641
    %2762 = vmatprep.subr.mxu0 0.0
    %2763 = vmatpush1.msra.mxu0 %v2642
    %2764 = vmatprep.subr.mxu0 0.0
    %2765 = vmatpush1.msra.mxu0 %v2643
    %2766 = vmatprep.subr.mxu0 0.0
    %2767 = vmatpush1.msra.mxu0 %v2644
    %2768 = vmatprep.subr.mxu0 0.0
    %2769 = vmatpush1.msra.mxu0 %v2645
    %2770 = vmatprep.subr.mxu0 0.0
    %2771 = vmatpush1.msra.mxu0 %v2646
    %2772 = vmatprep.subr.mxu0 0.0
    %2773 = vmatpush1.msra.mxu0 %v2647
    %2774 = vmatprep.subr.mxu0 0.0
    %2775 = vmatpush1.msra.mxu0 %v2648
    %2776 = vmatprep.subr.mxu0 0.0
    %2777 = vmatpush1.msra.mxu0 %v2649
    %2778 = vmatprep.subr.mxu0 0.0
    %2779 = vmatpush1.msra.mxu0 %v2650
    %2780 = vmatprep.subr.mxu0 0.0
    %2781 = vmatpush1.msra.mxu0 %v2651
    %2782 = vmatprep.subr.mxu0 0.0
    %2783 = vmatpush1.msra.mxu0 %v2652
    %2784 = vmatprep.subr.mxu0 0.0
    %2785 = vmatpush1.msra.mxu0 %v2653
    %2786 = vmatprep.subr.mxu0 0.0
    %2787 = vmatpush1.msra.mxu0 %v2654
    %2788 = vmatprep.subr.mxu0 0.0
    %2789 = vmatpush1.msra.mxu0 %v2655
    %2790 = vmatprep.mubr.f32.mxu0 %v2161
    %2791 = vmatmul.mubr.f32.gmra.mrb[0].mxu0 %v2160
    %v2792 = vpop.f32.mrb[0].mxu0
    %v2793 = vadd.f32 %v2723, %v2792
    %v2794 = vpop.f32.mrb[0].mxu0
    %2795 = vdwg.mxu0
    %v2796 = vadd.f32 %v2588, %v2793
    %s2797 = scalar_lea.vmem [#allocation12], 1536
    %v2798 = vld [vmem:[%s2797] sm:$0xff]
    %v2799 = vld [vmem:[%s2797 + $0x8] sm:$0xff]
    %v2800 = vld [vmem:[%s2797 + $0x10] sm:$0xff]
    %v2801 = vld [vmem:[%s2797 + $0x18] sm:$0xff]
    %v2802 = vld [vmem:[%s2797 + $0x20] sm:$0xff]
    %v2803 = vld [vmem:[%s2797 + $0x28] sm:$0xff]
    %v2804 = vld [vmem:[%s2797 + $0x30] sm:$0xff]
    %v2805 = vld [vmem:[%s2797 + $0x38] sm:$0xff]
    %v2806 = vld [vmem:[%s2797 + $0x40] sm:$0xff]
    %v2807 = vld [vmem:[%s2797 + $0x48] sm:$0xff]
    %v2808 = vld [vmem:[%s2797 + $0x50] sm:$0xff]
    %v2809 = vld [vmem:[%s2797 + $0x58] sm:$0xff]
    %v2810 = vld [vmem:[%s2797 + $0x60] sm:$0xff]
    %v2811 = vld [vmem:[%s2797 + $0x68] sm:$0xff]
    %v2812 = vld [vmem:[%s2797 + $0x70] sm:$0xff]
    %v2813 = vld [vmem:[%s2797 + $0x78] sm:$0xff]
    %v2814 = vld [vmem:[%s2797 + $0x80] sm:$0xff]
    %v2815 = vld [vmem:[%s2797 + $0x88] sm:$0xff]
    %v2816 = vld [vmem:[%s2797 + $0x90] sm:$0xff]
    %v2817 = vld [vmem:[%s2797 + $0x98] sm:$0xff]
    %v2818 = vld [vmem:[%s2797 + $0xa0] sm:$0xff]
    %v2819 = vld [vmem:[%s2797 + $0xa8] sm:$0xff]
    %v2820 = vld [vmem:[%s2797 + $0xb0] sm:$0xff]
    %v2821 = vld [vmem:[%s2797 + $0xb8] sm:$0xff]
    %v2822 = vld [vmem:[%s2797 + $0xc0] sm:$0xff]
    %v2823 = vld [vmem:[%s2797 + $0xc8] sm:$0xff]
    %v2824 = vld [vmem:[%s2797 + $0xd0] sm:$0xff]
    %v2825 = vld [vmem:[%s2797 + $0xd8] sm:$0xff]
    %v2826 = vld [vmem:[%s2797 + $0xe0] sm:$0xff]
    %v2827 = vld [vmem:[%s2797 + $0xe8] sm:$0xff]
    %v2828 = vld [vmem:[%s2797 + $0xf0] sm:$0xff]
    %v2829 = vld [vmem:[%s2797 + $0xf8] sm:$0xff]
    %v2830 = vld [vmem:[%s2797 + $0x100] sm:$0xff]
    %v2831 = vld [vmem:[%s2797 + $0x108] sm:$0xff]
    %v2832 = vld [vmem:[%s2797 + $0x110] sm:$0xff]
    %v2833 = vld [vmem:[%s2797 + $0x118] sm:$0xff]
    %v2834 = vld [vmem:[%s2797 + $0x120] sm:$0xff]
    %v2835 = vld [vmem:[%s2797 + $0x128] sm:$0xff]
    %v2836 = vld [vmem:[%s2797 + $0x130] sm:$0xff]
    %v2837 = vld [vmem:[%s2797 + $0x138] sm:$0xff]
    %v2838 = vld [vmem:[%s2797 + $0x140] sm:$0xff]
    %v2839 = vld [vmem:[%s2797 + $0x148] sm:$0xff]
    %v2840 = vld [vmem:[%s2797 + $0x150] sm:$0xff]
    %v2841 = vld [vmem:[%s2797 + $0x158] sm:$0xff]
    %v2842 = vld [vmem:[%s2797 + $0x160] sm:$0xff]
    %v2843 = vld [vmem:[%s2797 + $0x168] sm:$0xff]
    %v2844 = vld [vmem:[%s2797 + $0x170] sm:$0xff]
    %v2845 = vld [vmem:[%s2797 + $0x178] sm:$0xff]
    %v2846 = vld [vmem:[%s2797 + $0x180] sm:$0xff]
    %v2847 = vld [vmem:[%s2797 + $0x188] sm:$0xff]
    %v2848 = vld [vmem:[%s2797 + $0x190] sm:$0xff]
    %v2849 = vld [vmem:[%s2797 + $0x198] sm:$0xff]
    %v2850 = vld [vmem:[%s2797 + $0x1a0] sm:$0xff]
    %v2851 = vld [vmem:[%s2797 + $0x1a8] sm:$0xff]
    %v2852 = vld [vmem:[%s2797 + $0x1b0] sm:$0xff]
    %v2853 = vld [vmem:[%s2797 + $0x1b8] sm:$0xff]
    %v2854 = vld [vmem:[%s2797 + $0x1c0] sm:$0xff]
    %v2855 = vld [vmem:[%s2797 + $0x1c8] sm:$0xff]
    %v2856 = vld [vmem:[%s2797 + $0x1d0] sm:$0xff]
    %v2857 = vld [vmem:[%s2797 + $0x1d8] sm:$0xff]
    %v2858 = vld [vmem:[%s2797 + $0x1e0] sm:$0xff]
    %v2859 = vld [vmem:[%s2797 + $0x1e8] sm:$0xff]
    %v2860 = vld [vmem:[%s2797 + $0x1f0] sm:$0xff]
    %v2861 = vld [vmem:[%s2797 + $0x1f8] sm:$0xff]
    %2862 = vmatprep.subr.mxu0 0.0
    %2863 = vmatpush1.msra.mxu0 %v2798
    %2864 = vmatprep.subr.mxu0 0.0
    %2865 = vmatpush1.msra.mxu0 %v2799
    %2866 = vmatprep.subr.mxu0 0.0
    %2867 = vmatpush1.msra.mxu0 %v2800
    %2868 = vmatprep.subr.mxu0 0.0
    %2869 = vmatpush1.msra.mxu0 %v2801
    %2870 = vmatprep.subr.mxu0 0.0
    %2871 = vmatpush1.msra.mxu0 %v2802
    %2872 = vmatprep.subr.mxu0 0.0
    %2873 = vmatpush1.msra.mxu0 %v2803
    %2874 = vmatprep.subr.mxu0 0.0
    %2875 = vmatpush1.msra.mxu0 %v2804
    %2876 = vmatprep.subr.mxu0 0.0
    %2877 = vmatpush1.msra.mxu0 %v2805
    %2878 = vmatprep.subr.mxu0 0.0
    %2879 = vmatpush1.msra.mxu0 %v2806
    %2880 = vmatprep.subr.mxu0 0.0
    %2881 = vmatpush1.msra.mxu0 %v2807
    %2882 = vmatprep.subr.mxu0 0.0
    %2883 = vmatpush1.msra.mxu0 %v2808
    %2884 = vmatprep.subr.mxu0 0.0
    %2885 = vmatpush1.msra.mxu0 %v2809
    %2886 = vmatprep.subr.mxu0 0.0
    %2887 = vmatpush1.msra.mxu0 %v2810
    %2888 = vmatprep.subr.mxu0 0.0
    %2889 = vmatpush1.msra.mxu0 %v2811
    %2890 = vmatprep.subr.mxu0 0.0
    %2891 = vmatpush1.msra.mxu0 %v2812
    %2892 = vmatprep.subr.mxu0 0.0
    %2893 = vmatpush1.msra.mxu0 %v2813
    %2894 = vmatprep.subr.mxu0 0.0
    %2895 = vmatpush1.msra.mxu0 %v2814
    %2896 = vmatprep.subr.mxu0 0.0
    %2897 = vmatpush1.msra.mxu0 %v2815
    %2898 = vmatprep.subr.mxu0 0.0
    %2899 = vmatpush1.msra.mxu0 %v2816
    %2900 = vmatprep.subr.mxu0 0.0
    %2901 = vmatpush1.msra.mxu0 %v2817
    %2902 = vmatprep.subr.mxu0 0.0
    %2903 = vmatpush1.msra.mxu0 %v2818
    %2904 = vmatprep.subr.mxu0 0.0
    %2905 = vmatpush1.msra.mxu0 %v2819
    %2906 = vmatprep.subr.mxu0 0.0
    %2907 = vmatpush1.msra.mxu0 %v2820
    %2908 = vmatprep.subr.mxu0 0.0
    %2909 = vmatpush1.msra.mxu0 %v2821
    %2910 = vmatprep.subr.mxu0 0.0
    %2911 = vmatpush1.msra.mxu0 %v2822
    %2912 = vmatprep.subr.mxu0 0.0
    %2913 = vmatpush1.msra.mxu0 %v2823
    %2914 = vmatprep.subr.mxu0 0.0
    %2915 = vmatpush1.msra.mxu0 %v2824
    %2916 = vmatprep.subr.mxu0 0.0
    %2917 = vmatpush1.msra.mxu0 %v2825
    %2918 = vmatprep.subr.mxu0 0.0
    %2919 = vmatpush1.msra.mxu0 %v2826
    %2920 = vmatprep.subr.mxu0 0.0
    %2921 = vmatpush1.msra.mxu0 %v2827
    %2922 = vmatprep.subr.mxu0 0.0
    %2923 = vmatpush1.msra.mxu0 %v2828
    %2924 = vmatprep.subr.mxu0 0.0
    %2925 = vmatpush1.msra.mxu0 %v2829
    %2926 = vmatprep.mubr.f32.mxu0 %v2163
    %2927 = vmatmul.mubr.f32.gmra.mrb[0].mxu0 %v2162
    %v2928 = vpop.f32.mrb[0].mxu0
    %v2929 = vadd.f32 0.0, %v2928
    %v2930 = vpop.f32.mrb[0].mxu0
    %2931 = vdwg.mxu0
    %2932 = vmatprep.subr.mxu0 0.0
    %2933 = vmatpush1.msra.mxu0 %v2830
    %2934 = vmatprep.subr.mxu0 0.0
    %2935 = vmatpush1.msra.mxu0 %v2831
    %2936 = vmatprep.subr.mxu0 0.0
    %2937 = vmatpush1.msra.mxu0 %v2832
    %2938 = vmatprep.subr.mxu0 0.0
    %2939 = vmatpush1.msra.mxu0 %v2833
    %2940 = vmatprep.subr.mxu0 0.0
    %2941 = vmatpush1.msra.mxu0 %v2834
    %2942 = vmatprep.subr.mxu0 0.0
    %2943 = vmatpush1.msra.mxu0 %v2835
    %2944 = vmatprep.subr.mxu0 0.0
    %2945 = vmatpush1.msra.mxu0 %v2836
    %2946 = vmatprep.subr.mxu0 0.0
    %2947 = vmatpush1.msra.mxu0 %v2837
    %2948 = vmatprep.subr.mxu0 0.0
    %2949 = vmatpush1.msra.mxu0 %v2838
    %2950 = vmatprep.subr.mxu0 0.0
    %2951 = vmatpush1.msra.mxu0 %v2839
    %2952 = vmatprep.subr.mxu0 0.0
    %2953 = vmatpush1.msra.mxu0 %v2840
    %2954 = vmatprep.subr.mxu0 0.0
    %2955 = vmatpush1.msra.mxu0 %v2841
    %2956 = vmatprep.subr.mxu0 0.0
    %2957 = vmatpush1.msra.mxu0 %v2842
    %2958 = vmatprep.subr.mxu0 0.0
    %2959 = vmatpush1.msra.mxu0 %v2843
    %2960 = vmatprep.subr.mxu0 0.0
    %2961 = vmatpush1.msra.mxu0 %v2844
    %2962 = vmatprep.subr.mxu0 0.0
    %2963 = vmatpush1.msra.mxu0 %v2845
    %2964 = vmatprep.subr.mxu0 0.0
    %2965 = vmatpush1.msra.mxu0 %v2846
    %2966 = vmatprep.subr.mxu0 0.0
    %2967 = vmatpush1.msra.mxu0 %v2847
    %2968 = vmatprep.subr.mxu0 0.0
    %2969 = vmatpush1.msra.mxu0 %v2848
    %2970 = vmatprep.subr.mxu0 0.0
    %2971 = vmatpush1.msra.mxu0 %v2849
    %2972 = vmatprep.subr.mxu0 0.0
    %2973 = vmatpush1.msra.mxu0 %v2850
    %2974 = vmatprep.subr.mxu0 0.0
    %2975 = vmatpush1.msra.mxu0 %v2851
    %2976 = vmatprep.subr.mxu0 0.0
    %2977 = vmatpush1.msra.mxu0 %v2852
    %2978 = vmatprep.subr.mxu0 0.0
    %2979 = vmatpush1.msra.mxu0 %v2853
    %2980 = vmatprep.subr.mxu0 0.0
    %2981 = vmatpush1.msra.mxu0 %v2854
    %2982 = vmatprep.subr.mxu0 0.0
    %2983 = vmatpush1.msra.mxu0 %v2855
    %2984 = vmatprep.subr.mxu0 0.0
    %2985 = vmatpush1.msra.mxu0 %v2856
    %2986 = vmatprep.subr.mxu0 0.0
    %2987 = vmatpush1.msra.mxu0 %v2857
    %2988 = vmatprep.subr.mxu0 0.0
    %2989 = vmatpush1.msra.mxu0 %v2858
    %2990 = vmatprep.subr.mxu0 0.0
    %2991 = vmatpush1.msra.mxu0 %v2859
    %2992 = vmatprep.subr.mxu0 0.0
    %2993 = vmatpush1.msra.mxu0 %v2860
    %2994 = vmatprep.subr.mxu0 0.0
    %2995 = vmatpush1.msra.mxu0 %v2861
    %2996 = vmatprep.mubr.f32.mxu0 %v2165
    %2997 = vmatmul.mubr.f32.gmra.mrb[0].mxu0 %v2164
    %v2998 = vpop.f32.mrb[0].mxu0
    %v2999 = vadd.f32 %v2929, %v2998
    %v3000 = vpop.f32.mrb[0].mxu0
    %3001 = vdwg.mxu0
    %v3002 = vadd.f32 %v2796, %v2999
    %s3003 = scalar_lea.vmem [#allocation12], 2048
    %v3004 = vld [vmem:[%s3003] sm:$0xff]
    %v3005 = vld [vmem:[%s3003 + $0x8] sm:$0xff]
    %v3006 = vld [vmem:[%s3003 + $0x10] sm:$0xff]
    %v3007 = vld [vmem:[%s3003 + $0x18] sm:$0xff]
    %v3008 = vld [vmem:[%s3003 + $0x20] sm:$0xff]
    %v3009 = vld [vmem:[%s3003 + $0x28] sm:$0xff]
    %v3010 = vld [vmem:[%s3003 + $0x30] sm:$0xff]
    %v3011 = vld [vmem:[%s3003 + $0x38] sm:$0xff]
    %v3012 = vld [vmem:[%s3003 + $0x40] sm:$0xff]
    %v3013 = vld [vmem:[%s3003 + $0x48] sm:$0xff]
    %v3014 = vld [vmem:[%s3003 + $0x50] sm:$0xff]
    %v3015 = vld [vmem:[%s3003 + $0x58] sm:$0xff]
    %v3016 = vld [vmem:[%s3003 + $0x60] sm:$0xff]
    %v3017 = vld [vmem:[%s3003 + $0x68] sm:$0xff]
    %v3018 = vld [vmem:[%s3003 + $0x70] sm:$0xff]
    %v3019 = vld [vmem:[%s3003 + $0x78] sm:$0xff]
    %v3020 = vld [vmem:[%s3003 + $0x80] sm:$0xff]
    %v3021 = vld [vmem:[%s3003 + $0x88] sm:$0xff]
    %v3022 = vld [vmem:[%s3003 + $0x90] sm:$0xff]
    %v3023 = vld [vmem:[%s3003 + $0x98] sm:$0xff]
    %v3024 = vld [vmem:[%s3003 + $0xa0] sm:$0xff]
    %v3025 = vld [vmem:[%s3003 + $0xa8] sm:$0xff]
    %v3026 = vld [vmem:[%s3003 + $0xb0] sm:$0xff]
    %v3027 = vld [vmem:[%s3003 + $0xb8] sm:$0xff]
    %v3028 = vld [vmem:[%s3003 + $0xc0] sm:$0xff]
    %v3029 = vld [vmem:[%s3003 + $0xc8] sm:$0xff]
    %v3030 = vld [vmem:[%s3003 + $0xd0] sm:$0xff]
    %v3031 = vld [vmem:[%s3003 + $0xd8] sm:$0xff]
    %v3032 = vld [vmem:[%s3003 + $0xe0] sm:$0xff]
    %v3033 = vld [vmem:[%s3003 + $0xe8] sm:$0xff]
    %v3034 = vld [vmem:[%s3003 + $0xf0] sm:$0xff]
    %v3035 = vld [vmem:[%s3003 + $0xf8] sm:$0xff]
    %v3036 = vld [vmem:[%s3003 + $0x100] sm:$0xff]
    %v3037 = vld [vmem:[%s3003 + $0x108] sm:$0xff]
    %v3038 = vld [vmem:[%s3003 + $0x110] sm:$0xff]
    %v3039 = vld [vmem:[%s3003 + $0x118] sm:$0xff]
    %v3040 = vld [vmem:[%s3003 + $0x120] sm:$0xff]
    %v3041 = vld [vmem:[%s3003 + $0x128] sm:$0xff]
    %v3042 = vld [vmem:[%s3003 + $0x130] sm:$0xff]
    %v3043 = vld [vmem:[%s3003 + $0x138] sm:$0xff]
    %v3044 = vld [vmem:[%s3003 + $0x140] sm:$0xff]
    %v3045 = vld [vmem:[%s3003 + $0x148] sm:$0xff]
    %v3046 = vld [vmem:[%s3003 + $0x150] sm:$0xff]
    %v3047 = vld [vmem:[%s3003 + $0x158] sm:$0xff]
    %v3048 = vld [vmem:[%s3003 + $0x160] sm:$0xff]
    %v3049 = vld [vmem:[%s3003 + $0x168] sm:$0xff]
    %v3050 = vld [vmem:[%s3003 + $0x170] sm:$0xff]
    %v3051 = vld [vmem:[%s3003 + $0x178] sm:$0xff]
    %v3052 = vld [vmem:[%s3003 + $0x180] sm:$0xff]
    %v3053 = vld [vmem:[%s3003 + $0x188] sm:$0xff]
    %v3054 = vld [vmem:[%s3003 + $0x190] sm:$0xff]
    %v3055 = vld [vmem:[%s3003 + $0x198] sm:$0xff]
    %v3056 = vld [vmem:[%s3003 + $0x1a0] sm:$0xff]
    %v3057 = vld [vmem:[%s3003 + $0x1a8] sm:$0xff]
    %v3058 = vld [vmem:[%s3003 + $0x1b0] sm:$0xff]
    %v3059 = vld [vmem:[%s3003 + $0x1b8] sm:$0xff]
    %v3060 = vld [vmem:[%s3003 + $0x1c0] sm:$0xff]
    %v3061 = vld [vmem:[%s3003 + $0x1c8] sm:$0xff]
    %v3062 = vld [vmem:[%s3003 + $0x1d0] sm:$0xff]
    %v3063 = vld [vmem:[%s3003 + $0x1d8] sm:$0xff]
    %v3064 = vld [vmem:[%s3003 + $0x1e0] sm:$0xff]
    %v3065 = vld [vmem:[%s3003 + $0x1e8] sm:$0xff]
    %v3066 = vld [vmem:[%s3003 + $0x1f0] sm:$0xff]
    %v3067 = vld [vmem:[%s3003 + $0x1f8] sm:$0xff]
    %3068 = vmatprep.subr.mxu0 0.0
    %3069 = vmatpush1.msra.mxu0 %v3004
    %3070 = vmatprep.subr.mxu0 0.0
    %3071 = vmatpush1.msra.mxu0 %v3005
    %3072 = vmatprep.subr.mxu0 0.0
    %3073 = vmatpush1.msra.mxu0 %v3006
    %3074 = vmatprep.subr.mxu0 0.0
    %3075 = vmatpush1.msra.mxu0 %v3007
    %3076 = vmatprep.subr.mxu0 0.0
    %3077 = vmatpush1.msra.mxu0 %v3008
    %3078 = vmatprep.subr.mxu0 0.0
    %3079 = vmatpush1.msra.mxu0 %v3009
    %3080 = vmatprep.subr.mxu0 0.0
    %3081 = vmatpush1.msra.mxu0 %v3010
    %3082 = vmatprep.subr.mxu0 0.0
    %3083 = vmatpush1.msra.mxu0 %v3011
    %3084 = vmatprep.subr.mxu0 0.0
    %3085 = vmatpush1.msra.mxu0 %v3012
    %3086 = vmatprep.subr.mxu0 0.0
    %3087 = vmatpush1.msra.mxu0 %v3013
    %3088 = vmatprep.subr.mxu0 0.0
    %3089 = vmatpush1.msra.mxu0 %v3014
    %3090 = vmatprep.subr.mxu0 0.0
    %3091 = vmatpush1.msra.mxu0 %v3015
    %3092 = vmatprep.subr.mxu0 0.0
    %3093 = vmatpush1.msra.mxu0 %v3016
    %3094 = vmatprep.subr.mxu0 0.0
    %3095 = vmatpush1.msra.mxu0 %v3017
    %3096 = vmatprep.subr.mxu0 0.0
    %3097 = vmatpush1.msra.mxu0 %v3018
    %3098 = vmatprep.subr.mxu0 0.0
    %3099 = vmatpush1.msra.mxu0 %v3019
    %3100 = vmatprep.subr.mxu0 0.0
    %3101 = vmatpush1.msra.mxu0 %v3020
    %3102 = vmatprep.subr.mxu0 0.0
    %3103 = vmatpush1.msra.mxu0 %v3021
    %3104 = vmatprep.subr.mxu0 0.0
    %3105 = vmatpush1.msra.mxu0 %v3022
    %3106 = vmatprep.subr.mxu0 0.0
    %3107 = vmatpush1.msra.mxu0 %v3023
    %3108 = vmatprep.subr.mxu0 0.0
    %3109 = vmatpush1.msra.mxu0 %v3024
    %3110 = vmatprep.subr.mxu0 0.0
    %3111 = vmatpush1.msra.mxu0 %v3025
    %3112 = vmatprep.subr.mxu0 0.0
    %3113 = vmatpush1.msra.mxu0 %v3026
    %3114 = vmatprep.subr.mxu0 0.0
    %3115 = vmatpush1.msra.mxu0 %v3027
    %3116 = vmatprep.subr.mxu0 0.0
    %3117 = vmatpush1.msra.mxu0 %v3028
    %3118 = vmatprep.subr.mxu0 0.0
    %3119 = vmatpush1.msra.mxu0 %v3029
    %3120 = vmatprep.subr.mxu0 0.0
    %3121 = vmatpush1.msra.mxu0 %v3030
    %3122 = vmatprep.subr.mxu0 0.0
    %3123 = vmatpush1.msra.mxu0 %v3031
    %3124 = vmatprep.subr.mxu0 0.0
    %3125 = vmatpush1.msra.mxu0 %v3032
    %3126 = vmatprep.subr.mxu0 0.0
    %3127 = vmatpush1.msra.mxu0 %v3033
    %3128 = vmatprep.subr.mxu0 0.0
    %3129 = vmatpush1.msra.mxu0 %v3034
    %3130 = vmatprep.subr.mxu0 0.0
    %3131 = vmatpush1.msra.mxu0 %v3035
    %3132 = vmatprep.mubr.f32.mxu0 %v2167
    %3133 = vmatmul.mubr.f32.gmra.mrb[0].mxu0 %v2166
    %v3134 = vpop.f32.mrb[0].mxu0
    %v3135 = vadd.f32 0.0, %v3134
    %v3136 = vpop.f32.mrb[0].mxu0
    %3137 = vdwg.mxu0
    %3138 = vmatprep.subr.mxu0 0.0
    %3139 = vmatpush1.msra.mxu0 %v3036
    %3140 = vmatprep.subr.mxu0 0.0
    %3141 = vmatpush1.msra.mxu0 %v3037
    %3142 = vmatprep.subr.mxu0 0.0
    %3143 = vmatpush1.msra.mxu0 %v3038
    %3144 = vmatprep.subr.mxu0 0.0
    %3145 = vmatpush1.msra.mxu0 %v3039
    %3146 = vmatprep.subr.mxu0 0.0
    %3147 = vmatpush1.msra.mxu0 %v3040
    %3148 = vmatprep.subr.mxu0 0.0
    %3149 = vmatpush1.msra.mxu0 %v3041
    %3150 = vmatprep.subr.mxu0 0.0
    %3151 = vmatpush1.msra.mxu0 %v3042
    %3152 = vmatprep.subr.mxu0 0.0
    %3153 = vmatpush1.msra.mxu0 %v3043
    %3154 = vmatprep.subr.mxu0 0.0
    %3155 = vmatpush1.msra.mxu0 %v3044
    %3156 = vmatprep.subr.mxu0 0.0
    %3157 = vmatpush1.msra.mxu0 %v3045
    %3158 = vmatprep.subr.mxu0 0.0
    %3159 = vmatpush1.msra.mxu0 %v3046
    %3160 = vmatprep.subr.mxu0 0.0
    %3161 = vmatpush1.msra.mxu0 %v3047
    %3162 = vmatprep.subr.mxu0 0.0
    %3163 = vmatpush1.msra.mxu0 %v3048
    %3164 = vmatprep.subr.mxu0 0.0
    %3165 = vmatpush1.msra.mxu0 %v3049
    %3166 = vmatprep.subr.mxu0 0.0
    %3167 = vmatpush1.msra.mxu0 %v3050
    %3168 = vmatprep.subr.mxu0 0.0
    %3169 = vmatpush1.msra.mxu0 %v3051
    %3170 = vmatprep.subr.mxu0 0.0
    %3171 = vmatpush1.msra.mxu0 %v3052
    %3172 = vmatprep.subr.mxu0 0.0
    %3173 = vmatpush1.msra.mxu0 %v3053
    %3174 = vmatprep.subr.mxu0 0.0
    %3175 = vmatpush1.msra.mxu0 %v3054
    %3176 = vmatprep.subr.mxu0 0.0
    %3177 = vmatpush1.msra.mxu0 %v3055
    %3178 = vmatprep.subr.mxu0 0.0
    %3179 = vmatpush1.msra.mxu0 %v3056
    %3180 = vmatprep.subr.mxu0 0.0
    %3181 = vmatpush1.msra.mxu0 %v3057
    %3182 = vmatprep.subr.mxu0 0.0
    %3183 = vmatpush1.msra.mxu0 %v3058
    %3184 = vmatprep.subr.mxu0 0.0
    %3185 = vmatpush1.msra.mxu0 %v3059
    %3186 = vmatprep.subr.mxu0 0.0
    %3187 = vmatpush1.msra.mxu0 %v3060
    %3188 = vmatprep.subr.mxu0 0.0
    %3189 = vmatpush1.msra.mxu0 %v3061
    %3190 = vmatprep.subr.mxu0 0.0
    %3191 = vmatpush1.msra.mxu0 %v3062
    %3192 = vmatprep.subr.mxu0 0.0
    %3193 = vmatpush1.msra.mxu0 %v3063
    %3194 = vmatprep.subr.mxu0 0.0
    %3195 = vmatpush1.msra.mxu0 %v3064
    %3196 = vmatprep.subr.mxu0 0.0
    %3197 = vmatpush1.msra.mxu0 %v3065
    %3198 = vmatprep.subr.mxu0 0.0
    %3199 = vmatpush1.msra.mxu0 %v3066
    %3200 = vmatprep.subr.mxu0 0.0
    %3201 = vmatpush1.msra.mxu0 %v3067
    %3202 = vmatprep.mubr.f32.mxu0 %v2169
    %3203 = vmatmul.mubr.f32.gmra.mrb[0].mxu0 %v2168
    %v3204 = vpop.f32.mrb[0].mxu0
    %v3205 = vadd.f32 %v3135, %v3204
    %v3206 = vpop.f32.mrb[0].mxu0
    %3207 = vdwg.mxu0
    %v3208 = vadd.f32 %v3002, %v3205
    %s3209 = scalar_lea.vmem [#allocation12], 2560
    %v3210 = vld [vmem:[%s3209] sm:$0xff]
    %v3211 = vld [vmem:[%s3209 + $0x8] sm:$0xff]
    %v3212 = vld [vmem:[%s3209 + $0x10] sm:$0xff]
    %v3213 = vld [vmem:[%s3209 + $0x18] sm:$0xff]
    %v3214 = vld [vmem:[%s3209 + $0x20] sm:$0xff]
    %v3215 = vld [vmem:[%s3209 + $0x28] sm:$0xff]
    %v3216 = vld [vmem:[%s3209 + $0x30] sm:$0xff]
    %v3217 = vld [vmem:[%s3209 + $0x38] sm:$0xff]
    %v3218 = vld [vmem:[%s3209 + $0x40] sm:$0xff]
    %v3219 = vld [vmem:[%s3209 + $0x48] sm:$0xff]
    %v3220 = vld [vmem:[%s3209 + $0x50] sm:$0xff]
    %v3221 = vld [vmem:[%s3209 + $0x58] sm:$0xff]
    %v3222 = vld [vmem:[%s3209 + $0x60] sm:$0xff]
    %v3223 = vld [vmem:[%s3209 + $0x68] sm:$0xff]
    %v3224 = vld [vmem:[%s3209 + $0x70] sm:$0xff]
    %v3225 = vld [vmem:[%s3209 + $0x78] sm:$0xff]
    %v3226 = vld [vmem:[%s3209 + $0x80] sm:$0xff]
    %v3227 = vld [vmem:[%s3209 + $0x88] sm:$0xff]
    %v3228 = vld [vmem:[%s3209 + $0x90] sm:$0xff]
    %v3229 = vld [vmem:[%s3209 + $0x98] sm:$0xff]
    %v3230 = vld [vmem:[%s3209 + $0xa0] sm:$0xff]
    %v3231 = vld [vmem:[%s3209 + $0xa8] sm:$0xff]
    %v3232 = vld [vmem:[%s3209 + $0xb0] sm:$0xff]
    %v3233 = vld [vmem:[%s3209 + $0xb8] sm:$0xff]
    %v3234 = vld [vmem:[%s3209 + $0xc0] sm:$0xff]
    %v3235 = vld [vmem:[%s3209 + $0xc8] sm:$0xff]
    %v3236 = vld [vmem:[%s3209 + $0xd0] sm:$0xff]
    %v3237 = vld [vmem:[%s3209 + $0xd8] sm:$0xff]
    %v3238 = vld [vmem:[%s3209 + $0xe0] sm:$0xff]
    %v3239 = vld [vmem:[%s3209 + $0xe8] sm:$0xff]
    %v3240 = vld [vmem:[%s3209 + $0xf0] sm:$0xff]
    %v3241 = vld [vmem:[%s3209 + $0xf8] sm:$0xff]
    %v3242 = vld [vmem:[%s3209 + $0x100] sm:$0xff]
    %v3243 = vld [vmem:[%s3209 + $0x108] sm:$0xff]
    %v3244 = vld [vmem:[%s3209 + $0x110] sm:$0xff]
    %v3245 = vld [vmem:[%s3209 + $0x118] sm:$0xff]
    %v3246 = vld [vmem:[%s3209 + $0x120] sm:$0xff]
    %v3247 = vld [vmem:[%s3209 + $0x128] sm:$0xff]
    %v3248 = vld [vmem:[%s3209 + $0x130] sm:$0xff]
    %v3249 = vld [vmem:[%s3209 + $0x138] sm:$0xff]
    %v3250 = vld [vmem:[%s3209 + $0x140] sm:$0xff]
    %v3251 = vld [vmem:[%s3209 + $0x148] sm:$0xff]
    %v3252 = vld [vmem:[%s3209 + $0x150] sm:$0xff]
    %v3253 = vld [vmem:[%s3209 + $0x158] sm:$0xff]
    %v3254 = vld [vmem:[%s3209 + $0x160] sm:$0xff]
    %v3255 = vld [vmem:[%s3209 + $0x168] sm:$0xff]
    %v3256 = vld [vmem:[%s3209 + $0x170] sm:$0xff]
    %v3257 = vld [vmem:[%s3209 + $0x178] sm:$0xff]
    %v3258 = vld [vmem:[%s3209 + $0x180] sm:$0xff]
    %v3259 = vld [vmem:[%s3209 + $0x188] sm:$0xff]
    %v3260 = vld [vmem:[%s3209 + $0x190] sm:$0xff]
    %v3261 = vld [vmem:[%s3209 + $0x198] sm:$0xff]
    %v3262 = vld [vmem:[%s3209 + $0x1a0] sm:$0xff]
    %v3263 = vld [vmem:[%s3209 + $0x1a8] sm:$0xff]
    %v3264 = vld [vmem:[%s3209 + $0x1b0] sm:$0xff]
    %v3265 = vld [vmem:[%s3209 + $0x1b8] sm:$0xff]
    %v3266 = vld [vmem:[%s3209 + $0x1c0] sm:$0xff]
    %v3267 = vld [vmem:[%s3209 + $0x1c8] sm:$0xff]
    %v3268 = vld [vmem:[%s3209 + $0x1d0] sm:$0xff]
    %v3269 = vld [vmem:[%s3209 + $0x1d8] sm:$0xff]
    %v3270 = vld [vmem:[%s3209 + $0x1e0] sm:$0xff]
    %v3271 = vld [vmem:[%s3209 + $0x1e8] sm:$0xff]
    %v3272 = vld [vmem:[%s3209 + $0x1f0] sm:$0xff]
    %v3273 = vld [vmem:[%s3209 + $0x1f8] sm:$0xff]
    %3274 = vmatprep.subr.mxu0 0.0
    %3275 = vmatpush1.msra.mxu0 %v3210
    %3276 = vmatprep.subr.mxu0 0.0
    %3277 = vmatpush1.msra.mxu0 %v3211
    %3278 = vmatprep.subr.mxu0 0.0
    %3279 = vmatpush1.msra.mxu0 %v3212
    %3280 = vmatprep.subr.mxu0 0.0
    %3281 = vmatpush1.msra.mxu0 %v3213
    %3282 = vmatprep.subr.mxu0 0.0
    %3283 = vmatpush1.msra.mxu0 %v3214
    %3284 = vmatprep.subr.mxu0 0.0
    %3285 = vmatpush1.msra.mxu0 %v3215
    %3286 = vmatprep.subr.mxu0 0.0
    %3287 = vmatpush1.msra.mxu0 %v3216
    %3288 = vmatprep.subr.mxu0 0.0
    %3289 = vmatpush1.msra.mxu0 %v3217
    %3290 = vmatprep.subr.mxu0 0.0
    %3291 = vmatpush1.msra.mxu0 %v3218
    %3292 = vmatprep.subr.mxu0 0.0
    %3293 = vmatpush1.msra.mxu0 %v3219
    %3294 = vmatprep.subr.mxu0 0.0
    %3295 = vmatpush1.msra.mxu0 %v3220
    %3296 = vmatprep.subr.mxu0 0.0
    %3297 = vmatpush1.msra.mxu0 %v3221
    %3298 = vmatprep.subr.mxu0 0.0
    %3299 = vmatpush1.msra.mxu0 %v3222
    %3300 = vmatprep.subr.mxu0 0.0
    %3301 = vmatpush1.msra.mxu0 %v3223
    %3302 = vmatprep.subr.mxu0 0.0
    %3303 = vmatpush1.msra.mxu0 %v3224
    %3304 = vmatprep.subr.mxu0 0.0
    %3305 = vmatpush1.msra.mxu0 %v3225
    %3306 = vmatprep.subr.mxu0 0.0
    %3307 = vmatpush1.msra.mxu0 %v3226
    %3308 = vmatprep.subr.mxu0 0.0
    %3309 = vmatpush1.msra.mxu0 %v3227
    %3310 = vmatprep.subr.mxu0 0.0
    %3311 = vmatpush1.msra.mxu0 %v3228
    %3312 = vmatprep.subr.mxu0 0.0
    %3313 = vmatpush1.msra.mxu0 %v3229
    %3314 = vmatprep.subr.mxu0 0.0
    %3315 = vmatpush1.msra.mxu0 %v3230
    %3316 = vmatprep.subr.mxu0 0.0
    %3317 = vmatpush1.msra.mxu0 %v3231
    %3318 = vmatprep.subr.mxu0 0.0
    %3319 = vmatpush1.msra.mxu0 %v3232
    %3320 = vmatprep.subr.mxu0 0.0
    %3321 = vmatpush1.msra.mxu0 %v3233
    %3322 = vmatprep.subr.mxu0 0.0
    %3323 = vmatpush1.msra.mxu0 %v3234
    %3324 = vmatprep.subr.mxu0 0.0
    %3325 = vmatpush1.msra.mxu0 %v3235
    %3326 = vmatprep.subr.mxu0 0.0
    %3327 = vmatpush1.msra.mxu0 %v3236
    %3328 = vmatprep.subr.mxu0 0.0
    %3329 = vmatpush1.msra.mxu0 %v3237
    %3330 = vmatprep.subr.mxu0 0.0
    %3331 = vmatpush1.msra.mxu0 %v3238
    %3332 = vmatprep.subr.mxu0 0.0
    %3333 = vmatpush1.msra.mxu0 %v3239
    %3334 = vmatprep.subr.mxu0 0.0
    %3335 = vmatpush1.msra.mxu0 %v3240
    %3336 = vmatprep.subr.mxu0 0.0
    %3337 = vmatpush1.msra.mxu0 %v3241
    %3338 = vmatprep.mubr.f32.mxu0 %v2171
    %3339 = vmatmul.mubr.f32.gmra.mrb[0].mxu0 %v2170
    %v3340 = vpop.f32.mrb[0].mxu0
    %v3341 = vadd.f32 0.0, %v3340
    %v3342 = vpop.f32.mrb[0].mxu0
    %3343 = vdwg.mxu0
    %3344 = vmatprep.subr.mxu0 0.0
    %3345 = vmatpush1.msra.mxu0 %v3242
    %3346 = vmatprep.subr.mxu0 0.0
    %3347 = vmatpush1.msra.mxu0 %v3243
    %3348 = vmatprep.subr.mxu0 0.0
    %3349 = vmatpush1.msra.mxu0 %v3244
    %3350 = vmatprep.subr.mxu0 0.0
    %3351 = vmatpush1.msra.mxu0 %v3245
    %3352 = vmatprep.subr.mxu0 0.0
    %3353 = vmatpush1.msra.mxu0 %v3246
    %3354 = vmatprep.subr.mxu0 0.0
    %3355 = vmatpush1.msra.mxu0 %v3247
    %3356 = vmatprep.subr.mxu0 0.0
    %3357 = vmatpush1.msra.mxu0 %v3248
    %3358 = vmatprep.subr.mxu0 0.0
    %3359 = vmatpush1.msra.mxu0 %v3249
    %3360 = vmatprep.subr.mxu0 0.0
    %3361 = vmatpush1.msra.mxu0 %v3250
    %3362 = vmatprep.subr.mxu0 0.0
    %3363 = vmatpush1.msra.mxu0 %v3251
    %3364 = vmatprep.subr.mxu0 0.0
    %3365 = vmatpush1.msra.mxu0 %v3252
    %3366 = vmatprep.subr.mxu0 0.0
    %3367 = vmatpush1.msra.mxu0 %v3253
    %3368 = vmatprep.subr.mxu0 0.0
    %3369 = vmatpush1.msra.mxu0 %v3254
    %3370 = vmatprep.subr.mxu0 0.0
    %3371 = vmatpush1.msra.mxu0 %v3255
    %3372 = vmatprep.subr.mxu0 0.0
    %3373 = vmatpush1.msra.mxu0 %v3256
    %3374 = vmatprep.subr.mxu0 0.0
    %3375 = vmatpush1.msra.mxu0 %v3257
    %3376 = vmatprep.subr.mxu0 0.0
    %3377 = vmatpush1.msra.mxu0 %v3258
    %3378 = vmatprep.subr.mxu0 0.0
    %3379 = vmatpush1.msra.mxu0 %v3259
    %3380 = vmatprep.subr.mxu0 0.0
    %3381 = vmatpush1.msra.mxu0 %v3260
    %3382 = vmatprep.subr.mxu0 0.0
    %3383 = vmatpush1.msra.mxu0 %v3261
    %3384 = vmatprep.subr.mxu0 0.0
    %3385 = vmatpush1.msra.mxu0 %v3262
    %3386 = vmatprep.subr.mxu0 0.0
    %3387 = vmatpush1.msra.mxu0 %v3263
    %3388 = vmatprep.subr.mxu0 0.0
    %3389 = vmatpush1.msra.mxu0 %v3264
    %3390 = vmatprep.subr.mxu0 0.0
    %3391 = vmatpush1.msra.mxu0 %v3265
    %3392 = vmatprep.subr.mxu0 0.0
    %3393 = vmatpush1.msra.mxu0 %v3266
    %3394 = vmatprep.subr.mxu0 0.0
    %3395 = vmatpush1.msra.mxu0 %v3267
    %3396 = vmatprep.subr.mxu0 0.0
    %3397 = vmatpush1.msra.mxu0 %v3268
    %3398 = vmatprep.subr.mxu0 0.0
    %3399 = vmatpush1.msra.mxu0 %v3269
    %3400 = vmatprep.subr.mxu0 0.0
    %3401 = vmatpush1.msra.mxu0 %v3270
    %3402 = vmatprep.subr.mxu0 0.0
    %3403 = vmatpush1.msra.mxu0 %v3271
    %3404 = vmatprep.subr.mxu0 0.0
    %3405 = vmatpush1.msra.mxu0 %v3272
    %3406 = vmatprep.subr.mxu0 0.0
    %3407 = vmatpush1.msra.mxu0 %v3273
    %3408 = vmatprep.mubr.f32.mxu0 %v2173
    %3409 = vmatmul.mubr.f32.gmra.mrb[0].mxu0 %v2172
    %v3410 = vpop.f32.mrb[0].mxu0
    %v3411 = vadd.f32 %v3341, %v3410
    %v3412 = vpop.f32.mrb[0].mxu0
    %3413 = vdwg.mxu0
    %v3414 = vadd.f32 %v3208, %v3411
    %s3415 = scalar_lea.vmem [#allocation12], 3072
    %v3416 = vld [vmem:[%s3415] sm:$0xff]
    %v3417 = vld [vmem:[%s3415 + $0x8] sm:$0xff]
    %v3418 = vld [vmem:[%s3415 + $0x10] sm:$0xff]
    %v3419 = vld [vmem:[%s3415 + $0x18] sm:$0xff]
    %v3420 = vld [vmem:[%s3415 + $0x20] sm:$0xff]
    %v3421 = vld [vmem:[%s3415 + $0x28] sm:$0xff]
    %v3422 = vld [vmem:[%s3415 + $0x30] sm:$0xff]
    %v3423 = vld [vmem:[%s3415 + $0x38] sm:$0xff]
    %v3424 = vld [vmem:[%s3415 + $0x40] sm:$0xff]
    %v3425 = vld [vmem:[%s3415 + $0x48] sm:$0xff]
    %v3426 = vld [vmem:[%s3415 + $0x50] sm:$0xff]
    %v3427 = vld [vmem:[%s3415 + $0x58] sm:$0xff]
    %v3428 = vld [vmem:[%s3415 + $0x60] sm:$0xff]
    %v3429 = vld [vmem:[%s3415 + $0x68] sm:$0xff]
    %v3430 = vld [vmem:[%s3415 + $0x70] sm:$0xff]
    %v3431 = vld [vmem:[%s3415 + $0x78] sm:$0xff]
    %v3432 = vld [vmem:[%s3415 + $0x80] sm:$0xff]
    %v3433 = vld [vmem:[%s3415 + $0x88] sm:$0xff]
    %v3434 = vld [vmem:[%s3415 + $0x90] sm:$0xff]
    %v3435 = vld [vmem:[%s3415 + $0x98] sm:$0xff]
    %v3436 = vld [vmem:[%s3415 + $0xa0] sm:$0xff]
    %v3437 = vld [vmem:[%s3415 + $0xa8] sm:$0xff]
    %v3438 = vld [vmem:[%s3415 + $0xb0] sm:$0xff]
    %v3439 = vld [vmem:[%s3415 + $0xb8] sm:$0xff]
    %v3440 = vld [vmem:[%s3415 + $0xc0] sm:$0xff]
    %v3441 = vld [vmem:[%s3415 + $0xc8] sm:$0xff]
    %v3442 = vld [vmem:[%s3415 + $0xd0] sm:$0xff]
    %v3443 = vld [vmem:[%s3415 + $0xd8] sm:$0xff]
    %v3444 = vld [vmem:[%s3415 + $0xe0] sm:$0xff]
    %v3445 = vld [vmem:[%s3415 + $0xe8] sm:$0xff]
    %v3446 = vld [vmem:[%s3415 + $0xf0] sm:$0xff]
    %v3447 = vld [vmem:[%s3415 + $0xf8] sm:$0xff]
    %v3448 = vld [vmem:[%s3415 + $0x100] sm:$0xff]
    %v3449 = vld [vmem:[%s3415 + $0x108] sm:$0xff]
    %v3450 = vld [vmem:[%s3415 + $0x110] sm:$0xff]
    %v3451 = vld [vmem:[%s3415 + $0x118] sm:$0xff]
    %v3452 = vld [vmem:[%s3415 + $0x120] sm:$0xff]
    %v3453 = vld [vmem:[%s3415 + $0x128] sm:$0xff]
    %v3454 = vld [vmem:[%s3415 + $0x130] sm:$0xff]
    %v3455 = vld [vmem:[%s3415 + $0x138] sm:$0xff]
    %v3456 = vld [vmem:[%s3415 + $0x140] sm:$0xff]
    %v3457 = vld [vmem:[%s3415 + $0x148] sm:$0xff]
    %v3458 = vld [vmem:[%s3415 + $0x150] sm:$0xff]
    %v3459 = vld [vmem:[%s3415 + $0x158] sm:$0xff]
    %v3460 = vld [vmem:[%s3415 + $0x160] sm:$0xff]
    %v3461 = vld [vmem:[%s3415 + $0x168] sm:$0xff]
    %v3462 = vld [vmem:[%s3415 + $0x170] sm:$0xff]
    %v3463 = vld [vmem:[%s3415 + $0x178] sm:$0xff]
    %v3464 = vld [vmem:[%s3415 + $0x180] sm:$0xff]
    %v3465 = vld [vmem:[%s3415 + $0x188] sm:$0xff]
    %v3466 = vld [vmem:[%s3415 + $0x190] sm:$0xff]
    %v3467 = vld [vmem:[%s3415 + $0x198] sm:$0xff]
    %v3468 = vld [vmem:[%s3415 + $0x1a0] sm:$0xff]
    %v3469 = vld [vmem:[%s3415 + $0x1a8] sm:$0xff]
    %v3470 = vld [vmem:[%s3415 + $0x1b0] sm:$0xff]
    %v3471 = vld [vmem:[%s3415 + $0x1b8] sm:$0xff]
    %v3472 = vld [vmem:[%s3415 + $0x1c0] sm:$0xff]
    %v3473 = vld [vmem:[%s3415 + $0x1c8] sm:$0xff]
    %v3474 = vld [vmem:[%s3415 + $0x1d0] sm:$0xff]
    %v3475 = vld [vmem:[%s3415 + $0x1d8] sm:$0xff]
    %v3476 = vld [vmem:[%s3415 + $0x1e0] sm:$0xff]
    %v3477 = vld [vmem:[%s3415 + $0x1e8] sm:$0xff]
    %v3478 = vld [vmem:[%s3415 + $0x1f0] sm:$0xff]
    %v3479 = vld [vmem:[%s3415 + $0x1f8] sm:$0xff]
    %3480 = vmatprep.subr.mxu0 0.0
    %3481 = vmatpush1.msra.mxu0 %v3416
    %3482 = vmatprep.subr.mxu0 0.0
    %3483 = vmatpush1.msra.mxu0 %v3417
    %3484 = vmatprep.subr.mxu0 0.0
    %3485 = vmatpush1.msra.mxu0 %v3418
    %3486 = vmatprep.subr.mxu0 0.0
    %3487 = vmatpush1.msra.mxu0 %v3419
    %3488 = vmatprep.subr.mxu0 0.0
    %3489 = vmatpush1.msra.mxu0 %v3420
    %3490 = vmatprep.subr.mxu0 0.0
    %3491 = vmatpush1.msra.mxu0 %v3421
    %3492 = vmatprep.subr.mxu0 0.0
    %3493 = vmatpush1.msra.mxu0 %v3422
    %3494 = vmatprep.subr.mxu0 0.0
    %3495 = vmatpush1.msra.mxu0 %v3423
    %3496 = vmatprep.subr.mxu0 0.0
    %3497 = vmatpush1.msra.mxu0 %v3424
    %3498 = vmatprep.subr.mxu0 0.0
    %3499 = vmatpush1.msra.mxu0 %v3425
    %3500 = vmatprep.subr.mxu0 0.0
    %3501 = vmatpush1.msra.mxu0 %v3426
    %3502 = vmatprep.subr.mxu0 0.0
    %3503 = vmatpush1.msra.mxu0 %v3427
    %3504 = vmatprep.subr.mxu0 0.0
    %3505 = vmatpush1.msra.mxu0 %v3428
    %3506 = vmatprep.subr.mxu0 0.0
    %3507 = vmatpush1.msra.mxu0 %v3429
    %3508 = vmatprep.subr.mxu0 0.0
    %3509 = vmatpush1.msra.mxu0 %v3430
    %3510 = vmatprep.subr.mxu0 0.0
    %3511 = vmatpush1.msra.mxu0 %v3431
    %3512 = vmatprep.subr.mxu0 0.0
    %3513 = vmatpush1.msra.mxu0 %v3432
    %3514 = vmatprep.subr.mxu0 0.0
    %3515 = vmatpush1.msra.mxu0 %v3433
    %3516 = vmatprep.subr.mxu0 0.0
    %3517 = vmatpush1.msra.mxu0 %v3434
    %3518 = vmatprep.subr.mxu0 0.0
    %3519 = vmatpush1.msra.mxu0 %v3435
    %3520 = vmatprep.subr.mxu0 0.0
    %3521 = vmatpush1.msra.mxu0 %v3436
    %3522 = vmatprep.subr.mxu0 0.0
    %3523 = vmatpush1.msra.mxu0 %v3437
    %3524 = vmatprep.subr.mxu0 0.0
    %3525 = vmatpush1.msra.mxu0 %v3438
    %3526 = vmatprep.subr.mxu0 0.0
    %3527 = vmatpush1.msra.mxu0 %v3439
    %3528 = vmatprep.subr.mxu0 0.0
    %3529 = vmatpush1.msra.mxu0 %v3440
    %3530 = vmatprep.subr.mxu0 0.0
    %3531 = vmatpush1.msra.mxu0 %v3441
    %3532 = vmatprep.subr.mxu0 0.0
    %3533 = vmatpush1.msra.mxu0 %v3442
    %3534 = vmatprep.subr.mxu0 0.0
    %3535 = vmatpush1.msra.mxu0 %v3443
    %3536 = vmatprep.subr.mxu0 0.0
    %3537 = vmatpush1.msra.mxu0 %v3444
    %3538 = vmatprep.subr.mxu0 0.0
    %3539 = vmatpush1.msra.mxu0 %v3445
    %3540 = vmatprep.subr.mxu0 0.0
    %3541 = vmatpush1.msra.mxu0 %v3446
    %3542 = vmatprep.subr.mxu0 0.0
    %3543 = vmatpush1.msra.mxu0 %v3447
    %3544 = vmatprep.mubr.f32.mxu0 %v2175
    %3545 = vmatmul.mubr.f32.gmra.mrb[0].mxu0 %v2174
    %v3546 = vpop.f32.mrb[0].mxu0
    %v3547 = vadd.f32 0.0, %v3546
    %v3548 = vpop.f32.mrb[0].mxu0
    %3549 = vdwg.mxu0
    %3550 = vmatprep.subr.mxu0 0.0
    %3551 = vmatpush1.msra.mxu0 %v3448
    %3552 = vmatprep.subr.mxu0 0.0
    %3553 = vmatpush1.msra.mxu0 %v3449
    %3554 = vmatprep.subr.mxu0 0.0
    %3555 = vmatpush1.msra.mxu0 %v3450
    %3556 = vmatprep.subr.mxu0 0.0
    %3557 = vmatpush1.msra.mxu0 %v3451
    %3558 = vmatprep.subr.mxu0 0.0
    %3559 = vmatpush1.msra.mxu0 %v3452
    %3560 = vmatprep.subr.mxu0 0.0
    %3561 = vmatpush1.msra.mxu0 %v3453
    %3562 = vmatprep.subr.mxu0 0.0
    %3563 = vmatpush1.msra.mxu0 %v3454
    %3564 = vmatprep.subr.mxu0 0.0
    %3565 = vmatpush1.msra.mxu0 %v3455
    %3566 = vmatprep.subr.mxu0 0.0
    %3567 = vmatpush1.msra.mxu0 %v3456
    %3568 = vmatprep.subr.mxu0 0.0
    %3569 = vmatpush1.msra.mxu0 %v3457
    %3570 = vmatprep.subr.mxu0 0.0
    %3571 = vmatpush1.msra.mxu0 %v3458
    %3572 = vmatprep.subr.mxu0 0.0
    %3573 = vmatpush1.msra.mxu0 %v3459
    %3574 = vmatprep.subr.mxu0 0.0
    %3575 = vmatpush1.msra.mxu0 %v3460
    %3576 = vmatprep.subr.mxu0 0.0
    %3577 = vmatpush1.msra.mxu0 %v3461
    %3578 = vmatprep.subr.mxu0 0.0
    %3579 = vmatpush1.msra.mxu0 %v3462
    %3580 = vmatprep.subr.mxu0 0.0
    %3581 = vmatpush1.msra.mxu0 %v3463
    %3582 = vmatprep.subr.mxu0 0.0
    %3583 = vmatpush1.msra.mxu0 %v3464
    %3584 = vmatprep.subr.mxu0 0.0
    %3585 = vmatpush1.msra.mxu0 %v3465
    %3586 = vmatprep.subr.mxu0 0.0
    %3587 = vmatpush1.msra.mxu0 %v3466
    %3588 = vmatprep.subr.mxu0 0.0
    %3589 = vmatpush1.msra.mxu0 %v3467
    %3590 = vmatprep.subr.mxu0 0.0
    %3591 = vmatpush1.msra.mxu0 %v3468
    %3592 = vmatprep.subr.mxu0 0.0
    %3593 = vmatpush1.msra.mxu0 %v3469
    %3594 = vmatprep.subr.mxu0 0.0
    %3595 = vmatpush1.msra.mxu0 %v3470
    %3596 = vmatprep.subr.mxu0 0.0
    %3597 = vmatpush1.msra.mxu0 %v3471
    %3598 = vmatprep.subr.mxu0 0.0
    %3599 = vmatpush1.msra.mxu0 %v3472
    %3600 = vmatprep.subr.mxu0 0.0
    %3601 = vmatpush1.msra.mxu0 %v3473
    %3602 = vmatprep.subr.mxu0 0.0
    %3603 = vmatpush1.msra.mxu0 %v3474
    %3604 = vmatprep.subr.mxu0 0.0
    %3605 = vmatpush1.msra.mxu0 %v3475
    %3606 = vmatprep.subr.mxu0 0.0
    %3607 = vmatpush1.msra.mxu0 %v3476
    %3608 = vmatprep.subr.mxu0 0.0
    %3609 = vmatpush1.msra.mxu0 %v3477
    %3610 = vmatprep.subr.mxu0 0.0
    %3611 = vmatpush1.msra.mxu0 %v3478
    %3612 = vmatprep.subr.mxu0 0.0
    %3613 = vmatpush1.msra.mxu0 %v3479
    %3614 = vmatprep.mubr.f32.mxu0 %v2177
    %3615 = vmatmul.mubr.f32.gmra.mrb[0].mxu0 %v2176
    %v3616 = vpop.f32.mrb[0].mxu0
    %v3617 = vadd.f32 %v3547, %v3616
    %v3618 = vpop.f32.mrb[0].mxu0
    %3619 = vdwg.mxu0
    %v3620 = vadd.f32 %v3414, %v3617
    %s3621 = scalar_lea.vmem [#allocation12], 3584
    %v3622 = vld [vmem:[%s3621] sm:$0xff]
    %v3623 = vld [vmem:[%s3621 + $0x8] sm:$0xff]
    %v3624 = vld [vmem:[%s3621 + $0x10] sm:$0xff]
    %v3625 = vld [vmem:[%s3621 + $0x18] sm:$0xff]
    %v3626 = vld [vmem:[%s3621 + $0x20] sm:$0xff]
    %v3627 = vld [vmem:[%s3621 + $0x28] sm:$0xff]
    %v3628 = vld [vmem:[%s3621 + $0x30] sm:$0xff]
    %v3629 = vld [vmem:[%s3621 + $0x38] sm:$0xff]
    %v3630 = vld [vmem:[%s3621 + $0x40] sm:$0xff]
    %v3631 = vld [vmem:[%s3621 + $0x48] sm:$0xff]
    %v3632 = vld [vmem:[%s3621 + $0x50] sm:$0xff]
    %v3633 = vld [vmem:[%s3621 + $0x58] sm:$0xff]
    %v3634 = vld [vmem:[%s3621 + $0x60] sm:$0xff]
    %v3635 = vld [vmem:[%s3621 + $0x68] sm:$0xff]
    %v3636 = vld [vmem:[%s3621 + $0x70] sm:$0xff]
    %v3637 = vld [vmem:[%s3621 + $0x78] sm:$0xff]
    %v3638 = vld [vmem:[%s3621 + $0x80] sm:$0xff]
    %v3639 = vld [vmem:[%s3621 + $0x88] sm:$0xff]
    %v3640 = vld [vmem:[%s3621 + $0x90] sm:$0xff]
    %v3641 = vld [vmem:[%s3621 + $0x98] sm:$0xff]
    %v3642 = vld [vmem:[%s3621 + $0xa0] sm:$0xff]
    %v3643 = vld [vmem:[%s3621 + $0xa8] sm:$0xff]
    %v3644 = vld [vmem:[%s3621 + $0xb0] sm:$0xff]
    %v3645 = vld [vmem:[%s3621 + $0xb8] sm:$0xff]
    %v3646 = vld [vmem:[%s3621 + $0xc0] sm:$0xff]
    %v3647 = vld [vmem:[%s3621 + $0xc8] sm:$0xff]
    %v3648 = vld [vmem:[%s3621 + $0xd0] sm:$0xff]
    %v3649 = vld [vmem:[%s3621 + $0xd8] sm:$0xff]
    %v3650 = vld [vmem:[%s3621 + $0xe0] sm:$0xff]
    %v3651 = vld [vmem:[%s3621 + $0xe8] sm:$0xff]
    %v3652 = vld [vmem:[%s3621 + $0xf0] sm:$0xff]
    %v3653 = vld [vmem:[%s3621 + $0xf8] sm:$0xff]
    %v3654 = vld [vmem:[%s3621 + $0x100] sm:$0xff]
    %v3655 = vld [vmem:[%s3621 + $0x108] sm:$0xff]
    %v3656 = vld [vmem:[%s3621 + $0x110] sm:$0xff]
    %v3657 = vld [vmem:[%s3621 + $0x118] sm:$0xff]
    %v3658 = vld [vmem:[%s3621 + $0x120] sm:$0xff]
    %v3659 = vld [vmem:[%s3621 + $0x128] sm:$0xff]
    %v3660 = vld [vmem:[%s3621 + $0x130] sm:$0xff]
    %v3661 = vld [vmem:[%s3621 + $0x138] sm:$0xff]
    %v3662 = vld [vmem:[%s3621 + $0x140] sm:$0xff]
    %v3663 = vld [vmem:[%s3621 + $0x148] sm:$0xff]
    %v3664 = vld [vmem:[%s3621 + $0x150] sm:$0xff]
    %v3665 = vld [vmem:[%s3621 + $0x158] sm:$0xff]
    %v3666 = vld [vmem:[%s3621 + $0x160] sm:$0xff]
    %v3667 = vld [vmem:[%s3621 + $0x168] sm:$0xff]
    %v3668 = vld [vmem:[%s3621 + $0x170] sm:$0xff]
    %v3669 = vld [vmem:[%s3621 + $0x178] sm:$0xff]
    %v3670 = vld [vmem:[%s3621 + $0x180] sm:$0xff]
    %v3671 = vld [vmem:[%s3621 + $0x188] sm:$0xff]
    %v3672 = vld [vmem:[%s3621 + $0x190] sm:$0xff]
    %v3673 = vld [vmem:[%s3621 + $0x198] sm:$0xff]
    %v3674 = vld [vmem:[%s3621 + $0x1a0] sm:$0xff]
    %v3675 = vld [vmem:[%s3621 + $0x1a8] sm:$0xff]
    %v3676 = vld [vmem:[%s3621 + $0x1b0] sm:$0xff]
    %v3677 = vld [vmem:[%s3621 + $0x1b8] sm:$0xff]
    %v3678 = vld [vmem:[%s3621 + $0x1c0] sm:$0xff]
    %v3679 = vld [vmem:[%s3621 + $0x1c8] sm:$0xff]
    %v3680 = vld [vmem:[%s3621 + $0x1d0] sm:$0xff]
    %v3681 = vld [vmem:[%s3621 + $0x1d8] sm:$0xff]
    %v3682 = vld [vmem:[%s3621 + $0x1e0] sm:$0xff]
    %v3683 = vld [vmem:[%s3621 + $0x1e8] sm:$0xff]
    %v3684 = vld [vmem:[%s3621 + $0x1f0] sm:$0xff]
    %v3685 = vld [vmem:[%s3621 + $0x1f8] sm:$0xff]
    %3686 = vmatprep.subr.mxu0 0.0
    %3687 = vmatpush1.msra.mxu0 %v3622
    %3688 = vmatprep.subr.mxu0 0.0
    %3689 = vmatpush1.msra.mxu0 %v3623
    %3690 = vmatprep.subr.mxu0 0.0
    %3691 = vmatpush1.msra.mxu0 %v3624
    %3692 = vmatprep.subr.mxu0 0.0
    %3693 = vmatpush1.msra.mxu0 %v3625
    %3694 = vmatprep.subr.mxu0 0.0
    %3695 = vmatpush1.msra.mxu0 %v3626
    %3696 = vmatprep.subr.mxu0 0.0
    %3697 = vmatpush1.msra.mxu0 %v3627
    %3698 = vmatprep.subr.mxu0 0.0
    %3699 = vmatpush1.msra.mxu0 %v3628
    %3700 = vmatprep.subr.mxu0 0.0
    %3701 = vmatpush1.msra.mxu0 %v3629
    %3702 = vmatprep.subr.mxu0 0.0
    %3703 = vmatpush1.msra.mxu0 %v3630
    %3704 = vmatprep.subr.mxu0 0.0
    %3705 = vmatpush1.msra.mxu0 %v3631
    %3706 = vmatprep.subr.mxu0 0.0
    %3707 = vmatpush1.msra.mxu0 %v3632
    %3708 = vmatprep.subr.mxu0 0.0
    %3709 = vmatpush1.msra.mxu0 %v3633
    %3710 = vmatprep.subr.mxu0 0.0
    %3711 = vmatpush1.msra.mxu0 %v3634
    %3712 = vmatprep.subr.mxu0 0.0
    %3713 = vmatpush1.msra.mxu0 %v3635
    %3714 = vmatprep.subr.mxu0 0.0
    %3715 = vmatpush1.msra.mxu0 %v3636
    %3716 = vmatprep.subr.mxu0 0.0
    %3717 = vmatpush1.msra.mxu0 %v3637
    %3718 = vmatprep.subr.mxu0 0.0
    %3719 = vmatpush1.msra.mxu0 %v3638
    %3720 = vmatprep.subr.mxu0 0.0
    %3721 = vmatpush1.msra.mxu0 %v3639
    %3722 = vmatprep.subr.mxu0 0.0
    %3723 = vmatpush1.msra.mxu0 %v3640
    %3724 = vmatprep.subr.mxu0 0.0
    %3725 = vmatpush1.msra.mxu0 %v3641
    %3726 = vmatprep.subr.mxu0 0.0
    %3727 = vmatpush1.msra.mxu0 %v3642
    %3728 = vmatprep.subr.mxu0 0.0
    %3729 = vmatpush1.msra.mxu0 %v3643
    %3730 = vmatprep.subr.mxu0 0.0
    %3731 = vmatpush1.msra.mxu0 %v3644
    %3732 = vmatprep.subr.mxu0 0.0
    %3733 = vmatpush1.msra.mxu0 %v3645
    %3734 = vmatprep.subr.mxu0 0.0
    %3735 = vmatpush1.msra.mxu0 %v3646
    %3736 = vmatprep.subr.mxu0 0.0
    %3737 = vmatpush1.msra.mxu0 %v3647
    %3738 = vmatprep.subr.mxu0 0.0
    %3739 = vmatpush1.msra.mxu0 %v3648
    %3740 = vmatprep.subr.mxu0 0.0
    %3741 = vmatpush1.msra.mxu0 %v3649
    %3742 = vmatprep.subr.mxu0 0.0
    %3743 = vmatpush1.msra.mxu0 %v3650
    %3744 = vmatprep.subr.mxu0 0.0
    %3745 = vmatpush1.msra.mxu0 %v3651
    %3746 = vmatprep.subr.mxu0 0.0
    %3747 = vmatpush1.msra.mxu0 %v3652
    %3748 = vmatprep.subr.mxu0 0.0
    %3749 = vmatpush1.msra.mxu0 %v3653
    %3750 = vmatprep.mubr.f32.mxu0 %v2179
    %3751 = vmatmul.mubr.f32.gmra.mrb[0].mxu0 %v2178
    %v3752 = vpop.f32.mrb[0].mxu0
    %v3753 = vadd.f32 0.0, %v3752
    %v3754 = vpop.f32.mrb[0].mxu0
    %3755 = vdwg.mxu0
    %3756 = vmatprep.subr.mxu0 0.0
    %3757 = vmatpush1.msra.mxu0 %v3654
    %3758 = vmatprep.subr.mxu0 0.0
    %3759 = vmatpush1.msra.mxu0 %v3655
    %3760 = vmatprep.subr.mxu0 0.0
    %3761 = vmatpush1.msra.mxu0 %v3656
    %3762 = vmatprep.subr.mxu0 0.0
    %3763 = vmatpush1.msra.mxu0 %v3657
    %3764 = vmatprep.subr.mxu0 0.0
    %3765 = vmatpush1.msra.mxu0 %v3658
    %3766 = vmatprep.subr.mxu0 0.0
    %3767 = vmatpush1.msra.mxu0 %v3659
    %3768 = vmatprep.subr.mxu0 0.0
    %3769 = vmatpush1.msra.mxu0 %v3660
    %3770 = vmatprep.subr.mxu0 0.0
    %3771 = vmatpush1.msra.mxu0 %v3661
    %3772 = vmatprep.subr.mxu0 0.0
    %3773 = vmatpush1.msra.mxu0 %v3662
    %3774 = vmatprep.subr.mxu0 0.0
    %3775 = vmatpush1.msra.mxu0 %v3663
    %3776 = vmatprep.subr.mxu0 0.0
    %3777 = vmatpush1.msra.mxu0 %v3664
    %3778 = vmatprep.subr.mxu0 0.0
    %3779 = vmatpush1.msra.mxu0 %v3665
    %3780 = vmatprep.subr.mxu0 0.0
    %3781 = vmatpush1.msra.mxu0 %v3666
    %3782 = vmatprep.subr.mxu0 0.0
    %3783 = vmatpush1.msra.mxu0 %v3667
    %3784 = vmatprep.subr.mxu0 0.0
    %3785 = vmatpush1.msra.mxu0 %v3668
    %3786 = vmatprep.subr.mxu0 0.0
    %3787 = vmatpush1.msra.mxu0 %v3669
    %3788 = vmatprep.subr.mxu0 0.0
    %3789 = vmatpush1.msra.mxu0 %v3670
    %3790 = vmatprep.subr.mxu0 0.0
    %3791 = vmatpush1.msra.mxu0 %v3671
    %3792 = vmatprep.subr.mxu0 0.0
    %3793 = vmatpush1.msra.mxu0 %v3672
    %3794 = vmatprep.subr.mxu0 0.0
    %3795 = vmatpush1.msra.mxu0 %v3673
    %3796 = vmatprep.subr.mxu0 0.0
    %3797 = vmatpush1.msra.mxu0 %v3674
    %3798 = vmatprep.subr.mxu0 0.0
    %3799 = vmatpush1.msra.mxu0 %v3675
    %3800 = vmatprep.subr.mxu0 0.0
    %3801 = vmatpush1.msra.mxu0 %v3676
    %3802 = vmatprep.subr.mxu0 0.0
    %3803 = vmatpush1.msra.mxu0 %v3677
    %3804 = vmatprep.subr.mxu0 0.0
    %3805 = vmatpush1.msra.mxu0 %v3678
    %3806 = vmatprep.subr.mxu0 0.0
    %3807 = vmatpush1.msra.mxu0 %v3679
    %3808 = vmatprep.subr.mxu0 0.0
    %3809 = vmatpush1.msra.mxu0 %v3680
    %3810 = vmatprep.subr.mxu0 0.0
    %3811 = vmatpush1.msra.mxu0 %v3681
    %3812 = vmatprep.subr.mxu0 0.0
    %3813 = vmatpush1.msra.mxu0 %v3682
    %3814 = vmatprep.subr.mxu0 0.0
    %3815 = vmatpush1.msra.mxu0 %v3683
    %3816 = vmatprep.subr.mxu0 0.0
    %3817 = vmatpush1.msra.mxu0 %v3684
    %3818 = vmatprep.subr.mxu0 0.0
    %3819 = vmatpush1.msra.mxu0 %v3685
    %3820 = vmatprep.mubr.f32.mxu0 %v2181
    %3821 = vmatmul.mubr.f32.gmra.mrb[0].mxu0 %v2180
    %v3822 = vpop.f32.mrb[0].mxu0
    %v3823 = vadd.f32 %v3753, %v3822
    %v3824 = vpop.f32.mrb[0].mxu0
    %3825 = vdwg.mxu0
    %v3826 = vadd.f32 %v3620, %v3823
    %v3827 = vld [vmem:[#allocation14] sm:$0x1]
    %v3829 = vlaneseq
    %v3830 = vshrl.u32 %v3829, 7
    %v3831 = vsub.s32 0, %v3830
    %v3832 = vrot.slane %v3827, %v3831
    %v3834 = vadd.f32 %v3826, %v3832
    %v3835 = vmax.f32 %v3834, 0.0
    %v3836 = vld [vmem:[#allocation15] sm:$0xff]
    %v3837 = vld [vmem:[#allocation15 + $0x8] sm:$0xff]
    %v3838 = vld [vmem:[#allocation15 + $0x10] sm:$0xff]
    %v3839 = vld [vmem:[#allocation15 + $0x18] sm:$0xff]
    %v3840 = vld [vmem:[#allocation15 + $0x20] sm:$0xff]
    %v3841 = vld [vmem:[#allocation15 + $0x28] sm:$0xff]
    %v3842 = vld [vmem:[#allocation15 + $0x30] sm:$0xff]
    %v3843 = vld [vmem:[#allocation15 + $0x38] sm:$0xff]
    %v3844 = vld [vmem:[#allocation15 + $0x40] sm:$0xff]
    %v3845 = vld [vmem:[#allocation15 + $0x48] sm:$0xff]
    %v3846 = vld [vmem:[#allocation15 + $0x50] sm:$0xff]
    %v3847 = vld [vmem:[#allocation15 + $0x58] sm:$0xff]
    %v3848 = vld [vmem:[#allocation15 + $0x60] sm:$0xff]
    %v3849 = vld [vmem:[#allocation15 + $0x68] sm:$0xff]
    %v3850 = vld [vmem:[#allocation15 + $0x70] sm:$0xff]
    %v3851 = vld [vmem:[#allocation15 + $0x78] sm:$0xff]
    %v3852 = vld [vmem:[#allocation17] sm:$0x1]
    %v3854 = vlaneseq
    %v3855 = vshrl.u32 %v3854, 7
    %v3856 = vsub.s32 0, %v3855
    %v3857 = vrot.slane %v3852, %v3856
    %3859 = vmatprep.subr.mxu0 0.0
    %3860 = vmatpush1.msra.mxu0 %v3836
    %3861 = vmatprep.subr.mxu0 0.0
    %3862 = vmatpush1.msra.mxu0 %v3837
    %3863 = vmatprep.subr.mxu0 0.0
    %3864 = vmatpush1.msra.mxu0 %v3838
    %3865 = vmatprep.subr.mxu0 0.0
    %3866 = vmatpush1.msra.mxu0 %v3839
    %3867 = vmatprep.subr.mxu0 0.0
    %3868 = vmatpush1.msra.mxu0 %v3840
    %3869 = vmatprep.subr.mxu0 0.0
    %3870 = vmatpush1.msra.mxu0 %v3841
    %3871 = vmatprep.subr.mxu0 0.0
    %3872 = vmatpush1.msra.mxu0 %v3842
    %3873 = vmatprep.subr.mxu0 0.0
    %3874 = vmatpush1.msra.mxu0 %v3843
    %3875 = vmatprep.subr.mxu0 0.0
    %3876 = vmatpush1.msra.mxu0 %v3844
    %3877 = vmatprep.subr.mxu0 0.0
    %3878 = vmatpush1.msra.mxu0 %v3845
    %3879 = vmatprep.subr.mxu0 0.0
    %3880 = vmatpush1.msra.mxu0 %v3846
    %3881 = vmatprep.subr.mxu0 0.0
    %3882 = vmatpush1.msra.mxu0 %v3847
    %3883 = vmatprep.subr.mxu0 0.0
    %3884 = vmatpush1.msra.mxu0 %v3848
    %3885 = vmatprep.subr.mxu0 0.0
    %3886 = vmatpush1.msra.mxu0 %v3849
    %3887 = vmatprep.subr.mxu0 0.0
    %3888 = vmatpush1.msra.mxu0 %v3850
    %3889 = vmatprep.subr.mxu0 0.0
    %3890 = vmatpush1.msra.mxu0 %v3851
    %3891 = vmatprep.subr.mxu0 0.0
    %3892 = vmatpush1.msra.mxu0 0.0
    %3893 = vmatprep.subr.mxu0 0.0
    %3894 = vmatpush1.msra.mxu0 0.0
    %3895 = vmatprep.subr.mxu0 0.0
    %3896 = vmatpush1.msra.mxu0 0.0
    %3897 = vmatprep.subr.mxu0 0.0
    %3898 = vmatpush1.msra.mxu0 0.0
    %3899 = vmatprep.subr.mxu0 0.0
    %3900 = vmatpush1.msra.mxu0 0.0
    %3901 = vmatprep.subr.mxu0 0.0
    %3902 = vmatpush1.msra.mxu0 0.0
    %3903 = vmatprep.subr.mxu0 0.0
    %3904 = vmatpush1.msra.mxu0 0.0
    %3905 = vmatprep.subr.mxu0 0.0
    %3906 = vmatpush1.msra.mxu0 0.0
    %3907 = vmatprep.subr.mxu0 0.0
    %3908 = vmatpush1.msra.mxu0 0.0
    %3909 = vmatprep.subr.mxu0 0.0
    %3910 = vmatpush1.msra.mxu0 0.0
    %3911 = vmatprep.subr.mxu0 0.0
    %3912 = vmatpush1.msra.mxu0 0.0
    %3913 = vmatprep.subr.mxu0 0.0
    %3914 = vmatpush1.msra.mxu0 0.0
    %3915 = vmatprep.subr.mxu0 0.0
    %3916 = vmatpush1.msra.mxu0 0.0
    %3917 = vmatprep.subr.mxu0 0.0
    %3918 = vmatpush1.msra.mxu0 0.0
    %3919 = vmatprep.subr.mxu0 0.0
    %3920 = vmatpush1.msra.mxu0 0.0
    %3921 = vmatprep.subr.mxu0 0.0
    %3922 = vmatpush1.msra.mxu0 0.0
    %3923 = vmatprep.mubr.f32.mxu0 0.0
    %3924 = vmatmul.mubr.f32.gmra.mrb[0].mxu0 %v3835
    %v3925 = vpop.f32.mrb[0].mxu0
    %v3926 = vadd.f32 %v3857, %v3925
    %v3927 = vpop.f32.mrb[0].mxu0
    %3928 = vdwg.mxu0
    %3929 = vst [vmem:[#allocation18] sm:$0xff] %v3926
    // Predicated region
    $region74: #{tpu_custom_call.1} parent=1 // pred_check
      _
    $region75: #{tpu_custom_call.1} parent=1 // pred_check_branch
      %3931 = sbr.rel (0) target = $region77
    $region76: #{tpu_custom_call.1} parent=1 // pred_region
      %s3933 = ssub.s32 128, 128
      %3934 = vsyncadd [#allocation5], %s3933
      %s3936 = sshll.u32 [#allocation18], 4
      %s3937 = int_to_ptr.vmem [resolvable:$true] %s3936
      %3939 = dma.vmem_to_hbm [thread:$0]  %s3937, 128, %s9, [#allocation5]
    $region77: #{tpu_custom_call.1} parent=1 // pred_fallthru
      _
    // Predicated region
    $region78: #{tpu_custom_call.1} parent=1 // pred_check
      _
    $region79: #{tpu_custom_call.1} parent=1 // pred_check_branch
      %3941 = sbr.rel (0) target = $region81
    $region80: #{tpu_custom_call.1} parent=1 // pred_region
      %3942 = dma.done [#allocation5], 128
    $region81: #{tpu_custom_call.1} parent=1 // pred_fallthru
      _
    %3943 = vsyncpa [#allocation4], 1
    %3944 = vsyncpa [#allocation7], 1
    %3945 = vsyncpa [#allocation10], 1
    %3946 = vsyncpa [#allocation13], 1
    %3947 = vsyncpa [#allocation16], 1
    %3948 = vsyncpa [#allocation5], 1

</llo_original>
